<compile_context>
chip_gen: v7x
topology: tpu7x:2x2x1
jax: 0.10.0
libtpu: 0.0.40
codegen_flags: <defaults>
</compile_context>

<pallas_src>
import functools
import numpy as np
import jax
import jax.numpy as jnp
from jax.experimental import pallas as pl
from jax.experimental.pallas import tpu as pltpu


# ----------------------------------------------------------------------------
# Fused Pallas kernel: num_prop propagation steps + readout + log_softmax
# ----------------------------------------------------------------------------
def _gnn_fused_kernel(g_in_ref, g_out_ref, scat_ref, tscat_ref, ff_ref, bb_ref,
                      w1_ref, b1_ref, w2_ref, b2_ref, w3_ref, b3_ref,
                      wi_ref, bi_ref, wh_ref, bh_ref,
                      ow1h_ref, ow1b_ref, ob1_ref, ow2_ref, ob2_ref,
                      ow3_ref, ob3_ref,
                      y_ref, *, num_prop, hidden_dim):
    f32 = jnp.float32
    H = hidden_dim

    # bf16 one-hot operators: upcast once (exact), reuse across all steps.
    g_in = g_in_ref[...].astype(f32)      # (M, E)  gather state at edge_in
    g_out = g_out_ref[...].astype(f32)    # (M, E)  gather state at edge_out
    scat = scat_ref[...].astype(f32)      # (E, M)  scatter-add msgs onto edge_out
    tscat = tscat_ref[...].astype(f32)    # (N, E)  scatter-add states onto tgt node
    ff = ff_ref[...]                      # (M, 16) static per-msg-edge features

    # msg_func layer-1 weight, packed rows = [state_in(H) | state_out(H) | ff(16)]
    w1 = w1_ref[...]                      # (2H+16, 64)
    w1_si = w1[0:H, :]                    # sublane slices at 8-aligned offsets
    w1_so = w1[H:2 * H, :]
    w1_ff = w1[2 * H:2 * H + 16, :]
    b1 = b1_ref[...]
    w2 = w2_ref[...]
    b2 = b2_ref[...]
    w3 = w3_ref[...]
    b3 = b3_ref[...]

    # GRU weights packed along the leading dim: index 0=r, 1=z, 2=n.
    wir, wiz, win = wi_ref[0], wi_ref[1], wi_ref[2]     # each (H, H)
    whr, whz, whn = wh_ref[0], wh_ref[1], wh_ref[2]     # each (H, H)
    bir, biz, bin_ = bi_ref[0], bi_ref[1], bi_ref[2]    # each (1, H)
    bhr, bhz, bhn = bh_ref[0], bh_ref[1], bh_ref[2]     # each (1, H)

    E = g_in.shape[1]
    state = jnp.zeros((E, H), f32)

    # num_prop is a static Python int -> fully unrolled, LLO sees the schedule.
    for _ in range(num_prop):
        # gathers via one-hot matmuls: (M, E) @ (E, H) -> (M, H)
        state_in = jnp.dot(g_in, state, preferred_element_type=f32)
        state_out = jnp.dot(g_out, state, preferred_element_type=f32)

        # msg_func: Linear(2H+16,64) -> ReLU -> Linear(64,64) -> ReLU -> Linear(64,H)
        h1 = jnp.maximum(
            jnp.dot(state_in, w1_si, preferred_element_type=f32)
            + jnp.dot(state_out, w1_so, preferred_element_type=f32)
            + jnp.dot(ff, w1_ff, preferred_element_type=f32) + b1, 0.0)
        h2 = jnp.maximum(jnp.dot(h1, w2, preferred_element_type=f32) + b2, 0.0)
        msg = jnp.dot(h2, w3, preferred_element_type=f32) + b3          # (M, H)

        # aggr='add' scatter onto message nodes: (E, M) @ (M, H) -> (E, H)
        msg_agg = jnp.dot(scat, msg, preferred_element_type=f32)

        # update_func = GRUCell(msg_agg, state)
        r = jax.nn.sigmoid(
            jnp.dot(msg_agg, wir, preferred_element_type=f32) + bir
            + jnp.dot(state, whr, preferred_element_type=f32) + bhr)
        z = jax.nn.sigmoid(
            jnp.dot(msg_agg, wiz, preferred_element_type=f32) + biz
            + jnp.dot(state, whz, preferred_element_type=f32) + bhz)
        n = jnp.tanh(
            jnp.dot(msg_agg, win, preferred_element_type=f32) + bin_
            + r * (jnp.dot(state, whn, preferred_element_type=f32) + bhn))
        state = (1.0 - z) * n + z * state

    # readout: scatter_add_ of edge states onto graph nodes, then output MLP
    agg = jnp.dot(tscat, state, preferred_element_type=f32)             # (N, H)
    o1 = jnp.maximum(
        jnp.dot(agg, ow1h_ref[...], preferred_element_type=f32)
        + jnp.dot(bb_ref[...], ow1b_ref[...], preferred_element_type=f32)
        + ob1_ref[...], 0.0)
    o2 = jnp.maximum(
        jnp.dot(o1, ow2_ref[...], preferred_element_type=f32) + ob2_ref[...], 0.0)
    logits = jnp.dot(o2, ow3_ref[...], preferred_element_type=f32) + ob3_ref[...]

    # log_softmax over dim 1 (2 classes)
    m = jnp.max(logits, axis=1, keepdims=True)
    lse = m + jnp.log(jnp.sum(jnp.exp(logits - m), axis=1, keepdims=True))
    y_ref[...] = logits - lse


# ----------------------------------------------------------------------------
# pallas_call wrapper
# ----------------------------------------------------------------------------
def _zero_index_map(i, nd):
    return (0,) * nd


def _full_specs(arrays):
    return [pl.BlockSpec(a.shape, functools.partial(_zero_index_map, nd=a.ndim))
            for a in arrays]


def torch_gnn_msggnn_parallel_forward(params, data, hidden_dim, num_prop):
    J_msg = data["edge_attr"]            # (E, 1)
    b = data["x"]                        # (N, 1)
    msg_node = data["edge_index"]        # (2, E)
    idx_msg_edge = data["idx_msg_edge"]  # (2, M)

    N = b.shape[0]
    E = msg_node.shape[1]

    edge_in, edge_out = idx_msg_edge[0], idx_msg_edge[1]   # (M,), (M,)
    src, tgt = msg_node[0], msg_node[1]                    # (E,), (E,)

    # constant per-msg-edge features (identical every propagation step)
    b_in, b_out = b[src], b[tgt]                            # (E, 1)
    ff_in = jnp.concatenate(
        [b_in[edge_in], -b_in[edge_in], b_out[edge_in], -b_out[edge_in],
         J_msg[edge_in], -J_msg[edge_in], -J_msg[edge_in], J_msg[edge_in]], axis=1)
    ff_out = jnp.concatenate(
        [b_in[edge_out], -b_in[edge_out], b_out[edge_out], -b_out[edge_out],
         J_msg[edge_out], -J_msg[edge_out], -J_msg[edge_out], J_msg[edge_out]], axis=1)
    ff = jnp.concatenate([ff_in, ff_out], axis=1)           # (M, 16)

    # one-hot gather / scatter-add operators, shipped as bf16 (0/1 exact)
    g_in = jax.nn.one_hot(edge_in, E, dtype=jnp.bfloat16)   # (M, E)
    g_out = jax.nn.one_hot(edge_out, E, dtype=jnp.bfloat16) # (M, E)
    scat = g_out.T                                          # (E, M)
    tscat = jax.nn.one_hot(tgt, N, dtype=jnp.bfloat16).T    # (N, E)

    bb = jnp.concatenate([b, -b], axis=1)                   # (N, 2)

    inputs = (g_in, g_out, scat, tscat, ff, bb,
              params["w1"], params["b1"], params["w2"], params["b2"],
              params["w3"], params["b3"],
              params["wi"], params["bi"], params["wh"], params["bh"],
              params["ow1h"], params["ow1b"], params["ob1"],
              params["ow2"], params["ob2"], params["ow3"], params["ob3"])

    kernel = functools.partial(_gnn_fused_kernel,
                               num_prop=num_prop, hidden_dim=hidden_dim)
    return pl.pallas_call(
        kernel,
        out_shape=jax.ShapeDtypeStruct((N, 2), jnp.float32),
        grid=(1,),
        in_specs=_full_specs(inputs),
        out_specs=pl.BlockSpec((N, 2), lambda i: (0, 0)),
        compiler_params=pltpu.CompilerParams(dimension_semantics=("arbitrary",)),
    )(*inputs)


# ----------------------------------------------------------------------------
# Deterministic parameter init (shapes follow the module __init__; weight rows
# are packed [state_in | state_out | ff_in,ff_out] which is an equivalent
# re-parameterization of torch.cat([state_in, ff_in, state_out, ff_out]))
# ----------------------------------------------------------------------------
def init_params(key, hidden_dim):
    H = hidden_dim
    ks = iter(jax.random.split(key, 12))

    def xavier(k, fan_in, fan_out, shape):
        bound = float(np.sqrt(6.0 / (fan_in + fan_out)))
        return jax.random.uniform(k, shape, jnp.float32, -bound, bound)

    p = {}
    # msg_func: Linear(2H+16, 64), Linear(64, 64), Linear(64, H); zero biases.
    p["w1"] = xavier(next(ks), 2 * H + 16, 64, (2 * H + 16, 64))
    p["b1"] = jnp.zeros((1, 64), jnp.float32)
    p["w2"] = xavier(next(ks), 64, 64, (64, 64))
    p["b2"] = jnp.zeros((1, 64), jnp.float32)
    p["w3"] = xavier(next(ks), 64, H, (64, H))
    p["b3"] = jnp.zeros((1, H), jnp.float32)
    # update_func = GRUCell(H, H): torch default U(-1/sqrt(H), 1/sqrt(H)),
    # gates packed along the leading dim [r, z, n].
    k = 1.0 / float(np.sqrt(H))
    p["wi"] = jax.random.uniform(next(ks), (3, H, H), jnp.float32, -k, k)
    p["wh"] = jax.random.uniform(next(ks), (3, H, H), jnp.float32, -k, k)
    p["bi"] = jax.random.uniform(next(ks), (3, 1, H), jnp.float32, -k, k)
    p["bh"] = jax.random.uniform(next(ks), (3, 1, H), jnp.float32, -k, k)
    # output_func: Linear(H+2, 64), Linear(64, 64), Linear(64, 2); zero biases.
    p["ow1h"] = xavier(next(ks), H + 2, 64, (H, 64))
    p["ow1b"] = xavier(next(ks), H + 2, 64, (2, 64))
    p["ob1"] = jnp.zeros((1, 64), jnp.float32)
    p["ow2"] = xavier(next(ks), 64, 64, (64, 64))
    p["ob2"] = jnp.zeros((1, 64), jnp.float32)
    p["ow3"] = xavier(next(ks), 64, 2, (64, 2))
    p["ob3"] = jnp.zeros((1, 2), jnp.float32)
    return p


# ----------------------------------------------------------------------------
# Pure-JAX reference (index gathers + segment_sum) for correctness checking
# ----------------------------------------------------------------------------
def reference_forward(p, data, hidden_dim, num_prop):
    H = hidden_dim
    J_msg, b = data["edge_attr"], data["x"]
    msg_node, idx_msg_edge = data["edge_index"], data["idx_msg_edge"]
    N, E = b.shape[0], msg_node.shape[1]
    edge_in, edge_out = idx_msg_edge[0], idx_msg_edge[1]
    src, tgt = msg_node[0], msg_node[1]
    b_in, b_out = b[src], b[tgt]
    ff_in = jnp.concatenate(
        [b_in[edge_in], -b_in[edge_in], b_out[edge_in], -b_out[edge_in],
         J_msg[edge_in], -J_msg[edge_in], -J_msg[edge_in], J_msg[edge_in]], axis=1)
    ff_out = jnp.concatenate(
        [b_in[edge_out], -b_in[edge_out], b_out[edge_out], -b_out[edge_out],
         J_msg[edge_out], -J_msg[edge_out], -J_msg[edge_out], J_msg[edge_out]], axis=1)
    ff = jnp.concatenate([ff_in, ff_out], axis=1)

    state = jnp.zeros((E, H), jnp.float32)
    for _ in range(num_prop):
        s_in, s_out = state[edge_in], state[edge_out]
        h1 = jax.nn.relu(s_in @ p["w1"][:H] + s_out @ p["w1"][H:2 * H]
                         + ff @ p["w1"][2 * H:] + p["b1"])
        h2 = jax.nn.relu(h1 @ p["w2"] + p["b2"])
        msg = h2 @ p["w3"] + p["b3"]
        msg_agg = jax.ops.segment_sum(msg, edge_out, num_segments=E)
        r = jax.nn.sigmoid(msg_agg @ p["wi"][0] + p["bi"][0]
                           + state @ p["wh"][0] + p["bh"][0])
        z = jax.nn.sigmoid(msg_agg @ p["wi"][1] + p["bi"][1]
                           + state @ p["wh"][1] + p["bh"][1])
        n = jnp.tanh(msg_agg @ p["wi"][2] + p["bi"][2]
                     + r * (state @ p["wh"][2] + p["bh"][2]))
        state = (1.0 - z) * n + z * state
    agg = jax.ops.segment_sum(state, tgt, num_segments=N)
    bb = jnp.concatenate([b, -b], axis=1)
    h1 = jax.nn.relu(agg @ p["ow1h"] + bb @ p["ow1b"] + p["ob1"])
    h2 = jax.nn.relu(h1 @ p["ow2"] + p["ob2"])
    logits = h2 @ p["ow3"] + p["ob3"]
    return jax.nn.log_softmax(logits, axis=1)


# ----------------------------------------------------------------------------
if __name__ == "__main__":
    HIDDEN_DIM = 32
    NUM_PROP = 3
    N = 8  # number of graph nodes (|V|)

    key = jax.random.PRNGKey(0)
    k_param, k_b, k_j = jax.random.split(key, 3)
    params = init_params(k_param, HIDDEN_DIM)

    # bidirectional ring graph: E = 2N directed edges (message nodes)
    src = np.concatenate([np.arange(N), (np.arange(N) + 1) % N]).astype(np.int32)
    tgt = np.concatenate([(np.arange(N) + 1) % N, np.arange(N)]).astype(np.int32)
    msg_node = jnp.asarray(np.stack([src, tgt], axis=0))          # (2, E)
    E = msg_node.shape[1]

    # message-edge pairs (line-graph edges): e1 -> e2 iff tgt(e1)==src(e2), src(e1)!=tgt(e2)
    pairs = [(e1, e2) for e1 in range(E) for e2 in range(E)
             if tgt[e1] == src[e2] and src[e1] != tgt[e2]]
    idx_msg_edge = jnp.asarray(np.array(pairs, dtype=np.int32).T)  # (2, M)

    b = jax.random.normal(k_b, (N, 1), jnp.float32)
    J_msg = jax.random.normal(k_j, (E, 1), jnp.float32)

    data = {"edge_attr": J_msg, "x": b, "edge_index": msg_node,
            "idx_msg_edge": idx_msg_edge, "y": jnp.zeros((N, 2), jnp.float32)}

    y = torch_gnn_msggnn_parallel_forward(params, data, HIDDEN_DIM, NUM_PROP)
    y = jax.block_until_ready(y)

    y_ref = reference_forward(params, data, HIDDEN_DIM, NUM_PROP)
    np.testing.assert_allclose(np.asarray(y), np.asarray(y_ref), rtol=2e-3, atol=2e-3)
    print("KERNEL_OK")
</pallas_src>

<mosaic_0001>
module attributes {stable_mosaic.version = 11 : i64} {
  func.func @_gnn_fused_kernel(%arg0: i32, %arg1: memref<16x16xbf16, #tpu.memory_space<vmem>>, %arg2: memref<16x16xbf16, #tpu.memory_space<vmem>>, %arg3: memref<16x16xbf16, #tpu.memory_space<vmem>>, %arg4: memref<8x16xbf16, #tpu.memory_space<vmem>>, %arg5: memref<16x16xf32, #tpu.memory_space<vmem>>, %arg6: memref<8x2xf32, #tpu.memory_space<vmem>>, %arg7: memref<80x64xf32, #tpu.memory_space<vmem>>, %arg8: memref<1x64xf32, #tpu.memory_space<vmem>>, %arg9: memref<64x64xf32, #tpu.memory_space<vmem>>, %arg10: memref<1x64xf32, #tpu.memory_space<vmem>>, %arg11: memref<64x32xf32, #tpu.memory_space<vmem>>, %arg12: memref<1x32xf32, #tpu.memory_space<vmem>>, %arg13: memref<3x32x32xf32, #tpu.memory_space<vmem>>, %arg14: memref<3x1x32xf32, #tpu.memory_space<vmem>>, %arg15: memref<3x32x32xf32, #tpu.memory_space<vmem>>, %arg16: memref<3x1x32xf32, #tpu.memory_space<vmem>>, %arg17: memref<32x64xf32, #tpu.memory_space<vmem>>, %arg18: memref<2x64xf32, #tpu.memory_space<vmem>>, %arg19: memref<1x64xf32, #tpu.memory_space<vmem>>, %arg20: memref<64x64xf32, #tpu.memory_space<vmem>>, %arg21: memref<1x64xf32, #tpu.memory_space<vmem>>, %arg22: memref<64x2xf32, #tpu.memory_space<vmem>>, %arg23: memref<1x2xf32, #tpu.memory_space<vmem>>, %arg24: memref<8x2xf32, #tpu.memory_space<vmem>>) attributes {dimension_semantics = [#tpu.dimension_semantics<arbitrary>], iteration_bounds = array<i64: 1>, scalar_prefetch = 0 : i64, scratch_operands = 0 : i64, tpu.core_type = #tpu.core_type<tc>, window_params = [{pipeline_mode = #tpu.pipeline_mode<synchronous>, transform_indices = @transform_0, window_bounds = array<i64: 16, 16>}, {pipeline_mode = #tpu.pipeline_mode<synchronous>, transform_indices = @transform_1, window_bounds = array<i64: 16, 16>}, {pipeline_mode = #tpu.pipeline_mode<synchronous>, transform_indices = @transform_2, window_bounds = array<i64: 16, 16>}, {pipeline_mode = #tpu.pipeline_mode<synchronous>, transform_indices = @transform_3, window_bounds = array<i64: 8, 16>}, {pipeline_mode = #tpu.pipeline_mode<synchronous>, transform_indices = @transform_4, window_bounds = array<i64: 16, 16>}, {pipeline_mode = #tpu.pipeline_mode<synchronous>, transform_indices = @transform_5, window_bounds = array<i64: 8, 2>}, {pipeline_mode = #tpu.pipeline_mode<synchronous>, transform_indices = @transform_6, window_bounds = array<i64: 80, 64>}, {pipeline_mode = #tpu.pipeline_mode<synchronous>, transform_indices = @transform_7, window_bounds = array<i64: 1, 64>}, {pipeline_mode = #tpu.pipeline_mode<synchronous>, transform_indices = @transform_8, window_bounds = array<i64: 64, 64>}, {pipeline_mode = #tpu.pipeline_mode<synchronous>, transform_indices = @transform_9, window_bounds = array<i64: 1, 64>}, {pipeline_mode = #tpu.pipeline_mode<synchronous>, transform_indices = @transform_10, window_bounds = array<i64: 64, 32>}, {pipeline_mode = #tpu.pipeline_mode<synchronous>, transform_indices = @transform_11, window_bounds = array<i64: 1, 32>}, {pipeline_mode = #tpu.pipeline_mode<synchronous>, transform_indices = @transform_12, window_bounds = array<i64: 3, 32, 32>}, {pipeline_mode = #tpu.pipeline_mode<synchronous>, transform_indices = @transform_13, window_bounds = array<i64: 3, 1, 32>}, {pipeline_mode = #tpu.pipeline_mode<synchronous>, transform_indices = @transform_14, window_bounds = array<i64: 3, 32, 32>}, {pipeline_mode = #tpu.pipeline_mode<synchronous>, transform_indices = @transform_15, window_bounds = array<i64: 3, 1, 32>}, {pipeline_mode = #tpu.pipeline_mode<synchronous>, transform_indices = @transform_16, window_bounds = array<i64: 32, 64>}, {pipeline_mode = #tpu.pipeline_mode<synchronous>, transform_indices = @transform_17, window_bounds = array<i64: 2, 64>}, {pipeline_mode = #tpu.pipeline_mode<synchronous>, transform_indices = @transform_18, window_bounds = array<i64: 1, 64>}, {pipeline_mode = #tpu.pipeline_mode<synchronous>, transform_indices = @transform_19, window_bounds = array<i64: 64, 64>}, {pipeline_mode = #tpu.pipeline_mode<synchronous>, transform_indices = @transform_20, window_bounds = array<i64: 1, 64>}, {pipeline_mode = #tpu.pipeline_mode<synchronous>, transform_indices = @transform_21, window_bounds = array<i64: 64, 2>}, {pipeline_mode = #tpu.pipeline_mode<synchronous>, transform_indices = @transform_22, window_bounds = array<i64: 1, 2>}, {pipeline_mode = #tpu.pipeline_mode<synchronous>, transform_indices = @transform_23, window_bounds = array<i64: 8, 2>}]} {
    %c0 = arith.constant 0 : index
    %c0_0 = arith.constant 0 : index
    %0 = vector.load %arg1[%c0, %c0_0] : memref<16x16xbf16, #tpu.memory_space<vmem>>, vector<16x16xbf16>
    %1 = arith.extf %0 : vector<16x16xbf16> to vector<16x16xf32>
    %c0_1 = arith.constant 0 : index
    %c0_2 = arith.constant 0 : index
    %2 = vector.load %arg2[%c0_1, %c0_2] : memref<16x16xbf16, #tpu.memory_space<vmem>>, vector<16x16xbf16>
    %3 = arith.extf %2 : vector<16x16xbf16> to vector<16x16xf32>
    %c0_3 = arith.constant 0 : index
    %c0_4 = arith.constant 0 : index
    %4 = vector.load %arg3[%c0_3, %c0_4] : memref<16x16xbf16, #tpu.memory_space<vmem>>, vector<16x16xbf16>
    %5 = arith.extf %4 : vector<16x16xbf16> to vector<16x16xf32>
    %c0_5 = arith.constant 0 : index
    %c0_6 = arith.constant 0 : index
    %6 = vector.load %arg4[%c0_5, %c0_6] : memref<8x16xbf16, #tpu.memory_space<vmem>>, vector<8x16xbf16>
    %7 = arith.extf %6 : vector<8x16xbf16> to vector<8x16xf32>
    %c0_7 = arith.constant 0 : index
    %c0_8 = arith.constant 0 : index
    %8 = vector.load %arg5[%c0_7, %c0_8] : memref<16x16xf32, #tpu.memory_space<vmem>>, vector<16x16xf32>
    %c0_9 = arith.constant 0 : index
    %c0_10 = arith.constant 0 : index
    %9 = vector.load %arg7[%c0_9, %c0_10] : memref<80x64xf32, #tpu.memory_space<vmem>>, vector<80x64xf32>
    %10 = vector.extract_strided_slice %9 {offsets = [0, 0], sizes = [32, 64], strides = [1, 1]} : vector<80x64xf32> to vector<32x64xf32>
    %11 = vector.extract_strided_slice %9 {offsets = [32, 0], sizes = [32, 64], strides = [1, 1]} : vector<80x64xf32> to vector<32x64xf32>
    %12 = vector.extract_strided_slice %9 {offsets = [64, 0], sizes = [16, 64], strides = [1, 1]} : vector<80x64xf32> to vector<16x64xf32>
    %c0_11 = arith.constant 0 : index
    %c0_12 = arith.constant 0 : index
    %13 = vector.load %arg8[%c0_11, %c0_12] : memref<1x64xf32, #tpu.memory_space<vmem>>, vector<1x64xf32>
    %c0_13 = arith.constant 0 : index
    %c0_14 = arith.constant 0 : index
    %14 = vector.load %arg9[%c0_13, %c0_14] : memref<64x64xf32, #tpu.memory_space<vmem>>, vector<64x64xf32>
    %c0_15 = arith.constant 0 : index
    %c0_16 = arith.constant 0 : index
    %15 = vector.load %arg10[%c0_15, %c0_16] : memref<1x64xf32, #tpu.memory_space<vmem>>, vector<1x64xf32>
    %c0_17 = arith.constant 0 : index
    %c0_18 = arith.constant 0 : index
    %16 = vector.load %arg11[%c0_17, %c0_18] : memref<64x32xf32, #tpu.memory_space<vmem>>, vector<64x32xf32>
    %c0_19 = arith.constant 0 : index
    %c0_20 = arith.constant 0 : index
    %17 = vector.load %arg12[%c0_19, %c0_20] : memref<1x32xf32, #tpu.memory_space<vmem>>, vector<1x32xf32>
    %c0_21 = arith.constant 0 : index
    %c0_22 = arith.constant 0 : index
    %c0_23 = arith.constant 0 : index
    %18 = vector.load %arg13[%c0_21, %c0_22, %c0_23] : memref<3x32x32xf32, #tpu.memory_space<vmem>>, vector<1x32x32xf32>
    %19 = vector.shape_cast %18 : vector<1x32x32xf32> to vector<32x32xf32>
    %c1 = arith.constant 1 : index
    %c0_24 = arith.constant 0 : index
    %c0_25 = arith.constant 0 : index
    %20 = vector.load %arg13[%c1, %c0_24, %c0_25] : memref<3x32x32xf32, #tpu.memory_space<vmem>>, vector<1x32x32xf32>
    %21 = vector.shape_cast %20 : vector<1x32x32xf32> to vector<32x32xf32>
    %c2 = arith.constant 2 : index
    %c0_26 = arith.constant 0 : index
    %c0_27 = arith.constant 0 : index
    %22 = vector.load %arg13[%c2, %c0_26, %c0_27] : memref<3x32x32xf32, #tpu.memory_space<vmem>>, vector<1x32x32xf32>
    %23 = vector.shape_cast %22 : vector<1x32x32xf32> to vector<32x32xf32>
    %c0_28 = arith.constant 0 : index
    %c0_29 = arith.constant 0 : index
    %c0_30 = arith.constant 0 : index
    %24 = vector.load %arg15[%c0_28, %c0_29, %c0_30] : memref<3x32x32xf32, #tpu.memory_space<vmem>>, vector<1x32x32xf32>
    %25 = vector.shape_cast %24 : vector<1x32x32xf32> to vector<32x32xf32>
    %c1_31 = arith.constant 1 : index
    %c0_32 = arith.constant 0 : index
    %c0_33 = arith.constant 0 : index
    %26 = vector.load %arg15[%c1_31, %c0_32, %c0_33] : memref<3x32x32xf32, #tpu.memory_space<vmem>>, vector<1x32x32xf32>
    %27 = vector.shape_cast %26 : vector<1x32x32xf32> to vector<32x32xf32>
    %c2_34 = arith.constant 2 : index
    %c0_35 = arith.constant 0 : index
    %c0_36 = arith.constant 0 : index
    %28 = vector.load %arg15[%c2_34, %c0_35, %c0_36] : memref<3x32x32xf32, #tpu.memory_space<vmem>>, vector<1x32x32xf32>
    %29 = vector.shape_cast %28 : vector<1x32x32xf32> to vector<32x32xf32>
    %c0_37 = arith.constant 0 : index
    %c0_38 = arith.constant 0 : index
    %c0_39 = arith.constant 0 : index
    %30 = vector.load %arg14[%c0_37, %c0_38, %c0_39] : memref<3x1x32xf32, #tpu.memory_space<vmem>>, vector<1x1x32xf32>
    %31 = vector.shape_cast %30 : vector<1x1x32xf32> to vector<1x32xf32>
    %c1_40 = arith.constant 1 : index
    %c0_41 = arith.constant 0 : index
    %c0_42 = arith.constant 0 : index
    %32 = vector.load %arg14[%c1_40, %c0_41, %c0_42] : memref<3x1x32xf32, #tpu.memory_space<vmem>>, vector<1x1x32xf32>
    %33 = vector.shape_cast %32 : vector<1x1x32xf32> to vector<1x32xf32>
    %c2_43 = arith.constant 2 : index
    %c0_44 = arith.constant 0 : index
    %c0_45 = arith.constant 0 : index
    %34 = vector.load %arg14[%c2_43, %c0_44, %c0_45] : memref<3x1x32xf32, #tpu.memory_space<vmem>>, vector<1x1x32xf32>
    %35 = vector.shape_cast %34 : vector<1x1x32xf32> to vector<1x32xf32>
    %c0_46 = arith.constant 0 : index
    %c0_47 = arith.constant 0 : index
    %c0_48 = arith.constant 0 : index
    %36 = vector.load %arg16[%c0_46, %c0_47, %c0_48] : memref<3x1x32xf32, #tpu.memory_space<vmem>>, vector<1x1x32xf32>
    %37 = vector.shape_cast %36 : vector<1x1x32xf32> to vector<1x32xf32>
    %c1_49 = arith.constant 1 : index
    %c0_50 = arith.constant 0 : index
    %c0_51 = arith.constant 0 : index
    %38 = vector.load %arg16[%c1_49, %c0_50, %c0_51] : memref<3x1x32xf32, #tpu.memory_space<vmem>>, vector<1x1x32xf32>
    %39 = vector.shape_cast %38 : vector<1x1x32xf32> to vector<1x32xf32>
    %c2_52 = arith.constant 2 : index
    %c0_53 = arith.constant 0 : index
    %c0_54 = arith.constant 0 : index
    %40 = vector.load %arg16[%c2_52, %c0_53, %c0_54] : memref<3x1x32xf32, #tpu.memory_space<vmem>>, vector<1x1x32xf32>
    %41 = vector.shape_cast %40 : vector<1x1x32xf32> to vector<1x32xf32>
    %cst = arith.constant 0.000000e+00 : f32
    %42 = vector.broadcast %cst : f32 to vector<16x32xf32>
    %cst_55 = arith.constant dense<0.000000e+00> : vector<16x32xf32>
    %43 = tpu.matmul %1, %42, %cst_55 {dimension_numbers = #tpu.dot_dimension_numbers<[1], [0], [0], [1], [0, 0, 1, 1], [], []>} : vector<16x16xf32>, vector<16x32xf32>, vector<16x32xf32> -> vector<16x32xf32>
    %cst_56 = arith.constant dense<0.000000e+00> : vector<16x32xf32>
    %44 = tpu.matmul %3, %42, %cst_56 {dimension_numbers = #tpu.dot_dimension_numbers<[1], [0], [0], [1], [0, 0, 1, 1], [], []>} : vector<16x16xf32>, vector<16x32xf32>, vector<16x32xf32> -> vector<16x32xf32>
    %cst_57 = arith.constant dense<0.000000e+00> : vector<16x64xf32>
    %45 = tpu.matmul %43, %10, %cst_57 {dimension_numbers = #tpu.dot_dimension_numbers<[1], [0], [0], [1], [0, 0, 1, 1], [], []>} : vector<16x32xf32>, vector<32x64xf32>, vector<16x64xf32> -> vector<16x64xf32>
    %cst_58 = arith.constant dense<0.000000e+00> : vector<16x64xf32>
    %46 = tpu.matmul %44, %11, %cst_58 {dimension_numbers = #tpu.dot_dimension_numbers<[1], [0], [0], [1], [0, 0, 1, 1], [], []>} : vector<16x32xf32>, vector<32x64xf32>, vector<16x64xf32> -> vector<16x64xf32>
    %47 = arith.addf %45, %46 : vector<16x64xf32>
    %cst_59 = arith.constant dense<0.000000e+00> : vector<16x64xf32>
    %48 = tpu.matmul %8, %12, %cst_59 {dimension_numbers = #tpu.dot_dimension_numbers<[1], [0], [0], [1], [0, 0, 1, 1], [], []>} : vector<16x16xf32>, vector<16x64xf32>, vector<16x64xf32> -> vector<16x64xf32>
    %49 = arith.addf %47, %48 : vector<16x64xf32>
    %50 = vector.broadcast %13 : vector<1x64xf32> to vector<16x64xf32>
    %51 = arith.addf %49, %50 : vector<16x64xf32>
    %cst_60 = arith.constant 0.000000e+00 : f32
    %52 = vector.broadcast %cst_60 : f32 to vector<16x64xf32>
    %53 = arith.maximumf %51, %52 : vector<16x64xf32>
    %cst_61 = arith.constant dense<0.000000e+00> : vector<16x64xf32>
    %54 = tpu.matmul %53, %14, %cst_61 {dimension_numbers = #tpu.dot_dimension_numbers<[1], [0], [0], [1], [0, 0, 1, 1], [], []>} : vector<16x64xf32>, vector<64x64xf32>, vector<16x64xf32> -> vector<16x64xf32>
    %55 = vector.broadcast %15 : vector<1x64xf32> to vector<16x64xf32>
    %56 = arith.addf %54, %55 : vector<16x64xf32>
    %cst_62 = arith.constant 0.000000e+00 : f32
    %57 = vector.broadcast %cst_62 : f32 to vector<16x64xf32>
    %58 = arith.maximumf %56, %57 : vector<16x64xf32>
    %cst_63 = arith.constant dense<0.000000e+00> : vector<16x32xf32>
    %59 = tpu.matmul %58, %16, %cst_63 {dimension_numbers = #tpu.dot_dimension_numbers<[1], [0], [0], [1], [0, 0, 1, 1], [], []>} : vector<16x64xf32>, vector<64x32xf32>, vector<16x32xf32> -> vector<16x32xf32>
    %60 = vector.broadcast %17 : vector<1x32xf32> to vector<16x32xf32>
    %61 = arith.addf %59, %60 : vector<16x32xf32>
    %cst_64 = arith.constant dense<0.000000e+00> : vector<16x32xf32>
    %62 = tpu.matmul %5, %61, %cst_64 {dimension_numbers = #tpu.dot_dimension_numbers<[1], [0], [0], [1], [0, 0, 1, 1], [], []>} : vector<16x16xf32>, vector<16x32xf32>, vector<16x32xf32> -> vector<16x32xf32>
    %cst_65 = arith.constant dense<0.000000e+00> : vector<16x32xf32>
    %63 = tpu.matmul %62, %19, %cst_65 {dimension_numbers = #tpu.dot_dimension_numbers<[1], [0], [0], [1], [0, 0, 1, 1], [], []>} : vector<16x32xf32>, vector<32x32xf32>, vector<16x32xf32> -> vector<16x32xf32>
    %64 = vector.broadcast %31 : vector<1x32xf32> to vector<16x32xf32>
    %65 = arith.addf %63, %64 : vector<16x32xf32>
    %cst_66 = arith.constant dense<0.000000e+00> : vector<16x32xf32>
    %66 = tpu.matmul %42, %25, %cst_66 {dimension_numbers = #tpu.dot_dimension_numbers<[1], [0], [0], [1], [0, 0, 1, 1], [], []>} : vector<16x32xf32>, vector<32x32xf32>, vector<16x32xf32> -> vector<16x32xf32>
    %67 = arith.addf %65, %66 : vector<16x32xf32>
    %68 = vector.broadcast %37 : vector<1x32xf32> to vector<16x32xf32>
    %69 = arith.addf %67, %68 : vector<16x32xf32>
    %70 = arith.negf %69 : vector<16x32xf32>
    %71 = math.exp %70 : vector<16x32xf32>
    %cst_67 = arith.constant 1.000000e+00 : f32
    %72 = vector.broadcast %cst_67 : f32 to vector<16x32xf32>
    %73 = arith.addf %72, %71 : vector<16x32xf32>
    %74 = arith.divf %72, %73 : vector<16x32xf32>
    %cst_68 = arith.constant dense<0.000000e+00> : vector<16x32xf32>
    %75 = tpu.matmul %62, %21, %cst_68 {dimension_numbers = #tpu.dot_dimension_numbers<[1], [0], [0], [1], [0, 0, 1, 1], [], []>} : vector<16x32xf32>, vector<32x32xf32>, vector<16x32xf32> -> vector<16x32xf32>
    %76 = vector.broadcast %33 : vector<1x32xf32> to vector<16x32xf32>
    %77 = arith.addf %75, %76 : vector<16x32xf32>
    %cst_69 = arith.constant dense<0.000000e+00> : vector<16x32xf32>
    %78 = tpu.matmul %42, %27, %cst_69 {dimension_numbers = #tpu.dot_dimension_numbers<[1], [0], [0], [1], [0, 0, 1, 1], [], []>} : vector<16x32xf32>, vector<32x32xf32>, vector<16x32xf32> -> vector<16x32xf32>
    %79 = arith.addf %77, %78 : vector<16x32xf32>
    %80 = vector.broadcast %39 : vector<1x32xf32> to vector<16x32xf32>
    %81 = arith.addf %79, %80 : vector<16x32xf32>
    %82 = arith.negf %81 : vector<16x32xf32>
    %83 = math.exp %82 : vector<16x32xf32>
    %cst_70 = arith.constant 1.000000e+00 : f32
    %84 = vector.broadcast %cst_70 : f32 to vector<16x32xf32>
    %85 = arith.addf %84, %83 : vector<16x32xf32>
    %86 = arith.divf %84, %85 : vector<16x32xf32>
    %cst_71 = arith.constant dense<0.000000e+00> : vector<16x32xf32>
    %87 = tpu.matmul %62, %23, %cst_71 {dimension_numbers = #tpu.dot_dimension_numbers<[1], [0], [0], [1], [0, 0, 1, 1], [], []>} : vector<16x32xf32>, vector<32x32xf32>, vector<16x32xf32> -> vector<16x32xf32>
    %88 = vector.broadcast %35 : vector<1x32xf32> to vector<16x32xf32>
    %89 = arith.addf %87, %88 : vector<16x32xf32>
    %cst_72 = arith.constant dense<0.000000e+00> : vector<16x32xf32>
    %90 = tpu.matmul %42, %29, %cst_72 {dimension_numbers = #tpu.dot_dimension_numbers<[1], [0], [0], [1], [0, 0, 1, 1], [], []>} : vector<16x32xf32>, vector<32x32xf32>, vector<16x32xf32> -> vector<16x32xf32>
    %91 = vector.broadcast %41 : vector<1x32xf32> to vector<16x32xf32>
    %92 = arith.addf %90, %91 : vector<16x32xf32>
    %93 = arith.mulf %74, %92 : vector<16x32xf32>
    %94 = arith.addf %89, %93 : vector<16x32xf32>
    %95 = math.tanh %94 : vector<16x32xf32>
    %cst_73 = arith.constant 1.000000e+00 : f32
    %96 = vector.broadcast %cst_73 : f32 to vector<16x32xf32>
    %97 = arith.subf %96, %86 : vector<16x32xf32>
    %98 = arith.mulf %97, %95 : vector<16x32xf32>
    %99 = arith.mulf %86, %42 : vector<16x32xf32>
    %100 = arith.addf %98, %99 : vector<16x32xf32>
    %cst_74 = arith.constant dense<0.000000e+00> : vector<16x32xf32>
    %101 = tpu.matmul %1, %100, %cst_74 {dimension_numbers = #tpu.dot_dimension_numbers<[1], [0], [0], [1], [0, 0, 1, 1], [], []>} : vector<16x16xf32>, vector<16x32xf32>, vector<16x32xf32> -> vector<16x32xf32>
    %cst_75 = arith.constant dense<0.000000e+00> : vector<16x32xf32>
    %102 = tpu.matmul %3, %100, %cst_75 {dimension_numbers = #tpu.dot_dimension_numbers<[1], [0], [0], [1], [0, 0, 1, 1], [], []>} : vector<16x16xf32>, vector<16x32xf32>, vector<16x32xf32> -> vector<16x32xf32>
    %cst_76 = arith.constant dense<0.000000e+00> : vector<16x64xf32>
    %103 = tpu.matmul %101, %10, %cst_76 {dimension_numbers = #tpu.dot_dimension_numbers<[1], [0], [0], [1], [0, 0, 1, 1], [], []>} : vector<16x32xf32>, vector<32x64xf32>, vector<16x64xf32> -> vector<16x64xf32>
    %cst_77 = arith.constant dense<0.000000e+00> : vector<16x64xf32>
    %104 = tpu.matmul %102, %11, %cst_77 {dimension_numbers = #tpu.dot_dimension_numbers<[1], [0], [0], [1], [0, 0, 1, 1], [], []>} : vector<16x32xf32>, vector<32x64xf32>, vector<16x64xf32> -> vector<16x64xf32>
    %105 = arith.addf %103, %104 : vector<16x64xf32>
    %cst_78 = arith.constant dense<0.000000e+00> : vector<16x64xf32>
    %106 = tpu.matmul %8, %12, %cst_78 {dimension_numbers = #tpu.dot_dimension_numbers<[1], [0], [0], [1], [0, 0, 1, 1], [], []>} : vector<16x16xf32>, vector<16x64xf32>, vector<16x64xf32> -> vector<16x64xf32>
    %107 = arith.addf %105, %106 : vector<16x64xf32>
    %108 = vector.broadcast %13 : vector<1x64xf32> to vector<16x64xf32>
    %109 = arith.addf %107, %108 : vector<16x64xf32>
    %cst_79 = arith.constant 0.000000e+00 : f32
    %110 = vector.broadcast %cst_79 : f32 to vector<16x64xf32>
    %111 = arith.maximumf %109, %110 : vector<16x64xf32>
    %cst_80 = arith.constant dense<0.000000e+00> : vector<16x64xf32>
    %112 = tpu.matmul %111, %14, %cst_80 {dimension_numbers = #tpu.dot_dimension_numbers<[1], [0], [0], [1], [0, 0, 1, 1], [], []>} : vector<16x64xf32>, vector<64x64xf32>, vector<16x64xf32> -> vector<16x64xf32>
    %113 = vector.broadcast %15 : vector<1x64xf32> to vector<16x64xf32>
    %114 = arith.addf %112, %113 : vector<16x64xf32>
    %cst_81 = arith.constant 0.000000e+00 : f32
    %115 = vector.broadcast %cst_81 : f32 to vector<16x64xf32>
    %116 = arith.maximumf %114, %115 : vector<16x64xf32>
    %cst_82 = arith.constant dense<0.000000e+00> : vector<16x32xf32>
    %117 = tpu.matmul %116, %16, %cst_82 {dimension_numbers = #tpu.dot_dimension_numbers<[1], [0], [0], [1], [0, 0, 1, 1], [], []>} : vector<16x64xf32>, vector<64x32xf32>, vector<16x32xf32> -> vector<16x32xf32>
    %118 = vector.broadcast %17 : vector<1x32xf32> to vector<16x32xf32>
    %119 = arith.addf %117, %118 : vector<16x32xf32>
    %cst_83 = arith.constant dense<0.000000e+00> : vector<16x32xf32>
    %120 = tpu.matmul %5, %119, %cst_83 {dimension_numbers = #tpu.dot_dimension_numbers<[1], [0], [0], [1], [0, 0, 1, 1], [], []>} : vector<16x16xf32>, vector<16x32xf32>, vector<16x32xf32> -> vector<16x32xf32>
    %cst_84 = arith.constant dense<0.000000e+00> : vector<16x32xf32>
    %121 = tpu.matmul %120, %19, %cst_84 {dimension_numbers = #tpu.dot_dimension_numbers<[1], [0], [0], [1], [0, 0, 1, 1], [], []>} : vector<16x32xf32>, vector<32x32xf32>, vector<16x32xf32> -> vector<16x32xf32>
    %122 = vector.broadcast %31 : vector<1x32xf32> to vector<16x32xf32>
    %123 = arith.addf %121, %122 : vector<16x32xf32>
    %cst_85 = arith.constant dense<0.000000e+00> : vector<16x32xf32>
    %124 = tpu.matmul %100, %25, %cst_85 {dimension_numbers = #tpu.dot_dimension_numbers<[1], [0], [0], [1], [0, 0, 1, 1], [], []>} : vector<16x32xf32>, vector<32x32xf32>, vector<16x32xf32> -> vector<16x32xf32>
    %125 = arith.addf %123, %124 : vector<16x32xf32>
    %126 = vector.broadcast %37 : vector<1x32xf32> to vector<16x32xf32>
    %127 = arith.addf %125, %126 : vector<16x32xf32>
    %128 = arith.negf %127 : vector<16x32xf32>
    %129 = math.exp %128 : vector<16x32xf32>
    %cst_86 = arith.constant 1.000000e+00 : f32
    %130 = vector.broadcast %cst_86 : f32 to vector<16x32xf32>
    %131 = arith.addf %130, %129 : vector<16x32xf32>
    %132 = arith.divf %130, %131 : vector<16x32xf32>
    %cst_87 = arith.constant dense<0.000000e+00> : vector<16x32xf32>
    %133 = tpu.matmul %120, %21, %cst_87 {dimension_numbers = #tpu.dot_dimension_numbers<[1], [0], [0], [1], [0, 0, 1, 1], [], []>} : vector<16x32xf32>, vector<32x32xf32>, vector<16x32xf32> -> vector<16x32xf32>
    %134 = vector.broadcast %33 : vector<1x32xf32> to vector<16x32xf32>
    %135 = arith.addf %133, %134 : vector<16x32xf32>
    %cst_88 = arith.constant dense<0.000000e+00> : vector<16x32xf32>
    %136 = tpu.matmul %100, %27, %cst_88 {dimension_numbers = #tpu.dot_dimension_numbers<[1], [0], [0], [1], [0, 0, 1, 1], [], []>} : vector<16x32xf32>, vector<32x32xf32>, vector<16x32xf32> -> vector<16x32xf32>
    %137 = arith.addf %135, %136 : vector<16x32xf32>
    %138 = vector.broadcast %39 : vector<1x32xf32> to vector<16x32xf32>
    %139 = arith.addf %137, %138 : vector<16x32xf32>
    %140 = arith.negf %139 : vector<16x32xf32>
    %141 = math.exp %140 : vector<16x32xf32>
    %cst_89 = arith.constant 1.000000e+00 : f32
    %142 = vector.broadcast %cst_89 : f32 to vector<16x32xf32>
    %143 = arith.addf %142, %141 : vector<16x32xf32>
    %144 = arith.divf %142, %143 : vector<16x32xf32>
    %cst_90 = arith.constant dense<0.000000e+00> : vector<16x32xf32>
    %145 = tpu.matmul %120, %23, %cst_90 {dimension_numbers = #tpu.dot_dimension_numbers<[1], [0], [0], [1], [0, 0, 1, 1], [], []>} : vector<16x32xf32>, vector<32x32xf32>, vector<16x32xf32> -> vector<16x32xf32>
    %146 = vector.broadcast %35 : vector<1x32xf32> to vector<16x32xf32>
    %147 = arith.addf %145, %146 : vector<16x32xf32>
    %cst_91 = arith.constant dense<0.000000e+00> : vector<16x32xf32>
    %148 = tpu.matmul %100, %29, %cst_91 {dimension_numbers = #tpu.dot_dimension_numbers<[1], [0], [0], [1], [0, 0, 1, 1], [], []>} : vector<16x32xf32>, vector<32x32xf32>, vector<16x32xf32> -> vector<16x32xf32>
    %149 = vector.broadcast %41 : vector<1x32xf32> to vector<16x32xf32>
    %150 = arith.addf %148, %149 : vector<16x32xf32>
    %151 = arith.mulf %132, %150 : vector<16x32xf32>
    %152 = arith.addf %147, %151 : vector<16x32xf32>
    %153 = math.tanh %152 : vector<16x32xf32>
    %cst_92 = arith.constant 1.000000e+00 : f32
    %154 = vector.broadcast %cst_92 : f32 to vector<16x32xf32>
    %155 = arith.subf %154, %144 : vector<16x32xf32>
    %156 = arith.mulf %155, %153 : vector<16x32xf32>
    %157 = arith.mulf %144, %100 : vector<16x32xf32>
    %158 = arith.addf %156, %157 : vector<16x32xf32>
    %cst_93 = arith.constant dense<0.000000e+00> : vector<16x32xf32>
    %159 = tpu.matmul %1, %158, %cst_93 {dimension_numbers = #tpu.dot_dimension_numbers<[1], [0], [0], [1], [0, 0, 1, 1], [], []>} : vector<16x16xf32>, vector<16x32xf32>, vector<16x32xf32> -> vector<16x32xf32>
    %cst_94 = arith.constant dense<0.000000e+00> : vector<16x32xf32>
    %160 = tpu.matmul %3, %158, %cst_94 {dimension_numbers = #tpu.dot_dimension_numbers<[1], [0], [0], [1], [0, 0, 1, 1], [], []>} : vector<16x16xf32>, vector<16x32xf32>, vector<16x32xf32> -> vector<16x32xf32>
    %cst_95 = arith.constant dense<0.000000e+00> : vector<16x64xf32>
    %161 = tpu.matmul %159, %10, %cst_95 {dimension_numbers = #tpu.dot_dimension_numbers<[1], [0], [0], [1], [0, 0, 1, 1], [], []>} : vector<16x32xf32>, vector<32x64xf32>, vector<16x64xf32> -> vector<16x64xf32>
    %cst_96 = arith.constant dense<0.000000e+00> : vector<16x64xf32>
    %162 = tpu.matmul %160, %11, %cst_96 {dimension_numbers = #tpu.dot_dimension_numbers<[1], [0], [0], [1], [0, 0, 1, 1], [], []>} : vector<16x32xf32>, vector<32x64xf32>, vector<16x64xf32> -> vector<16x64xf32>
    %163 = arith.addf %161, %162 : vector<16x64xf32>
    %cst_97 = arith.constant dense<0.000000e+00> : vector<16x64xf32>
    %164 = tpu.matmul %8, %12, %cst_97 {dimension_numbers = #tpu.dot_dimension_numbers<[1], [0], [0], [1], [0, 0, 1, 1], [], []>} : vector<16x16xf32>, vector<16x64xf32>, vector<16x64xf32> -> vector<16x64xf32>
    %165 = arith.addf %163, %164 : vector<16x64xf32>
    %166 = vector.broadcast %13 : vector<1x64xf32> to vector<16x64xf32>
    %167 = arith.addf %165, %166 : vector<16x64xf32>
    %cst_98 = arith.constant 0.000000e+00 : f32
    %168 = vector.broadcast %cst_98 : f32 to vector<16x64xf32>
    %169 = arith.maximumf %167, %168 : vector<16x64xf32>
    %cst_99 = arith.constant dense<0.000000e+00> : vector<16x64xf32>
    %170 = tpu.matmul %169, %14, %cst_99 {dimension_numbers = #tpu.dot_dimension_numbers<[1], [0], [0], [1], [0, 0, 1, 1], [], []>} : vector<16x64xf32>, vector<64x64xf32>, vector<16x64xf32> -> vector<16x64xf32>
    %171 = vector.broadcast %15 : vector<1x64xf32> to vector<16x64xf32>
    %172 = arith.addf %170, %171 : vector<16x64xf32>
    %cst_100 = arith.constant 0.000000e+00 : f32
    %173 = vector.broadcast %cst_100 : f32 to vector<16x64xf32>
    %174 = arith.maximumf %172, %173 : vector<16x64xf32>
    %cst_101 = arith.constant dense<0.000000e+00> : vector<16x32xf32>
    %175 = tpu.matmul %174, %16, %cst_101 {dimension_numbers = #tpu.dot_dimension_numbers<[1], [0], [0], [1], [0, 0, 1, 1], [], []>} : vector<16x64xf32>, vector<64x32xf32>, vector<16x32xf32> -> vector<16x32xf32>
    %176 = vector.broadcast %17 : vector<1x32xf32> to vector<16x32xf32>
    %177 = arith.addf %175, %176 : vector<16x32xf32>
    %cst_102 = arith.constant dense<0.000000e+00> : vector<16x32xf32>
    %178 = tpu.matmul %5, %177, %cst_102 {dimension_numbers = #tpu.dot_dimension_numbers<[1], [0], [0], [1], [0, 0, 1, 1], [], []>} : vector<16x16xf32>, vector<16x32xf32>, vector<16x32xf32> -> vector<16x32xf32>
    %cst_103 = arith.constant dense<0.000000e+00> : vector<16x32xf32>
    %179 = tpu.matmul %178, %19, %cst_103 {dimension_numbers = #tpu.dot_dimension_numbers<[1], [0], [0], [1], [0, 0, 1, 1], [], []>} : vector<16x32xf32>, vector<32x32xf32>, vector<16x32xf32> -> vector<16x32xf32>
    %180 = vector.broadcast %31 : vector<1x32xf32> to vector<16x32xf32>
    %181 = arith.addf %179, %180 : vector<16x32xf32>
    %cst_104 = arith.constant dense<0.000000e+00> : vector<16x32xf32>
    %182 = tpu.matmul %158, %25, %cst_104 {dimension_numbers = #tpu.dot_dimension_numbers<[1], [0], [0], [1], [0, 0, 1, 1], [], []>} : vector<16x32xf32>, vector<32x32xf32>, vector<16x32xf32> -> vector<16x32xf32>
    %183 = arith.addf %181, %182 : vector<16x32xf32>
    %184 = vector.broadcast %37 : vector<1x32xf32> to vector<16x32xf32>
    %185 = arith.addf %183, %184 : vector<16x32xf32>
    %186 = arith.negf %185 : vector<16x32xf32>
    %187 = math.exp %186 : vector<16x32xf32>
    %cst_105 = arith.constant 1.000000e+00 : f32
    %188 = vector.broadcast %cst_105 : f32 to vector<16x32xf32>
    %189 = arith.addf %188, %187 : vector<16x32xf32>
    %190 = arith.divf %188, %189 : vector<16x32xf32>
    %cst_106 = arith.constant dense<0.000000e+00> : vector<16x32xf32>
    %191 = tpu.matmul %178, %21, %cst_106 {dimension_numbers = #tpu.dot_dimension_numbers<[1], [0], [0], [1], [0, 0, 1, 1], [], []>} : vector<16x32xf32>, vector<32x32xf32>, vector<16x32xf32> -> vector<16x32xf32>
    %192 = vector.broadcast %33 : vector<1x32xf32> to vector<16x32xf32>
    %193 = arith.addf %191, %192 : vector<16x32xf32>
    %cst_107 = arith.constant dense<0.000000e+00> : vector<16x32xf32>
    %194 = tpu.matmul %158, %27, %cst_107 {dimension_numbers = #tpu.dot_dimension_numbers<[1], [0], [0], [1], [0, 0, 1, 1], [], []>} : vector<16x32xf32>, vector<32x32xf32>, vector<16x32xf32> -> vector<16x32xf32>
    %195 = arith.addf %193, %194 : vector<16x32xf32>
    %196 = vector.broadcast %39 : vector<1x32xf32> to vector<16x32xf32>
    %197 = arith.addf %195, %196 : vector<16x32xf32>
    %198 = arith.negf %197 : vector<16x32xf32>
    %199 = math.exp %198 : vector<16x32xf32>
    %cst_108 = arith.constant 1.000000e+00 : f32
    %200 = vector.broadcast %cst_108 : f32 to vector<16x32xf32>
    %201 = arith.addf %200, %199 : vector<16x32xf32>
    %202 = arith.divf %200, %201 : vector<16x32xf32>
    %cst_109 = arith.constant dense<0.000000e+00> : vector<16x32xf32>
    %203 = tpu.matmul %178, %23, %cst_109 {dimension_numbers = #tpu.dot_dimension_numbers<[1], [0], [0], [1], [0, 0, 1, 1], [], []>} : vector<16x32xf32>, vector<32x32xf32>, vector<16x32xf32> -> vector<16x32xf32>
    %204 = vector.broadcast %35 : vector<1x32xf32> to vector<16x32xf32>
    %205 = arith.addf %203, %204 : vector<16x32xf32>
    %cst_110 = arith.constant dense<0.000000e+00> : vector<16x32xf32>
    %206 = tpu.matmul %158, %29, %cst_110 {dimension_numbers = #tpu.dot_dimension_numbers<[1], [0], [0], [1], [0, 0, 1, 1], [], []>} : vector<16x32xf32>, vector<32x32xf32>, vector<16x32xf32> -> vector<16x32xf32>
    %207 = vector.broadcast %41 : vector<1x32xf32> to vector<16x32xf32>
    %208 = arith.addf %206, %207 : vector<16x32xf32>
    %209 = arith.mulf %190, %208 : vector<16x32xf32>
    %210 = arith.addf %205, %209 : vector<16x32xf32>
    %211 = math.tanh %210 : vector<16x32xf32>
    %cst_111 = arith.constant 1.000000e+00 : f32
    %212 = vector.broadcast %cst_111 : f32 to vector<16x32xf32>
    %213 = arith.subf %212, %202 : vector<16x32xf32>
    %214 = arith.mulf %213, %211 : vector<16x32xf32>
    %215 = arith.mulf %202, %158 : vector<16x32xf32>
    %216 = arith.addf %214, %215 : vector<16x32xf32>
    %cst_112 = arith.constant dense<0.000000e+00> : vector<8x32xf32>
    %217 = tpu.matmul %7, %216, %cst_112 {dimension_numbers = #tpu.dot_dimension_numbers<[1], [0], [0], [1], [0, 0, 1, 1], [], []>} : vector<8x16xf32>, vector<16x32xf32>, vector<8x32xf32> -> vector<8x32xf32>
    %c0_113 = arith.constant 0 : index
    %c0_114 = arith.constant 0 : index
    %218 = vector.load %arg17[%c0_113, %c0_114] : memref<32x64xf32, #tpu.memory_space<vmem>>, vector<32x64xf32>
    %cst_115 = arith.constant dense<0.000000e+00> : vector<8x64xf32>
    %219 = tpu.matmul %217, %218, %cst_115 {dimension_numbers = #tpu.dot_dimension_numbers<[1], [0], [0], [1], [0, 0, 1, 1], [], []>} : vector<8x32xf32>, vector<32x64xf32>, vector<8x64xf32> -> vector<8x64xf32>
    %c0_116 = arith.constant 0 : index
    %c0_117 = arith.constant 0 : index
    %220 = vector.load %arg6[%c0_116, %c0_117] : memref<8x2xf32, #tpu.memory_space<vmem>>, vector<8x2xf32>
    %c0_118 = arith.constant 0 : index
    %c0_119 = arith.constant 0 : index
    %221 = vector.load %arg18[%c0_118, %c0_119] : memref<2x64xf32, #tpu.memory_space<vmem>>, vector<2x64xf32>
    %cst_120 = arith.constant dense<0.000000e+00> : vector<8x64xf32>
    %222 = tpu.matmul %220, %221, %cst_120 {dimension_numbers = #tpu.dot_dimension_numbers<[1], [0], [0], [1], [0, 0, 1, 1], [], []>} : vector<8x2xf32>, vector<2x64xf32>, vector<8x64xf32> -> vector<8x64xf32>
    %223 = arith.addf %219, %222 : vector<8x64xf32>
    %c0_121 = arith.constant 0 : index
    %c0_122 = arith.constant 0 : index
    %224 = vector.load %arg19[%c0_121, %c0_122] : memref<1x64xf32, #tpu.memory_space<vmem>>, vector<1x64xf32>
    %225 = vector.broadcast %224 : vector<1x64xf32> to vector<8x64xf32>
    %226 = arith.addf %223, %225 : vector<8x64xf32>
    %cst_123 = arith.constant 0.000000e+00 : f32
    %227 = vector.broadcast %cst_123 : f32 to vector<8x64xf32>
    %228 = arith.maximumf %226, %227 : vector<8x64xf32>
    %c0_124 = arith.constant 0 : index
    %c0_125 = arith.constant 0 : index
    %229 = vector.load %arg20[%c0_124, %c0_125] : memref<64x64xf32, #tpu.memory_space<vmem>>, vector<64x64xf32>
    %cst_126 = arith.constant dense<0.000000e+00> : vector<8x64xf32>
    %230 = tpu.matmul %228, %229, %cst_126 {dimension_numbers = #tpu.dot_dimension_numbers<[1], [0], [0], [1], [0, 0, 1, 1], [], []>} : vector<8x64xf32>, vector<64x64xf32>, vector<8x64xf32> -> vector<8x64xf32>
    %c0_127 = arith.constant 0 : index
    %c0_128 = arith.constant 0 : index
    %231 = vector.load %arg21[%c0_127, %c0_128] : memref<1x64xf32, #tpu.memory_space<vmem>>, vector<1x64xf32>
    %232 = vector.broadcast %231 : vector<1x64xf32> to vector<8x64xf32>
    %233 = arith.addf %230, %232 : vector<8x64xf32>
    %cst_129 = arith.constant 0.000000e+00 : f32
    %234 = vector.broadcast %cst_129 : f32 to vector<8x64xf32>
    %235 = arith.maximumf %233, %234 : vector<8x64xf32>
    %c0_130 = arith.constant 0 : index
    %c0_131 = arith.constant 0 : index
    %236 = vector.load %arg22[%c0_130, %c0_131] : memref<64x2xf32, #tpu.memory_space<vmem>>, vector<64x2xf32>
    %cst_132 = arith.constant dense<0.000000e+00> : vector<8x2xf32>
    %237 = tpu.matmul %235, %236, %cst_132 {dimension_numbers = #tpu.dot_dimension_numbers<[1], [0], [0], [1], [0, 0, 1, 1], [], []>} : vector<8x64xf32>, vector<64x2xf32>, vector<8x2xf32> -> vector<8x2xf32>
    %c0_133 = arith.constant 0 : index
    %c0_134 = arith.constant 0 : index
    %238 = vector.load %arg23[%c0_133, %c0_134] : memref<1x2xf32, #tpu.memory_space<vmem>>, vector<1x2xf32>
    %239 = vector.broadcast %238 : vector<1x2xf32> to vector<8x2xf32>
    %240 = arith.addf %237, %239 : vector<8x2xf32>
    %cst_135 = arith.constant dense<0xFF800000> : vector<8xf32>
    %241 = vector.multi_reduction <maximumf>, %240, %cst_135 [1] : vector<8x2xf32> to vector<8xf32>
    %242 = vector.shape_cast %241 : vector<8xf32> to vector<8x1xf32>
    %243 = vector.broadcast %242 : vector<8x1xf32> to vector<8x2xf32>
    %244 = arith.subf %240, %243 : vector<8x2xf32>
    %245 = math.exp %244 : vector<8x2xf32>
    %cst_136 = arith.constant dense<0.000000e+00> : vector<8xf32>
    %246 = vector.multi_reduction <add>, %245, %cst_136 [1] : vector<8x2xf32> to vector<8xf32>
    %247 = vector.shape_cast %246 : vector<8xf32> to vector<8x1xf32>
    %248 = math.log %247 : vector<8x1xf32>
    %249 = arith.addf %242, %248 : vector<8x1xf32>
    %250 = vector.broadcast %249 : vector<8x1xf32> to vector<8x2xf32>
    %251 = arith.subf %240, %250 : vector<8x2xf32>
    %c0_137 = arith.constant 0 : index
    %c0_138 = arith.constant 0 : index
    %252 = vector.load %arg24[%c0_137, %c0_138] : memref<8x2xf32, #tpu.memory_space<vmem>>, vector<8x2xf32>
    tpu.vector_store %arg24[%c0_137, %c0_138], %251 {strides = array<i32>} : memref<8x2xf32, #tpu.memory_space<vmem>>, vector<8x2xf32>,
    return
  }
  func.func @transform_0(%arg0: i32) -> (i32, i32) {
    %c0_i32 = arith.constant 0 : i32
    %c0_i32_0 = arith.constant 0 : i32
    %c0_i32_1 = arith.constant 0 : i32
    return %c0_i32, %c0_i32_0 : i32, i32
  }
  func.func @transform_1(%arg0: i32) -> (i32, i32) {
    %c0_i32 = arith.constant 0 : i32
    %c0_i32_0 = arith.constant 0 : i32
    %c0_i32_1 = arith.constant 0 : i32
    return %c0_i32, %c0_i32_0 : i32, i32
  }
  func.func @transform_2(%arg0: i32) -> (i32, i32) {
    %c0_i32 = arith.constant 0 : i32
    %c0_i32_0 = arith.constant 0 : i32
    %c0_i32_1 = arith.constant 0 : i32
    return %c0_i32, %c0_i32_0 : i32, i32
  }
  func.func @transform_3(%arg0: i32) -> (i32, i32) {
    %c0_i32 = arith.constant 0 : i32
    %c0_i32_0 = arith.constant 0 : i32
    %c0_i32_1 = arith.constant 0 : i32
    return %c0_i32, %c0_i32_0 : i32, i32
  }
  func.func @transform_4(%arg0: i32) -> (i32, i32) {
    %c0_i32 = arith.constant 0 : i32
    %c0_i32_0 = arith.constant 0 : i32
    %c0_i32_1 = arith.constant 0 : i32
    return %c0_i32, %c0_i32_0 : i32, i32
  }
  func.func @transform_5(%arg0: i32) -> (i32, i32) {
    %c0_i32 = arith.constant 0 : i32
    %c0_i32_0 = arith.constant 0 : i32
    %c0_i32_1 = arith.constant 0 : i32
    return %c0_i32, %c0_i32_0 : i32, i32
  }
  func.func @transform_6(%arg0: i32) -> (i32, i32) {
    %c0_i32 = arith.constant 0 : i32
    %c0_i32_0 = arith.constant 0 : i32
    %c0_i32_1 = arith.constant 0 : i32
    return %c0_i32, %c0_i32_0 : i32, i32
  }
  func.func @transform_7(%arg0: i32) -> (i32, i32) {
    %c0_i32 = arith.constant 0 : i32
    %c0_i32_0 = arith.constant 0 : i32
    %c0_i32_1 = arith.constant 0 : i32
    return %c0_i32, %c0_i32_0 : i32, i32
  }
  func.func @transform_8(%arg0: i32) -> (i32, i32) {
    %c0_i32 = arith.constant 0 : i32
    %c0_i32_0 = arith.constant 0 : i32
    %c0_i32_1 = arith.constant 0 : i32
    return %c0_i32, %c0_i32_0 : i32, i32
  }
  func.func @transform_9(%arg0: i32) -> (i32, i32) {
    %c0_i32 = arith.constant 0 : i32
    %c0_i32_0 = arith.constant 0 : i32
    %c0_i32_1 = arith.constant 0 : i32
    return %c0_i32, %c0_i32_0 : i32, i32
  }
  func.func @transform_10(%arg0: i32) -> (i32, i32) {
    %c0_i32 = arith.constant 0 : i32
    %c0_i32_0 = arith.constant 0 : i32
    %c0_i32_1 = arith.constant 0 : i32
    return %c0_i32, %c0_i32_0 : i32, i32
  }
  func.func @transform_11(%arg0: i32) -> (i32, i32) {
    %c0_i32 = arith.constant 0 : i32
    %c0_i32_0 = arith.constant 0 : i32
    %c0_i32_1 = arith.constant 0 : i32
    return %c0_i32, %c0_i32_0 : i32, i32
  }
  func.func @transform_12(%arg0: i32) -> (i32, i32, i32) {
    %c0_i32 = arith.constant 0 : i32
    %c0_i32_0 = arith.constant 0 : i32
    %c0_i32_1 = arith.constant 0 : i32
    %c0_i32_2 = arith.constant 0 : i32
    return %c0_i32, %c0_i32_0, %c0_i32_1 : i32, i32, i32
  }
  func.func @transform_13(%arg0: i32) -> (i32, i32, i32) {
    %c0_i32 = arith.constant 0 : i32
    %c0_i32_0 = arith.constant 0 : i32
    %c0_i32_1 = arith.constant 0 : i32
    %c0_i32_2 = arith.constant 0 : i32
    return %c0_i32, %c0_i32_0, %c0_i32_1 : i32, i32, i32
  }
  func.func @transform_14(%arg0: i32) -> (i32, i32, i32) {
    %c0_i32 = arith.constant 0 : i32
    %c0_i32_0 = arith.constant 0 : i32
    %c0_i32_1 = arith.constant 0 : i32
    %c0_i32_2 = arith.constant 0 : i32
    return %c0_i32, %c0_i32_0, %c0_i32_1 : i32, i32, i32
  }
  func.func @transform_15(%arg0: i32) -> (i32, i32, i32) {
    %c0_i32 = arith.constant 0 : i32
    %c0_i32_0 = arith.constant 0 : i32
    %c0_i32_1 = arith.constant 0 : i32
    %c0_i32_2 = arith.constant 0 : i32
    return %c0_i32, %c0_i32_0, %c0_i32_1 : i32, i32, i32
  }
  func.func @transform_16(%arg0: i32) -> (i32, i32) {
    %c0_i32 = arith.constant 0 : i32
    %c0_i32_0 = arith.constant 0 : i32
    %c0_i32_1 = arith.constant 0 : i32
    return %c0_i32, %c0_i32_0 : i32, i32
  }
  func.func @transform_17(%arg0: i32) -> (i32, i32) {
    %c0_i32 = arith.constant 0 : i32
    %c0_i32_0 = arith.constant 0 : i32
    %c0_i32_1 = arith.constant 0 : i32
    return %c0_i32, %c0_i32_0 : i32, i32
  }
  func.func @transform_18(%arg0: i32) -> (i32, i32) {
    %c0_i32 = arith.constant 0 : i32
    %c0_i32_0 = arith.constant 0 : i32
    %c0_i32_1 = arith.constant 0 : i32
    return %c0_i32, %c0_i32_0 : i32, i32
  }
  func.func @transform_19(%arg0: i32) -> (i32, i32) {
    %c0_i32 = arith.constant 0 : i32
    %c0_i32_0 = arith.constant 0 : i32
    %c0_i32_1 = arith.constant 0 : i32
    return %c0_i32, %c0_i32_0 : i32, i32
  }
  func.func @transform_20(%arg0: i32) -> (i32, i32) {
    %c0_i32 = arith.constant 0 : i32
    %c0_i32_0 = arith.constant 0 : i32
    %c0_i32_1 = arith.constant 0 : i32
    return %c0_i32, %c0_i32_0 : i32, i32
  }
  func.func @transform_21(%arg0: i32) -> (i32, i32) {
    %c0_i32 = arith.constant 0 : i32
    %c0_i32_0 = arith.constant 0 : i32
    %c0_i32_1 = arith.constant 0 : i32
    return %c0_i32, %c0_i32_0 : i32, i32
  }
  func.func @transform_22(%arg0: i32) -> (i32, i32) {
    %c0_i32 = arith.constant 0 : i32
    %c0_i32_0 = arith.constant 0 : i32
    %c0_i32_1 = arith.constant 0 : i32
    return %c0_i32, %c0_i32_0 : i32, i32
  }
  func.func @transform_23(%arg0: i32) -> (i32, i32) {
    %c0_i32 = arith.constant 0 : i32
    %c0_i32_0 = arith.constant 0 : i32
    %c0_i32_1 = arith.constant 0 : i32
    return %c0_i32, %c0_i32_0 : i32, i32
  }
}

</mosaic_0001>

<llo_original>
// kernel: tpu_custom_call.1
$region0: #{tpu_custom_call.1}
  #allocation0 [shape = 'u32[]', space=smem, size = 0x4, offset = 0x4, fixed_abs, tag = 'smem constant byte address 0x4 - core index']
  #allocation1 [shape = 'u32[144,128]{1,0:T(1,128)}', space=vmem, size = 0x12000, scoped, tag = 'internal scratch']
  %s0 = inlined_call_operand.hbm [shape: bf16[16,16], index: 0, kind: input, shape index: {}]
  %s1 = inlined_call_operand.hbm [shape: bf16[16,16], index: 1, kind: input, shape index: {}]
  %s2 = inlined_call_operand.hbm [shape: bf16[16,16], index: 2, kind: input, shape index: {}]
  %s3 = inlined_call_operand.hbm [shape: bf16[8,16], index: 3, kind: input, shape index: {}]
  %s4 = inlined_call_operand.hbm [shape: f32[16,16], index: 4, kind: input, shape index: {}]
  %s5 = inlined_call_operand.vmem [shape: f32[8,2], index: 5, kind: input, shape index: {}]
  %s6 = inlined_call_operand.vmem [shape: f32[80,64], index: 6, kind: input, shape index: {}]
  %s7 = inlined_call_operand.vmem [shape: f32[1,64], index: 7, kind: input, shape index: {}]
  %s8 = inlined_call_operand.vmem [shape: f32[64,64], index: 8, kind: input, shape index: {}]
  %s9 = inlined_call_operand.hbm [shape: f32[1,64], index: 9, kind: input, shape index: {}]
  %s10 = inlined_call_operand.vmem [shape: f32[64,32], index: 10, kind: input, shape index: {}]
  %s11 = inlined_call_operand.hbm [shape: f32[1,32], index: 11, kind: input, shape index: {}]
  %s12 = inlined_call_operand.vmem [shape: f32[3,32,32], index: 12, kind: input, shape index: {}]
  %s13 = inlined_call_operand.vmem [shape: f32[3,1,32], index: 13, kind: input, shape index: {}]
  %s14 = inlined_call_operand.vmem [shape: f32[3,32,32], index: 14, kind: input, shape index: {}]
  %s15 = inlined_call_operand.vmem [shape: f32[3,1,32], index: 15, kind: input, shape index: {}]
  %s16 = inlined_call_operand.hbm [shape: f32[32,64], index: 16, kind: input, shape index: {}]
  %s17 = inlined_call_operand.vmem [shape: f32[2,64], index: 17, kind: input, shape index: {}]
  %s18 = inlined_call_operand.vmem [shape: f32[1,64], index: 18, kind: input, shape index: {}]
  %s19 = inlined_call_operand.vmem [shape: f32[64,64], index: 19, kind: input, shape index: {}]
  %s20 = inlined_call_operand.vmem [shape: f32[1,64], index: 20, kind: input, shape index: {}]
  %s21 = inlined_call_operand.vmem [shape: f32[64,2], index: 21, kind: input, shape index: {}]
  %s22 = inlined_call_operand.vmem [shape: f32[1,2], index: 22, kind: input, shape index: {}]
  %s23 = inlined_call_operand.vmem [shape: f32[8,2], index: 23, kind: output, shape index: {}]
  %s24 = sld [smem:[#allocation0]]
  $region134: #{tpu_custom_call.1} parent=0
    _
  %s26 = ssub.s32 1, %s24
  %s27 = scalar_select 0, %s26, %s24
  $region1: #{tpu_custom_call.1} parent=0
    #allocation2 [shape = 'u8[4096]{0}', space=vmem, size = 0x1000, scoped, tag = 'input window, operand 0, single buffered']
    #allocation3 [shape = 's32[1]{0}', space=sflag, size = 0x4, scoped, tag = 'scoped memory for tpu_custom_call.1']
    #allocation4 [shape = 'u8[4096]{0}', space=vmem, size = 0x1000, scoped, tag = 'input window, operand 1, single buffered']
    #allocation5 [shape = 's32[1]{0}', space=sflag, size = 0x4, scoped, tag = 'scoped memory for tpu_custom_call.1']
    #allocation6 [shape = 'u8[4096]{0}', space=vmem, size = 0x1000, scoped, tag = 'input window, operand 2, single buffered']
    #allocation7 [shape = 'u8[2048]{0}', space=vmem, size = 0x800, scoped, tag = 'input window, operand 3, single buffered']
    #allocation8 [shape = 's32[1]{0}', space=sflag, size = 0x4, scoped, tag = 'scoped memory for tpu_custom_call.1']
    #allocation9 [shape = 'u8[8192]{0}', space=vmem, size = 0x2000, scoped, tag = 'input window, operand 4, single buffered']
    #allocation10 [shape = 'u8[512]{0}', space=vmem, size = 0x400, scoped, tag = 'input window, operand 9, single buffered']
    #allocation11 [shape = 's32[1]{0}', space=sflag, size = 0x4, scoped, tag = 'scoped memory for tpu_custom_call.1']
    #allocation12 [shape = 'u8[512]{0}', space=vmem, size = 0x400, scoped, tag = 'input window, operand 11, single buffered']
    #allocation13 [shape = 'u8[16384]{0}', space=vmem, size = 0x4000, scoped, tag = 'input window, operand 16, single buffered']
    #allocation14 [shape = 's32[1]{0}', space=sflag, size = 0x4, scoped, tag = 'scoped memory for tpu_custom_call.1']
    %28 = vsyncpa [#allocation3], 0
    %29 = vsyncpa [#allocation5], 0
    %30 = vsyncpa [#allocation8], 0
    %31 = vsyncpa [#allocation11], 0
    %32 = vsyncpa [#allocation14], 0
    // Predicated region
    $region2: #{tpu_custom_call.1} parent=1 // pred_check
      _
    $region3: #{tpu_custom_call.1} parent=1 // pred_check_branch
      %34 = sbr.rel (0) target = $region5
    $region4: #{tpu_custom_call.1} parent=1 // pred_region
      %s36 = ssub.s32 128, 128
      %37 = vsyncadd [#allocation3], %s36
      %s38 = sshll.u32 [#allocation2], 4
      %s39 = int_to_ptr.vmem [resolvable:$true] %s38
      %44 = dma.hbm_to_vmem [thread:$0]  %s0, 128, %s39, [#allocation3], 64, 64, 4
    $region5: #{tpu_custom_call.1} parent=1 // pred_fallthru
      _
    // Predicated region
    $region6: #{tpu_custom_call.1} parent=1 // pred_check
      _
    $region7: #{tpu_custom_call.1} parent=1 // pred_check_branch
      %46 = sbr.rel (0) target = $region9
    $region8: #{tpu_custom_call.1} parent=1 // pred_region
      %s48 = ssub.s32 128, 128
      %49 = vsyncadd [#allocation5], %s48
      %s50 = sshll.u32 [#allocation4], 4
      %s51 = int_to_ptr.vmem [resolvable:$true] %s50
      %56 = dma.hbm_to_vmem [thread:$0]  %s1, 128, %s51, [#allocation5], 64, 64, 4
    $region9: #{tpu_custom_call.1} parent=1 // pred_fallthru
      _
    // Predicated region
    $region10: #{tpu_custom_call.1} parent=1 // pred_check
      _
    $region11: #{tpu_custom_call.1} parent=1 // pred_check_branch
      %58 = sbr.rel (0) target = $region13
    $region12: #{tpu_custom_call.1} parent=1 // pred_region
      %s60 = ssub.s32 128, 128
      %61 = vsyncadd [#allocation5], %s60
      %s62 = sshll.u32 [#allocation6], 4
      %s63 = int_to_ptr.vmem [resolvable:$true] %s62
      %68 = dma.hbm_to_vmem [thread:$0]  %s2, 128, %s63, [#allocation5], 64, 64, 4
    $region13: #{tpu_custom_call.1} parent=1 // pred_fallthru
      _
    // Predicated region
    $region14: #{tpu_custom_call.1} parent=1 // pred_check
      _
    $region15: #{tpu_custom_call.1} parent=1 // pred_check_branch
      %70 = sbr.rel (0) target = $region17
    $region16: #{tpu_custom_call.1} parent=1 // pred_region
      %s72 = ssub.s32 64, 64
      %73 = vsyncadd [#allocation8], %s72
      %s75 = sshll.u32 [#allocation7], 4
      %s76 = int_to_ptr.vmem [resolvable:$true] %s75
      %78 = dma.hbm_to_vmem [thread:$0]  %s3, 64, %s76, [#allocation8]
    $region17: #{tpu_custom_call.1} parent=1 // pred_fallthru
      _
    // Predicated region
    $region18: #{tpu_custom_call.1} parent=1 // pred_check
      _
    $region19: #{tpu_custom_call.1} parent=1 // pred_check_branch
      %80 = sbr.rel (0) target = $region21
    $region20: #{tpu_custom_call.1} parent=1 // pred_region
      %s82 = ssub.s32 256, 256
      %83 = vsyncadd [#allocation8], %s82
      %s84 = sshll.u32 [#allocation9], 4
      %s85 = int_to_ptr.vmem [resolvable:$true] %s84
      %90 = dma.hbm_to_vmem [thread:$0]  %s4, 256, %s85, [#allocation8], 128, 128, 8
    $region21: #{tpu_custom_call.1} parent=1 // pred_fallthru
      _
    // Predicated region
    $region22: #{tpu_custom_call.1} parent=1 // pred_check
      _
    $region23: #{tpu_custom_call.1} parent=1 // pred_check_branch
      %92 = sbr.rel (0) target = $region25
    $region24: #{tpu_custom_call.1} parent=1 // pred_region
      _
    $region25: #{tpu_custom_call.1} parent=1 // pred_fallthru
      _
    // Predicated region
    $region26: #{tpu_custom_call.1} parent=1 // pred_check
      _
    $region27: #{tpu_custom_call.1} parent=1 // pred_check_branch
      %94 = sbr.rel (0) target = $region29
    $region28: #{tpu_custom_call.1} parent=1 // pred_region
      _
    $region29: #{tpu_custom_call.1} parent=1 // pred_fallthru
      _
    // Predicated region
    $region30: #{tpu_custom_call.1} parent=1 // pred_check
      _
    $region31: #{tpu_custom_call.1} parent=1 // pred_check_branch
      %96 = sbr.rel (0) target = $region33
    $region32: #{tpu_custom_call.1} parent=1 // pred_region
      _
    $region33: #{tpu_custom_call.1} parent=1 // pred_fallthru
      _
    // Predicated region
    $region34: #{tpu_custom_call.1} parent=1 // pred_check
      _
    $region35: #{tpu_custom_call.1} parent=1 // pred_check_branch
      %98 = sbr.rel (0) target = $region37
    $region36: #{tpu_custom_call.1} parent=1 // pred_region
      _
    $region37: #{tpu_custom_call.1} parent=1 // pred_fallthru
      _
    // Predicated region
    $region38: #{tpu_custom_call.1} parent=1 // pred_check
      _
    $region39: #{tpu_custom_call.1} parent=1 // pred_check_branch
      %100 = sbr.rel (0) target = $region41
    $region40: #{tpu_custom_call.1} parent=1 // pred_region
      %s102 = ssub.s32 16, 16
      %103 = vsyncadd [#allocation11], %s102
      %s105 = sshll.u32 [#allocation10], 4
      %s106 = int_to_ptr.vmem [resolvable:$true] %s105
      %108 = dma.hbm_to_vmem [thread:$0]  %s9, 16, %s106, [#allocation11]
    $region41: #{tpu_custom_call.1} parent=1 // pred_fallthru
      _
    // Predicated region
    $region42: #{tpu_custom_call.1} parent=1 // pred_check
      _
    $region43: #{tpu_custom_call.1} parent=1 // pred_check_branch
      %110 = sbr.rel (0) target = $region45
    $region44: #{tpu_custom_call.1} parent=1 // pred_region
      _
    $region45: #{tpu_custom_call.1} parent=1 // pred_fallthru
      _
    // Predicated region
    $region46: #{tpu_custom_call.1} parent=1 // pred_check
      _
    $region47: #{tpu_custom_call.1} parent=1 // pred_check_branch
      %112 = sbr.rel (0) target = $region49
    $region48: #{tpu_custom_call.1} parent=1 // pred_region
      %s114 = ssub.s32 16, 16
      %115 = vsyncadd [#allocation11], %s114
      %s117 = sshll.u32 [#allocation12], 4
      %s118 = int_to_ptr.vmem [resolvable:$true] %s117
      %120 = dma.hbm_to_vmem [thread:$0]  %s11, 16, %s118, [#allocation11]
    $region49: #{tpu_custom_call.1} parent=1 // pred_fallthru
      _
    // Predicated region
    $region50: #{tpu_custom_call.1} parent=1 // pred_check
      _
    $region51: #{tpu_custom_call.1} parent=1 // pred_check_branch
      %122 = sbr.rel (0) target = $region53
    $region52: #{tpu_custom_call.1} parent=1 // pred_region
      _
    $region53: #{tpu_custom_call.1} parent=1 // pred_fallthru
      _
    // Predicated region
    $region54: #{tpu_custom_call.1} parent=1 // pred_check
      _
    $region55: #{tpu_custom_call.1} parent=1 // pred_check_branch
      %124 = sbr.rel (0) target = $region57
    $region56: #{tpu_custom_call.1} parent=1 // pred_region
      _
    $region57: #{tpu_custom_call.1} parent=1 // pred_fallthru
      _
    // Predicated region
    $region58: #{tpu_custom_call.1} parent=1 // pred_check
      _
    $region59: #{tpu_custom_call.1} parent=1 // pred_check_branch
      %126 = sbr.rel (0) target = $region61
    $region60: #{tpu_custom_call.1} parent=1 // pred_region
      _
    $region61: #{tpu_custom_call.1} parent=1 // pred_fallthru
      _
    // Predicated region
    $region62: #{tpu_custom_call.1} parent=1 // pred_check
      _
    $region63: #{tpu_custom_call.1} parent=1 // pred_check_branch
      %128 = sbr.rel (0) target = $region65
    $region64: #{tpu_custom_call.1} parent=1 // pred_region
      _
    $region65: #{tpu_custom_call.1} parent=1 // pred_fallthru
      _
    // Predicated region
    $region66: #{tpu_custom_call.1} parent=1 // pred_check
      _
    $region67: #{tpu_custom_call.1} parent=1 // pred_check_branch
      %130 = sbr.rel (0) target = $region69
    $region68: #{tpu_custom_call.1} parent=1 // pred_region
      %s132 = ssub.s32 512, 512
      %133 = vsyncadd [#allocation14], %s132
      %s134 = sshll.u32 [#allocation13], 4
      %s135 = int_to_ptr.vmem [resolvable:$true] %s134
      %140 = dma.hbm_to_vmem [thread:$0]  %s16, 512, %s135, [#allocation14], 128, 128, 8
    $region69: #{tpu_custom_call.1} parent=1 // pred_fallthru
      _
    // Predicated region
    $region70: #{tpu_custom_call.1} parent=1 // pred_check
      _
    $region71: #{tpu_custom_call.1} parent=1 // pred_check_branch
      %142 = sbr.rel (0) target = $region73
    $region72: #{tpu_custom_call.1} parent=1 // pred_region
      _
    $region73: #{tpu_custom_call.1} parent=1 // pred_fallthru
      _
    // Predicated region
    $region74: #{tpu_custom_call.1} parent=1 // pred_check
      _
    $region75: #{tpu_custom_call.1} parent=1 // pred_check_branch
      %144 = sbr.rel (0) target = $region77
    $region76: #{tpu_custom_call.1} parent=1 // pred_region
      _
    $region77: #{tpu_custom_call.1} parent=1 // pred_fallthru
      _
    // Predicated region
    $region78: #{tpu_custom_call.1} parent=1 // pred_check
      _
    $region79: #{tpu_custom_call.1} parent=1 // pred_check_branch
      %146 = sbr.rel (0) target = $region81
    $region80: #{tpu_custom_call.1} parent=1 // pred_region
      _
    $region81: #{tpu_custom_call.1} parent=1 // pred_fallthru
      _
    // Predicated region
    $region82: #{tpu_custom_call.1} parent=1 // pred_check
      _
    $region83: #{tpu_custom_call.1} parent=1 // pred_check_branch
      %148 = sbr.rel (0) target = $region85
    $region84: #{tpu_custom_call.1} parent=1 // pred_region
      _
    $region85: #{tpu_custom_call.1} parent=1 // pred_fallthru
      _
    // Predicated region
    $region86: #{tpu_custom_call.1} parent=1 // pred_check
      _
    $region87: #{tpu_custom_call.1} parent=1 // pred_check_branch
      %150 = sbr.rel (0) target = $region89
    $region88: #{tpu_custom_call.1} parent=1 // pred_region
      _
    $region89: #{tpu_custom_call.1} parent=1 // pred_fallthru
      _
    // Predicated region
    $region90: #{tpu_custom_call.1} parent=1 // pred_check
      _
    $region91: #{tpu_custom_call.1} parent=1 // pred_check_branch
      %152 = sbr.rel (0) target = $region93
    $region92: #{tpu_custom_call.1} parent=1 // pred_region
      _
    $region93: #{tpu_custom_call.1} parent=1 // pred_fallthru
      _
    // Predicated region
    $region94: #{tpu_custom_call.1} parent=1 // pred_check
      _
    $region95: #{tpu_custom_call.1} parent=1 // pred_check_branch
      %154 = sbr.rel (0) target = $region97
    $region96: #{tpu_custom_call.1} parent=1 // pred_region
      %155 = dma.done [#allocation3], 128
    $region97: #{tpu_custom_call.1} parent=1 // pred_fallthru
      _
    // Predicated region
    $region98: #{tpu_custom_call.1} parent=1 // pred_check
      _
    $region99: #{tpu_custom_call.1} parent=1 // pred_check_branch
      %157 = sbr.rel (0) target = $region101
    $region100: #{tpu_custom_call.1} parent=1 // pred_region
      %158 = dma.done [#allocation5], 128
    $region101: #{tpu_custom_call.1} parent=1 // pred_fallthru
      _
    // Predicated region
    $region102: #{tpu_custom_call.1} parent=1 // pred_check
      _
    $region103: #{tpu_custom_call.1} parent=1 // pred_check_branch
      %160 = sbr.rel (0) target = $region105
    $region104: #{tpu_custom_call.1} parent=1 // pred_region
      %161 = dma.done [#allocation5], 128
    $region105: #{tpu_custom_call.1} parent=1 // pred_fallthru
      _
    // Predicated region
    $region106: #{tpu_custom_call.1} parent=1 // pred_check
      _
    $region107: #{tpu_custom_call.1} parent=1 // pred_check_branch
      %163 = sbr.rel (0) target = $region109
    $region108: #{tpu_custom_call.1} parent=1 // pred_region
      %164 = dma.done [#allocation8], 64
    $region109: #{tpu_custom_call.1} parent=1 // pred_fallthru
      _
    // Predicated region
    $region110: #{tpu_custom_call.1} parent=1 // pred_check
      _
    $region111: #{tpu_custom_call.1} parent=1 // pred_check_branch
      %166 = sbr.rel (0) target = $region113
    $region112: #{tpu_custom_call.1} parent=1 // pred_region
      %167 = dma.done [#allocation8], 256
    $region113: #{tpu_custom_call.1} parent=1 // pred_fallthru
      _
    // Predicated region
    $region114: #{tpu_custom_call.1} parent=1 // pred_check
      _
    $region115: #{tpu_custom_call.1} parent=1 // pred_check_branch
      %169 = sbr.rel (0) target = $region117
    $region116: #{tpu_custom_call.1} parent=1 // pred_region
      %170 = dma.done [#allocation11], 16
    $region117: #{tpu_custom_call.1} parent=1 // pred_fallthru
      _
    // Predicated region
    $region118: #{tpu_custom_call.1} parent=1 // pred_check
      _
    $region119: #{tpu_custom_call.1} parent=1 // pred_check_branch
      %172 = sbr.rel (0) target = $region121
    $region120: #{tpu_custom_call.1} parent=1 // pred_region
      %173 = dma.done [#allocation11], 16
    $region121: #{tpu_custom_call.1} parent=1 // pred_fallthru
      _
    // Predicated region
    $region122: #{tpu_custom_call.1} parent=1 // pred_check
      _
    $region123: #{tpu_custom_call.1} parent=1 // pred_check_branch
      %175 = sbr.rel (0) target = $region125
    $region124: #{tpu_custom_call.1} parent=1 // pred_region
      %176 = dma.done [#allocation14], 512
    $region125: #{tpu_custom_call.1} parent=1 // pred_fallthru
      _
    %v177 = vld [vmem:[#allocation2] sm:$0xf]
    %v178 = vld [vmem:[#allocation2 + $0x4] sm:$0xf]
    %v179 = vunpack.c.l.bf16 %v177
    %v180 = vunpack.c.l.bf16 %v178
    %v181 = vld [vmem:[#allocation4] sm:$0xf]
    %v182 = vld [vmem:[#allocation4 + $0x4] sm:$0xf]
    %v183 = vunpack.c.l.bf16 %v181
    %v184 = vunpack.c.l.bf16 %v182
    %v185 = vld [vmem:[#allocation6] sm:$0xf]
    %v186 = vld [vmem:[#allocation6 + $0x4] sm:$0xf]
    %v187 = vunpack.c.l.bf16 %v185
    %v188 = vunpack.c.l.bf16 %v186
    %v189 = vld [vmem:[#allocation7] sm:$0xf]
    %v190 = vunpack.c.l.bf16 %v189
    %v191 = vld [vmem:[#allocation9] sm:$0xff]
    %v192 = vld [vmem:[#allocation9 + $0x8] sm:$0xff]
    %v193 = vld [vmem:[%s6] sm:$0xff]
    %v194 = vld [vmem:[%s6 + $0x8] sm:$0xff]
    %v195 = vld [vmem:[%s6 + $0x10] sm:$0xff]
    %v196 = vld [vmem:[%s6 + $0x18] sm:$0xff]
    %v197 = vld [vmem:[%s6 + $0x20] sm:$0xff]
    %v198 = vld [vmem:[%s6 + $0x28] sm:$0xff]
    %v199 = vld [vmem:[%s6 + $0x30] sm:$0xff]
    %v200 = vld [vmem:[%s6 + $0x38] sm:$0xff]
    %v201 = vld [vmem:[%s6 + $0x40] sm:$0xff]
    %v202 = vld [vmem:[%s6 + $0x48] sm:$0xff]
    %v203 = vld [vmem:[%s7] sm:$0x1]
    %v204 = vld [vmem:[%s8] sm:$0xff]
    %v205 = vld [vmem:[%s8 + $0x8] sm:$0xff]
    %v206 = vld [vmem:[%s8 + $0x10] sm:$0xff]
    %v207 = vld [vmem:[%s8 + $0x18] sm:$0xff]
    %v208 = vld [vmem:[%s8 + $0x20] sm:$0xff]
    %v209 = vld [vmem:[%s8 + $0x28] sm:$0xff]
    %v210 = vld [vmem:[%s8 + $0x30] sm:$0xff]
    %v211 = vld [vmem:[%s8 + $0x38] sm:$0xff]
    %v212 = vld [vmem:[#allocation10] sm:$0x1]
    %v213 = vld [vmem:[%s10] sm:$0xff]
    %v214 = vld [vmem:[%s10 + $0x8] sm:$0xff]
    %v215 = vld [vmem:[%s10 + $0x10] sm:$0xff]
    %v216 = vld [vmem:[%s10 + $0x18] sm:$0xff]
    %v217 = vld [vmem:[%s10 + $0x20] sm:$0xff]
    %v218 = vld [vmem:[%s10 + $0x28] sm:$0xff]
    %v219 = vld [vmem:[%s10 + $0x30] sm:$0xff]
    %v220 = vld [vmem:[%s10 + $0x38] sm:$0xff]
    %v221 = vld [vmem:[#allocation12] sm:$0x1]
    %v222 = vld [vmem:[%s12] sm:$0xff]
    %v223 = vld [vmem:[%s12 + $0x8] sm:$0xff]
    %v224 = vld [vmem:[%s12 + $0x10] sm:$0xff]
    %v225 = vld [vmem:[%s12 + $0x18] sm:$0xff]
    %s226 = scalar_lea.vmem %s12, 32
    %v227 = vld [vmem:[%s226] sm:$0xff]
    %v228 = vld [vmem:[%s226 + $0x8] sm:$0xff]
    %v229 = vld [vmem:[%s226 + $0x10] sm:$0xff]
    %v230 = vld [vmem:[%s226 + $0x18] sm:$0xff]
    %s231 = scalar_lea.vmem %s12, 64
    %v232 = vld [vmem:[%s231] sm:$0xff]
    %v233 = vld [vmem:[%s231 + $0x8] sm:$0xff]
    %v234 = vld [vmem:[%s231 + $0x10] sm:$0xff]
    %v235 = vld [vmem:[%s231 + $0x18] sm:$0xff]
    %v236 = vld [vmem:[%s14] sm:$0xff]
    %v237 = vld [vmem:[%s14 + $0x8] sm:$0xff]
    %v238 = vld [vmem:[%s14 + $0x10] sm:$0xff]
    %v239 = vld [vmem:[%s14 + $0x18] sm:$0xff]
    %s240 = scalar_lea.vmem %s14, 32
    %v241 = vld [vmem:[%s240] sm:$0xff]
    %v242 = vld [vmem:[%s240 + $0x8] sm:$0xff]
    %v243 = vld [vmem:[%s240 + $0x10] sm:$0xff]
    %v244 = vld [vmem:[%s240 + $0x18] sm:$0xff]
    %s245 = scalar_lea.vmem %s14, 64
    %v246 = vld [vmem:[%s245] sm:$0xff]
    %v247 = vld [vmem:[%s245 + $0x8] sm:$0xff]
    %v248 = vld [vmem:[%s245 + $0x10] sm:$0xff]
    %v249 = vld [vmem:[%s245 + $0x18] sm:$0xff]
    %v250 = vld [vmem:[%s13] sm:$0x1]
    %s251 = scalar_lea.vmem %s13, 1
    %v252 = vld [vmem:[%s251] sm:$0x1]
    %s253 = scalar_lea.vmem %s13, 2
    %v254 = vld [vmem:[%s253] sm:$0x1]
    %v255 = vld [vmem:[%s15] sm:$0x1]
    %s256 = scalar_lea.vmem %s15, 1
    %v257 = vld [vmem:[%s256] sm:$0x1]
    %s258 = scalar_lea.vmem %s15, 2
    %v259 = vld [vmem:[%s258] sm:$0x1]
    %vm260 = vcmask 130048
    %v262 = vsel %vm260, %v179, 0
    %v265 = vsel %vm260, %v180, 0
    %267 = vmatprep.subr.mxu0 0.0
    %268 = vmatpush1.msra.mxu0 0.0
    %269 = vmatprep.subr.mxu0 0.0
    %270 = vmatpush1.msra.mxu0 0.0
    %271 = vmatprep.subr.mxu0 0.0
    %272 = vmatpush1.msra.mxu0 0.0
    %273 = vmatprep.subr.mxu0 0.0
    %274 = vmatpush1.msra.mxu0 0.0
    %275 = vmatprep.subr.mxu0 0.0
    %276 = vmatpush1.msra.mxu0 0.0
    %277 = vmatprep.subr.mxu0 0.0
    %278 = vmatpush1.msra.mxu0 0.0
    %279 = vmatprep.subr.mxu0 0.0
    %280 = vmatpush1.msra.mxu0 0.0
    %281 = vmatprep.subr.mxu0 0.0
    %282 = vmatpush1.msra.mxu0 0.0
    %283 = vmatprep.subr.mxu0 0.0
    %284 = vmatpush1.msra.mxu0 0.0
    %285 = vmatprep.subr.mxu0 0.0
    %286 = vmatpush1.msra.mxu0 0.0
    %287 = vmatprep.subr.mxu0 0.0
    %288 = vmatpush1.msra.mxu0 0.0
    %289 = vmatprep.subr.mxu0 0.0
    %290 = vmatpush1.msra.mxu0 0.0
    %291 = vmatprep.subr.mxu0 0.0
    %292 = vmatpush1.msra.mxu0 0.0
    %293 = vmatprep.subr.mxu0 0.0
    %294 = vmatpush1.msra.mxu0 0.0
    %295 = vmatprep.subr.mxu0 0.0
    %296 = vmatpush1.msra.mxu0 0.0
    %297 = vmatprep.subr.mxu0 0.0
    %298 = vmatpush1.msra.mxu0 0.0
    %299 = vmatprep.subr.mxu0 0.0
    %300 = vmatpush1.msra.mxu0 0.0
    %301 = vmatprep.subr.mxu0 0.0
    %302 = vmatpush1.msra.mxu0 0.0
    %303 = vmatprep.subr.mxu0 0.0
    %304 = vmatpush1.msra.mxu0 0.0
    %305 = vmatprep.subr.mxu0 0.0
    %306 = vmatpush1.msra.mxu0 0.0
    %307 = vmatprep.subr.mxu0 0.0
    %308 = vmatpush1.msra.mxu0 0.0
    %309 = vmatprep.subr.mxu0 0.0
    %310 = vmatpush1.msra.mxu0 0.0
    %311 = vmatprep.subr.mxu0 0.0
    %312 = vmatpush1.msra.mxu0 0.0
    %313 = vmatprep.subr.mxu0 0.0
    %314 = vmatpush1.msra.mxu0 0.0
    %315 = vmatprep.subr.mxu0 0.0
    %316 = vmatpush1.msra.mxu0 0.0
    %317 = vmatprep.subr.mxu0 0.0
    %318 = vmatpush1.msra.mxu0 0.0
    %319 = vmatprep.subr.mxu0 0.0
    %320 = vmatpush1.msra.mxu0 0.0
    %321 = vmatprep.subr.mxu0 0.0
    %322 = vmatpush1.msra.mxu0 0.0
    %323 = vmatprep.subr.mxu0 0.0
    %324 = vmatpush1.msra.mxu0 0.0
    %325 = vmatprep.subr.mxu0 0.0
    %326 = vmatpush1.msra.mxu0 0.0
    %327 = vmatprep.subr.mxu0 0.0
    %328 = vmatpush1.msra.mxu0 0.0
    %329 = vmatprep.subr.mxu0 0.0
    %330 = vmatpush1.msra.mxu0 0.0
    %331 = vmatprep.mubr.f32.mxu0 0.0
    %332 = vmatmul.mubr.f32.gmra.mrb[0].mxu0 %v262
    %v333 = vpop.f32.mrb[0].mxu0
    %v334 = vadd.f32 0.0, %v333
    %v335 = vpop.f32.mrb[0].mxu0
    %336 = vmatprep.mubr.f32.mxu0 0.0
    %337 = vmatmul.mubr.f32.gmra.mrb[0].mxu0 %v265
    %v338 = vpop.f32.mrb[0].mxu0
    %v339 = vadd.f32 0.0, %v338
    %v340 = vpop.f32.mrb[0].mxu0
    %341 = vdwg.mxu0
    %v343 = vsel %vm260, %v183, 0
    %v346 = vsel %vm260, %v184, 0
    %348 = vmatprep.subr.mxu0 0.0
    %349 = vmatpush1.msra.mxu0 0.0
    %350 = vmatprep.subr.mxu0 0.0
    %351 = vmatpush1.msra.mxu0 0.0
    %352 = vmatprep.subr.mxu0 0.0
    %353 = vmatpush1.msra.mxu0 0.0
    %354 = vmatprep.subr.mxu0 0.0
    %355 = vmatpush1.msra.mxu0 0.0
    %356 = vmatprep.subr.mxu0 0.0
    %357 = vmatpush1.msra.mxu0 0.0
    %358 = vmatprep.subr.mxu0 0.0
    %359 = vmatpush1.msra.mxu0 0.0
    %360 = vmatprep.subr.mxu0 0.0
    %361 = vmatpush1.msra.mxu0 0.0
    %362 = vmatprep.subr.mxu0 0.0
    %363 = vmatpush1.msra.mxu0 0.0
    %364 = vmatprep.subr.mxu0 0.0
    %365 = vmatpush1.msra.mxu0 0.0
    %366 = vmatprep.subr.mxu0 0.0
    %367 = vmatpush1.msra.mxu0 0.0
    %368 = vmatprep.subr.mxu0 0.0
    %369 = vmatpush1.msra.mxu0 0.0
    %370 = vmatprep.subr.mxu0 0.0
    %371 = vmatpush1.msra.mxu0 0.0
    %372 = vmatprep.subr.mxu0 0.0
    %373 = vmatpush1.msra.mxu0 0.0
    %374 = vmatprep.subr.mxu0 0.0
    %375 = vmatpush1.msra.mxu0 0.0
    %376 = vmatprep.subr.mxu0 0.0
    %377 = vmatpush1.msra.mxu0 0.0
    %378 = vmatprep.subr.mxu0 0.0
    %379 = vmatpush1.msra.mxu0 0.0
    %380 = vmatprep.subr.mxu0 0.0
    %381 = vmatpush1.msra.mxu0 0.0
    %382 = vmatprep.subr.mxu0 0.0
    %383 = vmatpush1.msra.mxu0 0.0
    %384 = vmatprep.subr.mxu0 0.0
    %385 = vmatpush1.msra.mxu0 0.0
    %386 = vmatprep.subr.mxu0 0.0
    %387 = vmatpush1.msra.mxu0 0.0
    %388 = vmatprep.subr.mxu0 0.0
    %389 = vmatpush1.msra.mxu0 0.0
    %390 = vmatprep.subr.mxu0 0.0
    %391 = vmatpush1.msra.mxu0 0.0
    %392 = vmatprep.subr.mxu0 0.0
    %393 = vmatpush1.msra.mxu0 0.0
    %394 = vmatprep.subr.mxu0 0.0
    %395 = vmatpush1.msra.mxu0 0.0
    %396 = vmatprep.subr.mxu0 0.0
    %397 = vmatpush1.msra.mxu0 0.0
    %398 = vmatprep.subr.mxu0 0.0
    %399 = vmatpush1.msra.mxu0 0.0
    %400 = vmatprep.subr.mxu0 0.0
    %401 = vmatpush1.msra.mxu0 0.0
    %402 = vmatprep.subr.mxu0 0.0
    %403 = vmatpush1.msra.mxu0 0.0
    %404 = vmatprep.subr.mxu0 0.0
    %405 = vmatpush1.msra.mxu0 0.0
    %406 = vmatprep.subr.mxu0 0.0
    %407 = vmatpush1.msra.mxu0 0.0
    %408 = vmatprep.subr.mxu0 0.0
    %409 = vmatpush1.msra.mxu0 0.0
    %410 = vmatprep.subr.mxu0 0.0
    %411 = vmatpush1.msra.mxu0 0.0
    %412 = vmatprep.mubr.f32.mxu0 0.0
    %413 = vmatmul.mubr.f32.gmra.mrb[0].mxu0 %v343
    %v414 = vpop.f32.mrb[0].mxu0
    %v415 = vadd.f32 0.0, %v414
    %v416 = vpop.f32.mrb[0].mxu0
    %417 = vmatprep.mubr.f32.mxu0 0.0
    %418 = vmatmul.mubr.f32.gmra.mrb[0].mxu0 %v346
    %v419 = vpop.f32.mrb[0].mxu0
    %v420 = vadd.f32 0.0, %v419
    %v421 = vpop.f32.mrb[0].mxu0
    %422 = vdwg.mxu0
    %vm423 = vcmask 261120
    %v425 = vsel %vm423, %v415, 0
    %v428 = vsel %vm423, %v420, 0
    %430 = vmatprep.subr.mxu0 0.0
    %431 = vmatpush1.msra.mxu0 %v197
    %432 = vmatprep.subr.mxu0 0.0
    %433 = vmatpush1.msra.mxu0 %v198
    %434 = vmatprep.subr.mxu0 0.0
    %435 = vmatpush1.msra.mxu0 %v199
    %436 = vmatprep.subr.mxu0 0.0
    %437 = vmatpush1.msra.mxu0 %v200
    %438 = vmatprep.subr.mxu0 0.0
    %439 = vmatpush1.msra.mxu0 0.0
    %440 = vmatprep.subr.mxu0 0.0
    %441 = vmatpush1.msra.mxu0 0.0
    %442 = vmatprep.subr.mxu0 0.0
    %443 = vmatpush1.msra.mxu0 0.0
    %444 = vmatprep.subr.mxu0 0.0
    %445 = vmatpush1.msra.mxu0 0.0
    %446 = vmatprep.subr.mxu0 0.0
    %447 = vmatpush1.msra.mxu0 0.0
    %448 = vmatprep.subr.mxu0 0.0
    %449 = vmatpush1.msra.mxu0 0.0
    %450 = vmatprep.subr.mxu0 0.0
    %451 = vmatpush1.msra.mxu0 0.0
    %452 = vmatprep.subr.mxu0 0.0
    %453 = vmatpush1.msra.mxu0 0.0
    %454 = vmatprep.subr.mxu0 0.0
    %455 = vmatpush1.msra.mxu0 0.0
    %456 = vmatprep.subr.mxu0 0.0
    %457 = vmatpush1.msra.mxu0 0.0
    %458 = vmatprep.subr.mxu0 0.0
    %459 = vmatpush1.msra.mxu0 0.0
    %460 = vmatprep.subr.mxu0 0.0
    %461 = vmatpush1.msra.mxu0 0.0
    %462 = vmatprep.subr.mxu0 0.0
    %463 = vmatpush1.msra.mxu0 0.0
    %464 = vmatprep.subr.mxu0 0.0
    %465 = vmatpush1.msra.mxu0 0.0
    %466 = vmatprep.subr.mxu0 0.0
    %467 = vmatpush1.msra.mxu0 0.0
    %468 = vmatprep.subr.mxu0 0.0
    %469 = vmatpush1.msra.mxu0 0.0
    %470 = vmatprep.subr.mxu0 0.0
    %471 = vmatpush1.msra.mxu0 0.0
    %472 = vmatprep.subr.mxu0 0.0
    %473 = vmatpush1.msra.mxu0 0.0
    %474 = vmatprep.subr.mxu0 0.0
    %475 = vmatpush1.msra.mxu0 0.0
    %476 = vmatprep.subr.mxu0 0.0
    %477 = vmatpush1.msra.mxu0 0.0
    %478 = vmatprep.subr.mxu0 0.0
    %479 = vmatpush1.msra.mxu0 0.0
    %480 = vmatprep.subr.mxu0 0.0
    %481 = vmatpush1.msra.mxu0 0.0
    %482 = vmatprep.subr.mxu0 0.0
    %483 = vmatpush1.msra.mxu0 0.0
    %484 = vmatprep.subr.mxu0 0.0
    %485 = vmatpush1.msra.mxu0 0.0
    %486 = vmatprep.subr.mxu0 0.0
    %487 = vmatpush1.msra.mxu0 0.0
    %488 = vmatprep.subr.mxu0 0.0
    %489 = vmatpush1.msra.mxu0 0.0
    %490 = vmatprep.subr.mxu0 0.0
    %491 = vmatpush1.msra.mxu0 0.0
    %492 = vmatprep.subr.mxu0 0.0
    %493 = vmatpush1.msra.mxu0 0.0
    %494 = vmatprep.mubr.f32.mxu0 0.0
    %495 = vmatmul.mubr.f32.gmra.mrb[0].mxu0 %v425
    %v496 = vpop.f32.mrb[0].mxu0
    %v497 = vadd.f32 0.0, %v496
    %v498 = vpop.f32.mrb[0].mxu0
    %499 = vmatprep.mubr.f32.mxu0 0.0
    %500 = vmatmul.mubr.f32.gmra.mrb[0].mxu0 %v428
    %v501 = vpop.f32.mrb[0].mxu0
    %v502 = vadd.f32 0.0, %v501
    %v503 = vpop.f32.mrb[0].mxu0
    %504 = vdwg.mxu0
    %v506 = vsel %vm423, %v334, 0
    %v509 = vsel %vm423, %v339, 0
    %511 = vmatprep.subr.mxu0 0.0
    %512 = vmatpush1.msra.mxu0 %v193
    %513 = vmatprep.subr.mxu0 0.0
    %514 = vmatpush1.msra.mxu0 %v194
    %515 = vmatprep.subr.mxu0 0.0
    %516 = vmatpush1.msra.mxu0 %v195
    %517 = vmatprep.subr.mxu0 0.0
    %518 = vmatpush1.msra.mxu0 %v196
    %519 = vmatprep.subr.mxu0 0.0
    %520 = vmatpush1.msra.mxu0 0.0
    %521 = vmatprep.subr.mxu0 0.0
    %522 = vmatpush1.msra.mxu0 0.0
    %523 = vmatprep.subr.mxu0 0.0
    %524 = vmatpush1.msra.mxu0 0.0
    %525 = vmatprep.subr.mxu0 0.0
    %526 = vmatpush1.msra.mxu0 0.0
    %527 = vmatprep.subr.mxu0 0.0
    %528 = vmatpush1.msra.mxu0 0.0
    %529 = vmatprep.subr.mxu0 0.0
    %530 = vmatpush1.msra.mxu0 0.0
    %531 = vmatprep.subr.mxu0 0.0
    %532 = vmatpush1.msra.mxu0 0.0
    %533 = vmatprep.subr.mxu0 0.0
    %534 = vmatpush1.msra.mxu0 0.0
    %535 = vmatprep.subr.mxu0 0.0
    %536 = vmatpush1.msra.mxu0 0.0
    %537 = vmatprep.subr.mxu0 0.0
    %538 = vmatpush1.msra.mxu0 0.0
    %539 = vmatprep.subr.mxu0 0.0
    %540 = vmatpush1.msra.mxu0 0.0
    %541 = vmatprep.subr.mxu0 0.0
    %542 = vmatpush1.msra.mxu0 0.0
    %543 = vmatprep.subr.mxu0 0.0
    %544 = vmatpush1.msra.mxu0 0.0
    %545 = vmatprep.subr.mxu0 0.0
    %546 = vmatpush1.msra.mxu0 0.0
    %547 = vmatprep.subr.mxu0 0.0
    %548 = vmatpush1.msra.mxu0 0.0
    %549 = vmatprep.subr.mxu0 0.0
    %550 = vmatpush1.msra.mxu0 0.0
    %551 = vmatprep.subr.mxu0 0.0
    %552 = vmatpush1.msra.mxu0 0.0
    %553 = vmatprep.subr.mxu0 0.0
    %554 = vmatpush1.msra.mxu0 0.0
    %555 = vmatprep.subr.mxu0 0.0
    %556 = vmatpush1.msra.mxu0 0.0
    %557 = vmatprep.subr.mxu0 0.0
    %558 = vmatpush1.msra.mxu0 0.0
    %559 = vmatprep.subr.mxu0 0.0
    %560 = vmatpush1.msra.mxu0 0.0
    %561 = vmatprep.subr.mxu0 0.0
    %562 = vmatpush1.msra.mxu0 0.0
    %563 = vmatprep.subr.mxu0 0.0
    %564 = vmatpush1.msra.mxu0 0.0
    %565 = vmatprep.subr.mxu0 0.0
    %566 = vmatpush1.msra.mxu0 0.0
    %567 = vmatprep.subr.mxu0 0.0
    %568 = vmatpush1.msra.mxu0 0.0
    %569 = vmatprep.subr.mxu0 0.0
    %570 = vmatpush1.msra.mxu0 0.0
    %571 = vmatprep.subr.mxu0 0.0
    %572 = vmatpush1.msra.mxu0 0.0
    %573 = vmatprep.subr.mxu0 0.0
    %574 = vmatpush1.msra.mxu0 0.0
    %575 = vmatprep.mubr.f32.mxu0 0.0
    %576 = vmatmul.mubr.f32.gmra.mrb[0].mxu0 %v506
    %v577 = vpop.f32.mrb[0].mxu0
    %v578 = vadd.f32 %v497, %v577
    %v579 = vpop.f32.mrb[0].mxu0
    %580 = vmatprep.mubr.f32.mxu0 0.0
    %581 = vmatmul.mubr.f32.gmra.mrb[0].mxu0 %v509
    %v582 = vpop.f32.mrb[0].mxu0
    %v583 = vadd.f32 %v502, %v582
    %v584 = vpop.f32.mrb[0].mxu0
    %585 = vdwg.mxu0
    %v587 = vsel %vm260, %v191, 0
    %v590 = vsel %vm260, %v192, 0
    %592 = vmatprep.subr.mxu0 0.0
    %593 = vmatpush1.msra.mxu0 %v201
    %594 = vmatprep.subr.mxu0 0.0
    %595 = vmatpush1.msra.mxu0 %v202
    %596 = vmatprep.subr.mxu0 0.0
    %597 = vmatpush1.msra.mxu0 0.0
    %598 = vmatprep.subr.mxu0 0.0
    %599 = vmatpush1.msra.mxu0 0.0
    %600 = vmatprep.subr.mxu0 0.0
    %601 = vmatpush1.msra.mxu0 0.0
    %602 = vmatprep.subr.mxu0 0.0
    %603 = vmatpush1.msra.mxu0 0.0
    %604 = vmatprep.subr.mxu0 0.0
    %605 = vmatpush1.msra.mxu0 0.0
    %606 = vmatprep.subr.mxu0 0.0
    %607 = vmatpush1.msra.mxu0 0.0
    %608 = vmatprep.subr.mxu0 0.0
    %609 = vmatpush1.msra.mxu0 0.0
    %610 = vmatprep.subr.mxu0 0.0
    %611 = vmatpush1.msra.mxu0 0.0
    %612 = vmatprep.subr.mxu0 0.0
    %613 = vmatpush1.msra.mxu0 0.0
    %614 = vmatprep.subr.mxu0 0.0
    %615 = vmatpush1.msra.mxu0 0.0
    %616 = vmatprep.subr.mxu0 0.0
    %617 = vmatpush1.msra.mxu0 0.0
    %618 = vmatprep.subr.mxu0 0.0
    %619 = vmatpush1.msra.mxu0 0.0
    %620 = vmatprep.subr.mxu0 0.0
    %621 = vmatpush1.msra.mxu0 0.0
    %622 = vmatprep.subr.mxu0 0.0
    %623 = vmatpush1.msra.mxu0 0.0
    %624 = vmatprep.subr.mxu0 0.0
    %625 = vmatpush1.msra.mxu0 0.0
    %626 = vmatprep.subr.mxu0 0.0
    %627 = vmatpush1.msra.mxu0 0.0
    %628 = vmatprep.subr.mxu0 0.0
    %629 = vmatpush1.msra.mxu0 0.0
    %630 = vmatprep.subr.mxu0 0.0
    %631 = vmatpush1.msra.mxu0 0.0
    %632 = vmatprep.subr.mxu0 0.0
    %633 = vmatpush1.msra.mxu0 0.0
    %634 = vmatprep.subr.mxu0 0.0
    %635 = vmatpush1.msra.mxu0 0.0
    %636 = vmatprep.subr.mxu0 0.0
    %637 = vmatpush1.msra.mxu0 0.0
    %638 = vmatprep.subr.mxu0 0.0
    %639 = vmatpush1.msra.mxu0 0.0
    %640 = vmatprep.subr.mxu0 0.0
    %641 = vmatpush1.msra.mxu0 0.0
    %642 = vmatprep.subr.mxu0 0.0
    %643 = vmatpush1.msra.mxu0 0.0
    %644 = vmatprep.subr.mxu0 0.0
    %645 = vmatpush1.msra.mxu0 0.0
    %646 = vmatprep.subr.mxu0 0.0
    %647 = vmatpush1.msra.mxu0 0.0
    %648 = vmatprep.subr.mxu0 0.0
    %649 = vmatpush1.msra.mxu0 0.0
    %650 = vmatprep.subr.mxu0 0.0
    %651 = vmatpush1.msra.mxu0 0.0
    %652 = vmatprep.subr.mxu0 0.0
    %653 = vmatpush1.msra.mxu0 0.0
    %654 = vmatprep.subr.mxu0 0.0
    %655 = vmatpush1.msra.mxu0 0.0
    %656 = vmatprep.mubr.f32.mxu0 0.0
    %657 = vmatmul.mubr.f32.gmra.mrb[0].mxu0 %v587
    %v658 = vpop.f32.mrb[0].mxu0
    %v659 = vadd.f32 0.0, %v658
    %v660 = vpop.f32.mrb[0].mxu0
    %661 = vmatprep.mubr.f32.mxu0 0.0
    %662 = vmatmul.mubr.f32.gmra.mrb[0].mxu0 %v590
    %v663 = vpop.f32.mrb[0].mxu0
    %v664 = vadd.f32 0.0, %v663
    %v665 = vpop.f32.mrb[0].mxu0
    %666 = vdwg.mxu0
    %v667 = vadd.f32 %v578, %v659
    %v668 = vadd.f32 %v583, %v664
    %v670 = vlaneseq
    %v671 = vshrl.u32 %v670, 7
    %v672 = vsub.s32 0, %v671
    %v673 = vrot.slane %v203, %v672
    %v675 = vadd.f32 %v667, %v673
    %v676 = vadd.f32 %v668, %v673
    %v677 = vmax.f32 %v675, 0.0
    %v678 = vmax.f32 %v676, 0.0
    %v680 = vlaneseq
    %v681 = vshrl.u32 %v680, 7
    %v682 = vsub.s32 0, %v681
    %v683 = vrot.slane %v212, %v682
    %vm685 = vcmask 523264
    %v687 = vsel %vm685, %v677, 0
    %v690 = vsel %vm685, %v678, 0
    %692 = vmatprep.subr.mxu0 0.0
    %693 = vmatpush1.msra.mxu0 %v204
    %694 = vmatprep.subr.mxu0 0.0
    %695 = vmatpush1.msra.mxu0 %v205
    %696 = vmatprep.subr.mxu0 0.0
    %697 = vmatpush1.msra.mxu0 %v206
    %698 = vmatprep.subr.mxu0 0.0
    %699 = vmatpush1.msra.mxu0 %v207
    %700 = vmatprep.subr.mxu0 0.0
    %701 = vmatpush1.msra.mxu0 %v208
    %702 = vmatprep.subr.mxu0 0.0
    %703 = vmatpush1.msra.mxu0 %v209
    %704 = vmatprep.subr.mxu0 0.0
    %705 = vmatpush1.msra.mxu0 %v210
    %706 = vmatprep.subr.mxu0 0.0
    %707 = vmatpush1.msra.mxu0 %v211
    %708 = vmatprep.subr.mxu0 0.0
    %709 = vmatpush1.msra.mxu0 0.0
    %710 = vmatprep.subr.mxu0 0.0
    %711 = vmatpush1.msra.mxu0 0.0
    %712 = vmatprep.subr.mxu0 0.0
    %713 = vmatpush1.msra.mxu0 0.0
    %714 = vmatprep.subr.mxu0 0.0
    %715 = vmatpush1.msra.mxu0 0.0
    %716 = vmatprep.subr.mxu0 0.0
    %717 = vmatpush1.msra.mxu0 0.0
    %718 = vmatprep.subr.mxu0 0.0
    %719 = vmatpush1.msra.mxu0 0.0
    %720 = vmatprep.subr.mxu0 0.0
    %721 = vmatpush1.msra.mxu0 0.0
    %722 = vmatprep.subr.mxu0 0.0
    %723 = vmatpush1.msra.mxu0 0.0
    %724 = vmatprep.subr.mxu0 0.0
    %725 = vmatpush1.msra.mxu0 0.0
    %726 = vmatprep.subr.mxu0 0.0
    %727 = vmatpush1.msra.mxu0 0.0
    %728 = vmatprep.subr.mxu0 0.0
    %729 = vmatpush1.msra.mxu0 0.0
    %730 = vmatprep.subr.mxu0 0.0
    %731 = vmatpush1.msra.mxu0 0.0
    %732 = vmatprep.subr.mxu0 0.0
    %733 = vmatpush1.msra.mxu0 0.0
    %734 = vmatprep.subr.mxu0 0.0
    %735 = vmatpush1.msra.mxu0 0.0
    %736 = vmatprep.subr.mxu0 0.0
    %737 = vmatpush1.msra.mxu0 0.0
    %738 = vmatprep.subr.mxu0 0.0
    %739 = vmatpush1.msra.mxu0 0.0
    %740 = vmatprep.subr.mxu0 0.0
    %741 = vmatpush1.msra.mxu0 0.0
    %742 = vmatprep.subr.mxu0 0.0
    %743 = vmatpush1.msra.mxu0 0.0
    %744 = vmatprep.subr.mxu0 0.0
    %745 = vmatpush1.msra.mxu0 0.0
    %746 = vmatprep.subr.mxu0 0.0
    %747 = vmatpush1.msra.mxu0 0.0
    %748 = vmatprep.subr.mxu0 0.0
    %749 = vmatpush1.msra.mxu0 0.0
    %750 = vmatprep.subr.mxu0 0.0
    %751 = vmatpush1.msra.mxu0 0.0
    %752 = vmatprep.subr.mxu0 0.0
    %753 = vmatpush1.msra.mxu0 0.0
    %754 = vmatprep.subr.mxu0 0.0
    %755 = vmatpush1.msra.mxu0 0.0
    %756 = vmatprep.mubr.f32.mxu0 0.0
    %757 = vmatmul.mubr.f32.gmra.mrb[0].mxu0 %v687
    %v758 = vpop.f32.mrb[0].mxu0
    %v759 = vadd.f32 %v683, %v758
    %v760 = vpop.f32.mrb[0].mxu0
    %761 = vmatprep.mubr.f32.mxu0 0.0
    %762 = vmatmul.mubr.f32.gmra.mrb[0].mxu0 %v690
    %v763 = vpop.f32.mrb[0].mxu0
    %v764 = vadd.f32 %v683, %v763
    %v765 = vpop.f32.mrb[0].mxu0
    %766 = vdwg.mxu0
    %v767 = vmax.f32 %v759, 0.0
    %v768 = vmax.f32 %v764, 0.0
    %v770 = vlaneseq
    %v771 = vshrl.u32 %v770, 7
    %v772 = vsub.s32 0, %v771
    %v773 = vrot.slane %v221, %v772
    %v776 = vsel %vm685, %v767, 0
    %v779 = vsel %vm685, %v768, 0
    %781 = vmatprep.subr.mxu0 0.0
    %782 = vmatpush1.msra.mxu0 %v213
    %783 = vmatprep.subr.mxu0 0.0
    %784 = vmatpush1.msra.mxu0 %v214
    %785 = vmatprep.subr.mxu0 0.0
    %786 = vmatpush1.msra.mxu0 %v215
    %787 = vmatprep.subr.mxu0 0.0
    %788 = vmatpush1.msra.mxu0 %v216
    %789 = vmatprep.subr.mxu0 0.0
    %790 = vmatpush1.msra.mxu0 %v217
    %791 = vmatprep.subr.mxu0 0.0
    %792 = vmatpush1.msra.mxu0 %v218
    %793 = vmatprep.subr.mxu0 0.0
    %794 = vmatpush1.msra.mxu0 %v219
    %795 = vmatprep.subr.mxu0 0.0
    %796 = vmatpush1.msra.mxu0 %v220
    %797 = vmatprep.subr.mxu0 0.0
    %798 = vmatpush1.msra.mxu0 0.0
    %799 = vmatprep.subr.mxu0 0.0
    %800 = vmatpush1.msra.mxu0 0.0
    %801 = vmatprep.subr.mxu0 0.0
    %802 = vmatpush1.msra.mxu0 0.0
    %803 = vmatprep.subr.mxu0 0.0
    %804 = vmatpush1.msra.mxu0 0.0
    %805 = vmatprep.subr.mxu0 0.0
    %806 = vmatpush1.msra.mxu0 0.0
    %807 = vmatprep.subr.mxu0 0.0
    %808 = vmatpush1.msra.mxu0 0.0
    %809 = vmatprep.subr.mxu0 0.0
    %810 = vmatpush1.msra.mxu0 0.0
    %811 = vmatprep.subr.mxu0 0.0
    %812 = vmatpush1.msra.mxu0 0.0
    %813 = vmatprep.subr.mxu0 0.0
    %814 = vmatpush1.msra.mxu0 0.0
    %815 = vmatprep.subr.mxu0 0.0
    %816 = vmatpush1.msra.mxu0 0.0
    %817 = vmatprep.subr.mxu0 0.0
    %818 = vmatpush1.msra.mxu0 0.0
    %819 = vmatprep.subr.mxu0 0.0
    %820 = vmatpush1.msra.mxu0 0.0
    %821 = vmatprep.subr.mxu0 0.0
    %822 = vmatpush1.msra.mxu0 0.0
    %823 = vmatprep.subr.mxu0 0.0
    %824 = vmatpush1.msra.mxu0 0.0
    %825 = vmatprep.subr.mxu0 0.0
    %826 = vmatpush1.msra.mxu0 0.0
    %827 = vmatprep.subr.mxu0 0.0
    %828 = vmatpush1.msra.mxu0 0.0
    %829 = vmatprep.subr.mxu0 0.0
    %830 = vmatpush1.msra.mxu0 0.0
    %831 = vmatprep.subr.mxu0 0.0
    %832 = vmatpush1.msra.mxu0 0.0
    %833 = vmatprep.subr.mxu0 0.0
    %834 = vmatpush1.msra.mxu0 0.0
    %835 = vmatprep.subr.mxu0 0.0
    %836 = vmatpush1.msra.mxu0 0.0
    %837 = vmatprep.subr.mxu0 0.0
    %838 = vmatpush1.msra.mxu0 0.0
    %839 = vmatprep.subr.mxu0 0.0
    %840 = vmatpush1.msra.mxu0 0.0
    %841 = vmatprep.subr.mxu0 0.0
    %842 = vmatpush1.msra.mxu0 0.0
    %843 = vmatprep.subr.mxu0 0.0
    %844 = vmatpush1.msra.mxu0 0.0
    %845 = vmatprep.mubr.f32.mxu0 0.0
    %846 = vmatmul.mubr.f32.gmra.mrb[0].mxu0 %v776
    %v847 = vpop.f32.mrb[0].mxu0
    %v848 = vadd.f32 %v773, %v847
    %v849 = vpop.f32.mrb[0].mxu0
    %850 = vmatprep.mubr.f32.mxu0 0.0
    %851 = vmatmul.mubr.f32.gmra.mrb[0].mxu0 %v779
    %v852 = vpop.f32.mrb[0].mxu0
    %v853 = vadd.f32 %v773, %v852
    %v854 = vpop.f32.mrb[0].mxu0
    %855 = vdwg.mxu0
    %v857 = vsel %vm260, %v187, 0
    %v860 = vsel %vm260, %v188, 0
    %862 = vmatprep.subr.mxu0 0.0
    %863 = vmatpush1.msra.mxu0 %v848
    %864 = vmatprep.subr.mxu0 0.0
    %865 = vmatpush1.msra.mxu0 %v853
    %866 = vmatprep.subr.mxu0 0.0
    %867 = vmatpush1.msra.mxu0 0.0
    %868 = vmatprep.subr.mxu0 0.0
    %869 = vmatpush1.msra.mxu0 0.0
    %870 = vmatprep.subr.mxu0 0.0
    %871 = vmatpush1.msra.mxu0 0.0
    %872 = vmatprep.subr.mxu0 0.0
    %873 = vmatpush1.msra.mxu0 0.0
    %874 = vmatprep.subr.mxu0 0.0
    %875 = vmatpush1.msra.mxu0 0.0
    %876 = vmatprep.subr.mxu0 0.0
    %877 = vmatpush1.msra.mxu0 0.0
    %878 = vmatprep.subr.mxu0 0.0
    %879 = vmatpush1.msra.mxu0 0.0
    %880 = vmatprep.subr.mxu0 0.0
    %881 = vmatpush1.msra.mxu0 0.0
    %882 = vmatprep.subr.mxu0 0.0
    %883 = vmatpush1.msra.mxu0 0.0
    %884 = vmatprep.subr.mxu0 0.0
    %885 = vmatpush1.msra.mxu0 0.0
    %886 = vmatprep.subr.mxu0 0.0
    %887 = vmatpush1.msra.mxu0 0.0
    %888 = vmatprep.subr.mxu0 0.0
    %889 = vmatpush1.msra.mxu0 0.0
    %890 = vmatprep.subr.mxu0 0.0
    %891 = vmatpush1.msra.mxu0 0.0
    %892 = vmatprep.subr.mxu0 0.0
    %893 = vmatpush1.msra.mxu0 0.0
    %894 = vmatprep.subr.mxu0 0.0
    %895 = vmatpush1.msra.mxu0 0.0
    %896 = vmatprep.subr.mxu0 0.0
    %897 = vmatpush1.msra.mxu0 0.0
    %898 = vmatprep.subr.mxu0 0.0
    %899 = vmatpush1.msra.mxu0 0.0
    %900 = vmatprep.subr.mxu0 0.0
    %901 = vmatpush1.msra.mxu0 0.0
    %902 = vmatprep.subr.mxu0 0.0
    %903 = vmatpush1.msra.mxu0 0.0
    %904 = vmatprep.subr.mxu0 0.0
    %905 = vmatpush1.msra.mxu0 0.0
    %906 = vmatprep.subr.mxu0 0.0
    %907 = vmatpush1.msra.mxu0 0.0
    %908 = vmatprep.subr.mxu0 0.0
    %909 = vmatpush1.msra.mxu0 0.0
    %910 = vmatprep.subr.mxu0 0.0
    %911 = vmatpush1.msra.mxu0 0.0
    %912 = vmatprep.subr.mxu0 0.0
    %913 = vmatpush1.msra.mxu0 0.0
    %914 = vmatprep.subr.mxu0 0.0
    %915 = vmatpush1.msra.mxu0 0.0
    %916 = vmatprep.subr.mxu0 0.0
    %917 = vmatpush1.msra.mxu0 0.0
    %918 = vmatprep.subr.mxu0 0.0
    %919 = vmatpush1.msra.mxu0 0.0
    %920 = vmatprep.subr.mxu0 0.0
    %921 = vmatpush1.msra.mxu0 0.0
    %922 = vmatprep.subr.mxu0 0.0
    %923 = vmatpush1.msra.mxu0 0.0
    %924 = vmatprep.subr.mxu0 0.0
    %925 = vmatpush1.msra.mxu0 0.0
    %926 = vmatprep.mubr.f32.mxu0 0.0
    %927 = vmatmul.mubr.f32.gmra.mrb[0].mxu0 %v857
    %v928 = vpop.f32.mrb[0].mxu0
    %v929 = vadd.f32 0.0, %v928
    %v930 = vpop.f32.mrb[0].mxu0
    %931 = vmatprep.mubr.f32.mxu0 0.0
    %932 = vmatmul.mubr.f32.gmra.mrb[0].mxu0 %v860
    %v933 = vpop.f32.mrb[0].mxu0
    %v934 = vadd.f32 0.0, %v933
    %v935 = vpop.f32.mrb[0].mxu0
    %936 = vdwg.mxu0
    %v938 = vlaneseq
    %v939 = vshrl.u32 %v938, 7
    %v940 = vsub.s32 0, %v939
    %v941 = vrot.slane %v250, %v940
    %v944 = vsel %vm423, %v929, 0
    %v947 = vsel %vm423, %v934, 0
    %949 = vmatprep.subr.mxu0 0.0
    %950 = vmatpush1.msra.mxu0 %v222
    %951 = vmatprep.subr.mxu0 0.0
    %952 = vmatpush1.msra.mxu0 %v223
    %953 = vmatprep.subr.mxu0 0.0
    %954 = vmatpush1.msra.mxu0 %v224
    %955 = vmatprep.subr.mxu0 0.0
    %956 = vmatpush1.msra.mxu0 %v225
    %957 = vmatprep.subr.mxu0 0.0
    %958 = vmatpush1.msra.mxu0 0.0
    %959 = vmatprep.subr.mxu0 0.0
    %960 = vmatpush1.msra.mxu0 0.0
    %961 = vmatprep.subr.mxu0 0.0
    %962 = vmatpush1.msra.mxu0 0.0
    %963 = vmatprep.subr.mxu0 0.0
    %964 = vmatpush1.msra.mxu0 0.0
    %965 = vmatprep.subr.mxu0 0.0
    %966 = vmatpush1.msra.mxu0 0.0
    %967 = vmatprep.subr.mxu0 0.0
    %968 = vmatpush1.msra.mxu0 0.0
    %969 = vmatprep.subr.mxu0 0.0
    %970 = vmatpush1.msra.mxu0 0.0
    %971 = vmatprep.subr.mxu0 0.0
    %972 = vmatpush1.msra.mxu0 0.0
    %973 = vmatprep.subr.mxu0 0.0
    %974 = vmatpush1.msra.mxu0 0.0
    %975 = vmatprep.subr.mxu0 0.0
    %976 = vmatpush1.msra.mxu0 0.0
    %977 = vmatprep.subr.mxu0 0.0
    %978 = vmatpush1.msra.mxu0 0.0
    %979 = vmatprep.subr.mxu0 0.0
    %980 = vmatpush1.msra.mxu0 0.0
    %981 = vmatprep.subr.mxu0 0.0
    %982 = vmatpush1.msra.mxu0 0.0
    %983 = vmatprep.subr.mxu0 0.0
    %984 = vmatpush1.msra.mxu0 0.0
    %985 = vmatprep.subr.mxu0 0.0
    %986 = vmatpush1.msra.mxu0 0.0
    %987 = vmatprep.subr.mxu0 0.0
    %988 = vmatpush1.msra.mxu0 0.0
    %989 = vmatprep.subr.mxu0 0.0
    %990 = vmatpush1.msra.mxu0 0.0
    %991 = vmatprep.subr.mxu0 0.0
    %992 = vmatpush1.msra.mxu0 0.0
    %993 = vmatprep.subr.mxu0 0.0
    %994 = vmatpush1.msra.mxu0 0.0
    %995 = vmatprep.subr.mxu0 0.0
    %996 = vmatpush1.msra.mxu0 0.0
    %997 = vmatprep.subr.mxu0 0.0
    %998 = vmatpush1.msra.mxu0 0.0
    %999 = vmatprep.subr.mxu0 0.0
    %1000 = vmatpush1.msra.mxu0 0.0
    %1001 = vmatprep.subr.mxu0 0.0
    %1002 = vmatpush1.msra.mxu0 0.0
    %1003 = vmatprep.subr.mxu0 0.0
    %1004 = vmatpush1.msra.mxu0 0.0
    %1005 = vmatprep.subr.mxu0 0.0
    %1006 = vmatpush1.msra.mxu0 0.0
    %1007 = vmatprep.subr.mxu0 0.0
    %1008 = vmatpush1.msra.mxu0 0.0
    %1009 = vmatprep.subr.mxu0 0.0
    %1010 = vmatpush1.msra.mxu0 0.0
    %1011 = vmatprep.subr.mxu0 0.0
    %1012 = vmatpush1.msra.mxu0 0.0
    %1013 = vmatprep.mubr.f32.mxu0 0.0
    %1014 = vmatmul.mubr.f32.gmra.mrb[0].mxu0 %v944
    %v1015 = vpop.f32.mrb[0].mxu0
    %v1016 = vadd.f32 %v941, %v1015
    %v1017 = vpop.f32.mrb[0].mxu0
    %1018 = vmatprep.mubr.f32.mxu0 0.0
    %1019 = vmatmul.mubr.f32.gmra.mrb[0].mxu0 %v947
    %v1020 = vpop.f32.mrb[0].mxu0
    %v1021 = vadd.f32 %v941, %v1020
    %v1022 = vpop.f32.mrb[0].mxu0
    %1023 = vdwg.mxu0
    %v1025 = vsel %vm423, 0.0, 0
    %1027 = vmatprep.subr.mxu0 0.0
    %1028 = vmatpush1.msra.mxu0 %v236
    %1029 = vmatprep.subr.mxu0 0.0
    %1030 = vmatpush1.msra.mxu0 %v237
    %1031 = vmatprep.subr.mxu0 0.0
    %1032 = vmatpush1.msra.mxu0 %v238
    %1033 = vmatprep.subr.mxu0 0.0
    %1034 = vmatpush1.msra.mxu0 %v239
    %1035 = vmatprep.subr.mxu0 0.0
    %1036 = vmatpush1.msra.mxu0 0.0
    %1037 = vmatprep.subr.mxu0 0.0
    %1038 = vmatpush1.msra.mxu0 0.0
    %1039 = vmatprep.subr.mxu0 0.0
    %1040 = vmatpush1.msra.mxu0 0.0
    %1041 = vmatprep.subr.mxu0 0.0
    %1042 = vmatpush1.msra.mxu0 0.0
    %1043 = vmatprep.subr.mxu0 0.0
    %1044 = vmatpush1.msra.mxu0 0.0
    %1045 = vmatprep.subr.mxu0 0.0
    %1046 = vmatpush1.msra.mxu0 0.0
    %1047 = vmatprep.subr.mxu0 0.0
    %1048 = vmatpush1.msra.mxu0 0.0
    %1049 = vmatprep.subr.mxu0 0.0
    %1050 = vmatpush1.msra.mxu0 0.0
    %1051 = vmatprep.subr.mxu0 0.0
    %1052 = vmatpush1.msra.mxu0 0.0
    %1053 = vmatprep.subr.mxu0 0.0
    %1054 = vmatpush1.msra.mxu0 0.0
    %1055 = vmatprep.subr.mxu0 0.0
    %1056 = vmatpush1.msra.mxu0 0.0
    %1057 = vmatprep.subr.mxu0 0.0
    %1058 = vmatpush1.msra.mxu0 0.0
    %1059 = vmatprep.subr.mxu0 0.0
    %1060 = vmatpush1.msra.mxu0 0.0
    %1061 = vmatprep.subr.mxu0 0.0
    %1062 = vmatpush1.msra.mxu0 0.0
    %1063 = vmatprep.subr.mxu0 0.0
    %1064 = vmatpush1.msra.mxu0 0.0
    %1065 = vmatprep.subr.mxu0 0.0
    %1066 = vmatpush1.msra.mxu0 0.0
    %1067 = vmatprep.subr.mxu0 0.0
    %1068 = vmatpush1.msra.mxu0 0.0
    %1069 = vmatprep.subr.mxu0 0.0
    %1070 = vmatpush1.msra.mxu0 0.0
    %1071 = vmatprep.subr.mxu0 0.0
    %1072 = vmatpush1.msra.mxu0 0.0
    %1073 = vmatprep.subr.mxu0 0.0
    %1074 = vmatpush1.msra.mxu0 0.0
    %1075 = vmatprep.subr.mxu0 0.0
    %1076 = vmatpush1.msra.mxu0 0.0
    %1077 = vmatprep.subr.mxu0 0.0
    %1078 = vmatpush1.msra.mxu0 0.0
    %1079 = vmatprep.subr.mxu0 0.0
    %1080 = vmatpush1.msra.mxu0 0.0
    %1081 = vmatprep.subr.mxu0 0.0
    %1082 = vmatpush1.msra.mxu0 0.0
    %1083 = vmatprep.subr.mxu0 0.0
    %1084 = vmatpush1.msra.mxu0 0.0
    %1085 = vmatprep.subr.mxu0 0.0
    %1086 = vmatpush1.msra.mxu0 0.0
    %1087 = vmatprep.subr.mxu0 0.0
    %1088 = vmatpush1.msra.mxu0 0.0
    %1089 = vmatprep.subr.mxu0 0.0
    %1090 = vmatpush1.msra.mxu0 0.0
    %1091 = vmatprep.mubr.f32.mxu0 0.0
    %1092 = vmatmul.mubr.f32.gmra.mrb[0].mxu0 %v1025
    %v1093 = vpop.f32.mrb[0].mxu0
    %v1094 = vadd.f32 0.0, %v1093
    %v1095 = vpop.f32.mrb[0].mxu0
    %1096 = vmatprep.mubr.f32.mxu0 0.0
    %1097 = vmatmul.mubr.f32.gmra.mrb[0].mxu0 %v1025
    %v1098 = vpop.f32.mrb[0].mxu0
    %v1099 = vadd.f32 0.0, %v1098
    %v1100 = vpop.f32.mrb[0].mxu0
    %1101 = vdwg.mxu0
    %v1102 = vadd.f32 %v1016, %v1094
    %v1103 = vadd.f32 %v1021, %v1099
    %v1105 = vlaneseq
    %v1106 = vshrl.u32 %v1105, 7
    %v1107 = vsub.s32 0, %v1106
    %v1108 = vrot.slane %v255, %v1107
    %v1110 = vadd.f32 %v1102, %v1108
    %v1111 = vadd.f32 %v1103, %v1108
    %v1112 = vxor.u32 %v1110, 2147483648
    %v1113 = vxor.u32 %v1111, 2147483648
    %v1114 = vmul.f32 %v1112, 1.442695
    %v1115 = vpow.pop %v1114
    %v1116 = vmul.f32 %v1113, 1.442695
    %v1117 = vpow.pop %v1116
    %v1118 = vadd.f32 %v1115, 1.0
    %v1119 = vadd.f32 %v1117, 1.0
    %v1120 = vrcp.pop %v1118
    %v1121 = vmul.f32 1.0, %v1120
    %v1122 = vrcp.pop %v1119
    %v1123 = vmul.f32 1.0, %v1122
    %v1125 = vlaneseq
    %v1126 = vshrl.u32 %v1125, 7
    %v1127 = vsub.s32 0, %v1126
    %v1128 = vrot.slane %v252, %v1127
    %1130 = vmatprep.subr.mxu0 0.0
    %1131 = vmatpush1.msra.mxu0 %v227
    %1132 = vmatprep.subr.mxu0 0.0
    %1133 = vmatpush1.msra.mxu0 %v228
    %1134 = vmatprep.subr.mxu0 0.0
    %1135 = vmatpush1.msra.mxu0 %v229
    %1136 = vmatprep.subr.mxu0 0.0
    %1137 = vmatpush1.msra.mxu0 %v230
    %1138 = vmatprep.subr.mxu0 0.0
    %1139 = vmatpush1.msra.mxu0 0.0
    %1140 = vmatprep.subr.mxu0 0.0
    %1141 = vmatpush1.msra.mxu0 0.0
    %1142 = vmatprep.subr.mxu0 0.0
    %1143 = vmatpush1.msra.mxu0 0.0
    %1144 = vmatprep.subr.mxu0 0.0
    %1145 = vmatpush1.msra.mxu0 0.0
    %1146 = vmatprep.subr.mxu0 0.0
    %1147 = vmatpush1.msra.mxu0 0.0
    %1148 = vmatprep.subr.mxu0 0.0
    %1149 = vmatpush1.msra.mxu0 0.0
    %1150 = vmatprep.subr.mxu0 0.0
    %1151 = vmatpush1.msra.mxu0 0.0
    %1152 = vmatprep.subr.mxu0 0.0
    %1153 = vmatpush1.msra.mxu0 0.0
    %1154 = vmatprep.subr.mxu0 0.0
    %1155 = vmatpush1.msra.mxu0 0.0
    %1156 = vmatprep.subr.mxu0 0.0
    %1157 = vmatpush1.msra.mxu0 0.0
    %1158 = vmatprep.subr.mxu0 0.0
    %1159 = vmatpush1.msra.mxu0 0.0
    %1160 = vmatprep.subr.mxu0 0.0
    %1161 = vmatpush1.msra.mxu0 0.0
    %1162 = vmatprep.subr.mxu0 0.0
    %1163 = vmatpush1.msra.mxu0 0.0
    %1164 = vmatprep.subr.mxu0 0.0
    %1165 = vmatpush1.msra.mxu0 0.0
    %1166 = vmatprep.subr.mxu0 0.0
    %1167 = vmatpush1.msra.mxu0 0.0
    %1168 = vmatprep.subr.mxu0 0.0
    %1169 = vmatpush1.msra.mxu0 0.0
    %1170 = vmatprep.subr.mxu0 0.0
    %1171 = vmatpush1.msra.mxu0 0.0
    %1172 = vmatprep.subr.mxu0 0.0
    %1173 = vmatpush1.msra.mxu0 0.0
    %1174 = vmatprep.subr.mxu0 0.0
    %1175 = vmatpush1.msra.mxu0 0.0
    %1176 = vmatprep.subr.mxu0 0.0
    %1177 = vmatpush1.msra.mxu0 0.0
    %1178 = vmatprep.subr.mxu0 0.0
    %1179 = vmatpush1.msra.mxu0 0.0
    %1180 = vmatprep.subr.mxu0 0.0
    %1181 = vmatpush1.msra.mxu0 0.0
    %1182 = vmatprep.subr.mxu0 0.0
    %1183 = vmatpush1.msra.mxu0 0.0
    %1184 = vmatprep.subr.mxu0 0.0
    %1185 = vmatpush1.msra.mxu0 0.0
    %1186 = vmatprep.subr.mxu0 0.0
    %1187 = vmatpush1.msra.mxu0 0.0
    %1188 = vmatprep.subr.mxu0 0.0
    %1189 = vmatpush1.msra.mxu0 0.0
    %1190 = vmatprep.subr.mxu0 0.0
    %1191 = vmatpush1.msra.mxu0 0.0
    %1192 = vmatprep.subr.mxu0 0.0
    %1193 = vmatpush1.msra.mxu0 0.0
    %1194 = vmatprep.mubr.f32.mxu0 0.0
    %1195 = vmatmul.mubr.f32.gmra.mrb[0].mxu0 %v944
    %v1196 = vpop.f32.mrb[0].mxu0
    %v1197 = vadd.f32 %v1128, %v1196
    %v1198 = vpop.f32.mrb[0].mxu0
    %1199 = vmatprep.mubr.f32.mxu0 0.0
    %1200 = vmatmul.mubr.f32.gmra.mrb[0].mxu0 %v947
    %v1201 = vpop.f32.mrb[0].mxu0
    %v1202 = vadd.f32 %v1128, %v1201
    %v1203 = vpop.f32.mrb[0].mxu0
    %1204 = vdwg.mxu0
    %1205 = vmatprep.subr.mxu0 0.0
    %1206 = vmatpush1.msra.mxu0 %v241
    %1207 = vmatprep.subr.mxu0 0.0
    %1208 = vmatpush1.msra.mxu0 %v242
    %1209 = vmatprep.subr.mxu0 0.0
    %1210 = vmatpush1.msra.mxu0 %v243
    %1211 = vmatprep.subr.mxu0 0.0
    %1212 = vmatpush1.msra.mxu0 %v244
    %1213 = vmatprep.subr.mxu0 0.0
    %1214 = vmatpush1.msra.mxu0 0.0
    %1215 = vmatprep.subr.mxu0 0.0
    %1216 = vmatpush1.msra.mxu0 0.0
    %1217 = vmatprep.subr.mxu0 0.0
    %1218 = vmatpush1.msra.mxu0 0.0
    %1219 = vmatprep.subr.mxu0 0.0
    %1220 = vmatpush1.msra.mxu0 0.0
    %1221 = vmatprep.subr.mxu0 0.0
    %1222 = vmatpush1.msra.mxu0 0.0
    %1223 = vmatprep.subr.mxu0 0.0
    %1224 = vmatpush1.msra.mxu0 0.0
    %1225 = vmatprep.subr.mxu0 0.0
    %1226 = vmatpush1.msra.mxu0 0.0
    %1227 = vmatprep.subr.mxu0 0.0
    %1228 = vmatpush1.msra.mxu0 0.0
    %1229 = vmatprep.subr.mxu0 0.0
    %1230 = vmatpush1.msra.mxu0 0.0
    %1231 = vmatprep.subr.mxu0 0.0
    %1232 = vmatpush1.msra.mxu0 0.0
    %1233 = vmatprep.subr.mxu0 0.0
    %1234 = vmatpush1.msra.mxu0 0.0
    %1235 = vmatprep.subr.mxu0 0.0
    %1236 = vmatpush1.msra.mxu0 0.0
    %1237 = vmatprep.subr.mxu0 0.0
    %1238 = vmatpush1.msra.mxu0 0.0
    %1239 = vmatprep.subr.mxu0 0.0
    %1240 = vmatpush1.msra.mxu0 0.0
    %1241 = vmatprep.subr.mxu0 0.0
    %1242 = vmatpush1.msra.mxu0 0.0
    %1243 = vmatprep.subr.mxu0 0.0
    %1244 = vmatpush1.msra.mxu0 0.0
    %1245 = vmatprep.subr.mxu0 0.0
    %1246 = vmatpush1.msra.mxu0 0.0
    %1247 = vmatprep.subr.mxu0 0.0
    %1248 = vmatpush1.msra.mxu0 0.0
    %1249 = vmatprep.subr.mxu0 0.0
    %1250 = vmatpush1.msra.mxu0 0.0
    %1251 = vmatprep.subr.mxu0 0.0
    %1252 = vmatpush1.msra.mxu0 0.0
    %1253 = vmatprep.subr.mxu0 0.0
    %1254 = vmatpush1.msra.mxu0 0.0
    %1255 = vmatprep.subr.mxu0 0.0
    %1256 = vmatpush1.msra.mxu0 0.0
    %1257 = vmatprep.subr.mxu0 0.0
    %1258 = vmatpush1.msra.mxu0 0.0
    %1259 = vmatprep.subr.mxu0 0.0
    %1260 = vmatpush1.msra.mxu0 0.0
    %1261 = vmatprep.subr.mxu0 0.0
    %1262 = vmatpush1.msra.mxu0 0.0
    %1263 = vmatprep.subr.mxu0 0.0
    %1264 = vmatpush1.msra.mxu0 0.0
    %1265 = vmatprep.subr.mxu0 0.0
    %1266 = vmatpush1.msra.mxu0 0.0
    %1267 = vmatprep.subr.mxu0 0.0
    %1268 = vmatpush1.msra.mxu0 0.0
    %1269 = vmatprep.mubr.f32.mxu0 0.0
    %1270 = vmatmul.mubr.f32.gmra.mrb[0].mxu0 %v1025
    %v1271 = vpop.f32.mrb[0].mxu0
    %v1272 = vadd.f32 0.0, %v1271
    %v1273 = vpop.f32.mrb[0].mxu0
    %1274 = vmatprep.mubr.f32.mxu0 0.0
    %1275 = vmatmul.mubr.f32.gmra.mrb[0].mxu0 %v1025
    %v1276 = vpop.f32.mrb[0].mxu0
    %v1277 = vadd.f32 0.0, %v1276
    %v1278 = vpop.f32.mrb[0].mxu0
    %1279 = vdwg.mxu0
    %v1280 = vadd.f32 %v1197, %v1272
    %v1281 = vadd.f32 %v1202, %v1277
    %v1283 = vlaneseq
    %v1284 = vshrl.u32 %v1283, 7
    %v1285 = vsub.s32 0, %v1284
    %v1286 = vrot.slane %v257, %v1285
    %v1288 = vadd.f32 %v1280, %v1286
    %v1289 = vadd.f32 %v1281, %v1286
    %v1290 = vxor.u32 %v1288, 2147483648
    %v1291 = vxor.u32 %v1289, 2147483648
    %v1292 = vmul.f32 %v1290, 1.442695
    %v1293 = vpow.pop %v1292
    %v1294 = vmul.f32 %v1291, 1.442695
    %v1295 = vpow.pop %v1294
    %v1296 = vadd.f32 %v1293, 1.0
    %v1297 = vadd.f32 %v1295, 1.0
    %v1298 = vrcp.pop %v1296
    %v1299 = vmul.f32 1.0, %v1298
    %v1300 = vrcp.pop %v1297
    %v1301 = vmul.f32 1.0, %v1300
    %v1303 = vlaneseq
    %v1304 = vshrl.u32 %v1303, 7
    %v1305 = vsub.s32 0, %v1304
    %v1306 = vrot.slane %v254, %v1305
    %1308 = vmatprep.subr.mxu0 0.0
    %1309 = vmatpush1.msra.mxu0 %v232
    %1310 = vmatprep.subr.mxu0 0.0
    %1311 = vmatpush1.msra.mxu0 %v233
    %1312 = vmatprep.subr.mxu0 0.0
    %1313 = vmatpush1.msra.mxu0 %v234
    %1314 = vmatprep.subr.mxu0 0.0
    %1315 = vmatpush1.msra.mxu0 %v235
    %1316 = vmatprep.subr.mxu0 0.0
    %1317 = vmatpush1.msra.mxu0 0.0
    %1318 = vmatprep.subr.mxu0 0.0
    %1319 = vmatpush1.msra.mxu0 0.0
    %1320 = vmatprep.subr.mxu0 0.0
    %1321 = vmatpush1.msra.mxu0 0.0
    %1322 = vmatprep.subr.mxu0 0.0
    %1323 = vmatpush1.msra.mxu0 0.0
    %1324 = vmatprep.subr.mxu0 0.0
    %1325 = vmatpush1.msra.mxu0 0.0
    %1326 = vmatprep.subr.mxu0 0.0
    %1327 = vmatpush1.msra.mxu0 0.0
    %1328 = vmatprep.subr.mxu0 0.0
    %1329 = vmatpush1.msra.mxu0 0.0
    %1330 = vmatprep.subr.mxu0 0.0
    %1331 = vmatpush1.msra.mxu0 0.0
    %1332 = vmatprep.subr.mxu0 0.0
    %1333 = vmatpush1.msra.mxu0 0.0
    %1334 = vmatprep.subr.mxu0 0.0
    %1335 = vmatpush1.msra.mxu0 0.0
    %1336 = vmatprep.subr.mxu0 0.0
    %1337 = vmatpush1.msra.mxu0 0.0
    %1338 = vmatprep.subr.mxu0 0.0
    %1339 = vmatpush1.msra.mxu0 0.0
    %1340 = vmatprep.subr.mxu0 0.0
    %1341 = vmatpush1.msra.mxu0 0.0
    %1342 = vmatprep.subr.mxu0 0.0
    %1343 = vmatpush1.msra.mxu0 0.0
    %1344 = vmatprep.subr.mxu0 0.0
    %1345 = vmatpush1.msra.mxu0 0.0
    %1346 = vmatprep.subr.mxu0 0.0
    %1347 = vmatpush1.msra.mxu0 0.0
    %1348 = vmatprep.subr.mxu0 0.0
    %1349 = vmatpush1.msra.mxu0 0.0
    %1350 = vmatprep.subr.mxu0 0.0
    %1351 = vmatpush1.msra.mxu0 0.0
    %1352 = vmatprep.subr.mxu0 0.0
    %1353 = vmatpush1.msra.mxu0 0.0
    %1354 = vmatprep.subr.mxu0 0.0
    %1355 = vmatpush1.msra.mxu0 0.0
    %1356 = vmatprep.subr.mxu0 0.0
    %1357 = vmatpush1.msra.mxu0 0.0
    %1358 = vmatprep.subr.mxu0 0.0
    %1359 = vmatpush1.msra.mxu0 0.0
    %1360 = vmatprep.subr.mxu0 0.0
    %1361 = vmatpush1.msra.mxu0 0.0
    %1362 = vmatprep.subr.mxu0 0.0
    %1363 = vmatpush1.msra.mxu0 0.0
    %1364 = vmatprep.subr.mxu0 0.0
    %1365 = vmatpush1.msra.mxu0 0.0
    %1366 = vmatprep.subr.mxu0 0.0
    %1367 = vmatpush1.msra.mxu0 0.0
    %1368 = vmatprep.subr.mxu0 0.0
    %1369 = vmatpush1.msra.mxu0 0.0
    %1370 = vmatprep.subr.mxu0 0.0
    %1371 = vmatpush1.msra.mxu0 0.0
    %1372 = vmatprep.mubr.f32.mxu0 0.0
    %1373 = vmatmul.mubr.f32.gmra.mrb[0].mxu0 %v944
    %v1374 = vpop.f32.mrb[0].mxu0
    %v1375 = vadd.f32 %v1306, %v1374
    %v1376 = vpop.f32.mrb[0].mxu0
    %1377 = vmatprep.mubr.f32.mxu0 0.0
    %1378 = vmatmul.mubr.f32.gmra.mrb[0].mxu0 %v947
    %v1379 = vpop.f32.mrb[0].mxu0
    %v1380 = vadd.f32 %v1306, %v1379
    %v1381 = vpop.f32.mrb[0].mxu0
    %1382 = vdwg.mxu0
    %v1384 = vlaneseq
    %v1385 = vshrl.u32 %v1384, 7
    %v1386 = vsub.s32 0, %v1385
    %v1387 = vrot.slane %v259, %v1386
    %1389 = vmatprep.subr.mxu0 0.0
    %1390 = vmatpush1.msra.mxu0 %v246
    %1391 = vmatprep.subr.mxu0 0.0
    %1392 = vmatpush1.msra.mxu0 %v247
    %1393 = vmatprep.subr.mxu0 0.0
    %1394 = vmatpush1.msra.mxu0 %v248
    %1395 = vmatprep.subr.mxu0 0.0
    %1396 = vmatpush1.msra.mxu0 %v249
    %1397 = vmatprep.subr.mxu0 0.0
    %1398 = vmatpush1.msra.mxu0 0.0
    %1399 = vmatprep.subr.mxu0 0.0
    %1400 = vmatpush1.msra.mxu0 0.0
    %1401 = vmatprep.subr.mxu0 0.0
    %1402 = vmatpush1.msra.mxu0 0.0
    %1403 = vmatprep.subr.mxu0 0.0
    %1404 = vmatpush1.msra.mxu0 0.0
    %1405 = vmatprep.subr.mxu0 0.0
    %1406 = vmatpush1.msra.mxu0 0.0
    %1407 = vmatprep.subr.mxu0 0.0
    %1408 = vmatpush1.msra.mxu0 0.0
    %1409 = vmatprep.subr.mxu0 0.0
    %1410 = vmatpush1.msra.mxu0 0.0
    %1411 = vmatprep.subr.mxu0 0.0
    %1412 = vmatpush1.msra.mxu0 0.0
    %1413 = vmatprep.subr.mxu0 0.0
    %1414 = vmatpush1.msra.mxu0 0.0
    %1415 = vmatprep.subr.mxu0 0.0
    %1416 = vmatpush1.msra.mxu0 0.0
    %1417 = vmatprep.subr.mxu0 0.0
    %1418 = vmatpush1.msra.mxu0 0.0
    %1419 = vmatprep.subr.mxu0 0.0
    %1420 = vmatpush1.msra.mxu0 0.0
    %1421 = vmatprep.subr.mxu0 0.0
    %1422 = vmatpush1.msra.mxu0 0.0
    %1423 = vmatprep.subr.mxu0 0.0
    %1424 = vmatpush1.msra.mxu0 0.0
    %1425 = vmatprep.subr.mxu0 0.0
    %1426 = vmatpush1.msra.mxu0 0.0
    %1427 = vmatprep.subr.mxu0 0.0
    %1428 = vmatpush1.msra.mxu0 0.0
    %1429 = vmatprep.subr.mxu0 0.0
    %1430 = vmatpush1.msra.mxu0 0.0
    %1431 = vmatprep.subr.mxu0 0.0
    %1432 = vmatpush1.msra.mxu0 0.0
    %1433 = vmatprep.subr.mxu0 0.0
    %1434 = vmatpush1.msra.mxu0 0.0
    %1435 = vmatprep.subr.mxu0 0.0
    %1436 = vmatpush1.msra.mxu0 0.0
    %1437 = vmatprep.subr.mxu0 0.0
    %1438 = vmatpush1.msra.mxu0 0.0
    %1439 = vmatprep.subr.mxu0 0.0
    %1440 = vmatpush1.msra.mxu0 0.0
    %1441 = vmatprep.subr.mxu0 0.0
    %1442 = vmatpush1.msra.mxu0 0.0
    %1443 = vmatprep.subr.mxu0 0.0
    %1444 = vmatpush1.msra.mxu0 0.0
    %1445 = vmatprep.subr.mxu0 0.0
    %1446 = vmatpush1.msra.mxu0 0.0
    %1447 = vmatprep.subr.mxu0 0.0
    %1448 = vmatpush1.msra.mxu0 0.0
    %1449 = vmatprep.subr.mxu0 0.0
    %1450 = vmatpush1.msra.mxu0 0.0
    %1451 = vmatprep.subr.mxu0 0.0
    %1452 = vmatpush1.msra.mxu0 0.0
    %1453 = vmatprep.mubr.f32.mxu0 0.0
    %1454 = vmatmul.mubr.f32.gmra.mrb[0].mxu0 %v1025
    %v1455 = vpop.f32.mrb[0].mxu0
    %v1456 = vadd.f32 %v1387, %v1455
    %v1457 = vpop.f32.mrb[0].mxu0
    %1458 = vmatprep.mubr.f32.mxu0 0.0
    %1459 = vmatmul.mubr.f32.gmra.mrb[0].mxu0 %v1025
    %v1460 = vpop.f32.mrb[0].mxu0
    %v1461 = vadd.f32 %v1387, %v1460
    %v1462 = vpop.f32.mrb[0].mxu0
    %1463 = vdwg.mxu0
    %v1464 = vmul.f32 %v1121, %v1456
    %v1465 = vmul.f32 %v1123, %v1461
    %v1466 = vadd.f32 %v1375, %v1464
    %v1467 = vadd.f32 %v1380, %v1465
    %v1468 = vtanh.pop %v1466
    %v1469 = vtanh.pop %v1467
    %v1470 = vsub.f32 1.0, %v1299
    %v1471 = vsub.f32 1.0, %v1301
    %v1472 = vmul.f32 %v1470, %v1468
    %v1473 = vmul.f32 %v1471, %v1469
    %v1474 = vmul.f32 %v1299, 0.0
    %v1475 = vmul.f32 %v1301, 0.0
    %v1476 = vadd.f32 %v1472, %v1474
    %v1477 = vadd.f32 %v1473, %v1475
    %1478 = vmatprep.subr.mxu0 0.0
    %1479 = vmatpush1.msra.mxu0 %v1476
    %1480 = vmatprep.subr.mxu0 0.0
    %1481 = vmatpush1.msra.mxu0 %v1477
    %1482 = vmatprep.subr.mxu0 0.0
    %1483 = vmatpush1.msra.mxu0 0.0
    %1484 = vmatprep.subr.mxu0 0.0
    %1485 = vmatpush1.msra.mxu0 0.0
    %1486 = vmatprep.subr.mxu0 0.0
    %1487 = vmatpush1.msra.mxu0 0.0
    %1488 = vmatprep.subr.mxu0 0.0
    %1489 = vmatpush1.msra.mxu0 0.0
    %1490 = vmatprep.subr.mxu0 0.0
    %1491 = vmatpush1.msra.mxu0 0.0
    %1492 = vmatprep.subr.mxu0 0.0
    %1493 = vmatpush1.msra.mxu0 0.0
    %1494 = vmatprep.subr.mxu0 0.0
    %1495 = vmatpush1.msra.mxu0 0.0
    %1496 = vmatprep.subr.mxu0 0.0
    %1497 = vmatpush1.msra.mxu0 0.0
    %1498 = vmatprep.subr.mxu0 0.0
    %1499 = vmatpush1.msra.mxu0 0.0
    %1500 = vmatprep.subr.mxu0 0.0
    %1501 = vmatpush1.msra.mxu0 0.0
    %1502 = vmatprep.subr.mxu0 0.0
    %1503 = vmatpush1.msra.mxu0 0.0
    %1504 = vmatprep.subr.mxu0 0.0
    %1505 = vmatpush1.msra.mxu0 0.0
    %1506 = vmatprep.subr.mxu0 0.0
    %1507 = vmatpush1.msra.mxu0 0.0
    %1508 = vmatprep.subr.mxu0 0.0
    %1509 = vmatpush1.msra.mxu0 0.0
    %1510 = vmatprep.subr.mxu0 0.0
    %1511 = vmatpush1.msra.mxu0 0.0
    %1512 = vmatprep.subr.mxu0 0.0
    %1513 = vmatpush1.msra.mxu0 0.0
    %1514 = vmatprep.subr.mxu0 0.0
    %1515 = vmatpush1.msra.mxu0 0.0
    %1516 = vmatprep.subr.mxu0 0.0
    %1517 = vmatpush1.msra.mxu0 0.0
    %1518 = vmatprep.subr.mxu0 0.0
    %1519 = vmatpush1.msra.mxu0 0.0
    %1520 = vmatprep.subr.mxu0 0.0
    %1521 = vmatpush1.msra.mxu0 0.0
    %1522 = vmatprep.subr.mxu0 0.0
    %1523 = vmatpush1.msra.mxu0 0.0
    %1524 = vmatprep.subr.mxu0 0.0
    %1525 = vmatpush1.msra.mxu0 0.0
    %1526 = vmatprep.subr.mxu0 0.0
    %1527 = vmatpush1.msra.mxu0 0.0
    %1528 = vmatprep.subr.mxu0 0.0
    %1529 = vmatpush1.msra.mxu0 0.0
    %1530 = vmatprep.subr.mxu0 0.0
    %1531 = vmatpush1.msra.mxu0 0.0
    %1532 = vmatprep.subr.mxu0 0.0
    %1533 = vmatpush1.msra.mxu0 0.0
    %1534 = vmatprep.subr.mxu0 0.0
    %1535 = vmatpush1.msra.mxu0 0.0
    %1536 = vmatprep.subr.mxu0 0.0
    %1537 = vmatpush1.msra.mxu0 0.0
    %1538 = vmatprep.subr.mxu0 0.0
    %1539 = vmatpush1.msra.mxu0 0.0
    %1540 = vmatprep.subr.mxu0 0.0
    %1541 = vmatpush1.msra.mxu0 0.0
    %1542 = vmatprep.mubr.f32.mxu0 0.0
    %1543 = vmatmul.mubr.f32.gmra.mrb[0].mxu0 %v262
    %v1544 = vpop.f32.mrb[0].mxu0
    %v1545 = vadd.f32 0.0, %v1544
    %v1546 = vpop.f32.mrb[0].mxu0
    %1547 = vmatprep.mubr.f32.mxu0 0.0
    %1548 = vmatmul.mubr.f32.gmra.mrb[0].mxu0 %v265
    %v1549 = vpop.f32.mrb[0].mxu0
    %v1550 = vadd.f32 0.0, %v1549
    %v1551 = vpop.f32.mrb[0].mxu0
    %1552 = vdwg.mxu0
    %1553 = vmatprep.subr.mxu0 0.0
    %1554 = vmatpush1.msra.mxu0 %v1476
    %1555 = vmatprep.subr.mxu0 0.0
    %1556 = vmatpush1.msra.mxu0 %v1477
    %1557 = vmatprep.subr.mxu0 0.0
    %1558 = vmatpush1.msra.mxu0 0.0
    %1559 = vmatprep.subr.mxu0 0.0
    %1560 = vmatpush1.msra.mxu0 0.0
    %1561 = vmatprep.subr.mxu0 0.0
    %1562 = vmatpush1.msra.mxu0 0.0
    %1563 = vmatprep.subr.mxu0 0.0
    %1564 = vmatpush1.msra.mxu0 0.0
    %1565 = vmatprep.subr.mxu0 0.0
    %1566 = vmatpush1.msra.mxu0 0.0
    %1567 = vmatprep.subr.mxu0 0.0
    %1568 = vmatpush1.msra.mxu0 0.0
    %1569 = vmatprep.subr.mxu0 0.0
    %1570 = vmatpush1.msra.mxu0 0.0
    %1571 = vmatprep.subr.mxu0 0.0
    %1572 = vmatpush1.msra.mxu0 0.0
    %1573 = vmatprep.subr.mxu0 0.0
    %1574 = vmatpush1.msra.mxu0 0.0
    %1575 = vmatprep.subr.mxu0 0.0
    %1576 = vmatpush1.msra.mxu0 0.0
    %1577 = vmatprep.subr.mxu0 0.0
    %1578 = vmatpush1.msra.mxu0 0.0
    %1579 = vmatprep.subr.mxu0 0.0
    %1580 = vmatpush1.msra.mxu0 0.0
    %1581 = vmatprep.subr.mxu0 0.0
    %1582 = vmatpush1.msra.mxu0 0.0
    %1583 = vmatprep.subr.mxu0 0.0
    %1584 = vmatpush1.msra.mxu0 0.0
    %1585 = vmatprep.subr.mxu0 0.0
    %1586 = vmatpush1.msra.mxu0 0.0
    %1587 = vmatprep.subr.mxu0 0.0
    %1588 = vmatpush1.msra.mxu0 0.0
    %1589 = vmatprep.subr.mxu0 0.0
    %1590 = vmatpush1.msra.mxu0 0.0
    %1591 = vmatprep.subr.mxu0 0.0
    %1592 = vmatpush1.msra.mxu0 0.0
    %1593 = vmatprep.subr.mxu0 0.0
    %1594 = vmatpush1.msra.mxu0 0.0
    %1595 = vmatprep.subr.mxu0 0.0
    %1596 = vmatpush1.msra.mxu0 0.0
    %1597 = vmatprep.subr.mxu0 0.0
    %1598 = vmatpush1.msra.mxu0 0.0
    %1599 = vmatprep.subr.mxu0 0.0
    %1600 = vmatpush1.msra.mxu0 0.0
    %1601 = vmatprep.subr.mxu0 0.0
    %1602 = vmatpush1.msra.mxu0 0.0
    %1603 = vmatprep.subr.mxu0 0.0
    %1604 = vmatpush1.msra.mxu0 0.0
    %1605 = vmatprep.subr.mxu0 0.0
    %1606 = vmatpush1.msra.mxu0 0.0
    %1607 = vmatprep.subr.mxu0 0.0
    %1608 = vmatpush1.msra.mxu0 0.0
    %1609 = vmatprep.subr.mxu0 0.0
    %1610 = vmatpush1.msra.mxu0 0.0
    %1611 = vmatprep.subr.mxu0 0.0
    %1612 = vmatpush1.msra.mxu0 0.0
    %1613 = vmatprep.subr.mxu0 0.0
    %1614 = vmatpush1.msra.mxu0 0.0
    %1615 = vmatprep.subr.mxu0 0.0
    %1616 = vmatpush1.msra.mxu0 0.0
    %1617 = vmatprep.mubr.f32.mxu0 0.0
    %1618 = vmatmul.mubr.f32.gmra.mrb[0].mxu0 %v343
    %v1619 = vpop.f32.mrb[0].mxu0
    %v1620 = vadd.f32 0.0, %v1619
    %v1621 = vpop.f32.mrb[0].mxu0
    %1622 = vmatprep.mubr.f32.mxu0 0.0
    %1623 = vmatmul.mubr.f32.gmra.mrb[0].mxu0 %v346
    %v1624 = vpop.f32.mrb[0].mxu0
    %v1625 = vadd.f32 0.0, %v1624
    %v1626 = vpop.f32.mrb[0].mxu0
    %1627 = vdwg.mxu0
    %v1629 = vsel %vm423, %v1620, 0
    %v1632 = vsel %vm423, %v1625, 0
    %1634 = vmatprep.subr.mxu0 0.0
    %1635 = vmatpush1.msra.mxu0 %v197
    %1636 = vmatprep.subr.mxu0 0.0
    %1637 = vmatpush1.msra.mxu0 %v198
    %1638 = vmatprep.subr.mxu0 0.0
    %1639 = vmatpush1.msra.mxu0 %v199
    %1640 = vmatprep.subr.mxu0 0.0
    %1641 = vmatpush1.msra.mxu0 %v200
    %1642 = vmatprep.subr.mxu0 0.0
    %1643 = vmatpush1.msra.mxu0 0.0
    %1644 = vmatprep.subr.mxu0 0.0
    %1645 = vmatpush1.msra.mxu0 0.0
    %1646 = vmatprep.subr.mxu0 0.0
    %1647 = vmatpush1.msra.mxu0 0.0
    %1648 = vmatprep.subr.mxu0 0.0
    %1649 = vmatpush1.msra.mxu0 0.0
    %1650 = vmatprep.subr.mxu0 0.0
    %1651 = vmatpush1.msra.mxu0 0.0
    %1652 = vmatprep.subr.mxu0 0.0
    %1653 = vmatpush1.msra.mxu0 0.0
    %1654 = vmatprep.subr.mxu0 0.0
    %1655 = vmatpush1.msra.mxu0 0.0
    %1656 = vmatprep.subr.mxu0 0.0
    %1657 = vmatpush1.msra.mxu0 0.0
    %1658 = vmatprep.subr.mxu0 0.0
    %1659 = vmatpush1.msra.mxu0 0.0
    %1660 = vmatprep.subr.mxu0 0.0
    %1661 = vmatpush1.msra.mxu0 0.0
    %1662 = vmatprep.subr.mxu0 0.0
    %1663 = vmatpush1.msra.mxu0 0.0
    %1664 = vmatprep.subr.mxu0 0.0
    %1665 = vmatpush1.msra.mxu0 0.0
    %1666 = vmatprep.subr.mxu0 0.0
    %1667 = vmatpush1.msra.mxu0 0.0
    %1668 = vmatprep.subr.mxu0 0.0
    %1669 = vmatpush1.msra.mxu0 0.0
    %1670 = vmatprep.subr.mxu0 0.0
    %1671 = vmatpush1.msra.mxu0 0.0
    %1672 = vmatprep.subr.mxu0 0.0
    %1673 = vmatpush1.msra.mxu0 0.0
    %1674 = vmatprep.subr.mxu0 0.0
    %1675 = vmatpush1.msra.mxu0 0.0
    %1676 = vmatprep.subr.mxu0 0.0
    %1677 = vmatpush1.msra.mxu0 0.0
    %1678 = vmatprep.subr.mxu0 0.0
    %1679 = vmatpush1.msra.mxu0 0.0
    %1680 = vmatprep.subr.mxu0 0.0
    %1681 = vmatpush1.msra.mxu0 0.0
    %1682 = vmatprep.subr.mxu0 0.0
    %1683 = vmatpush1.msra.mxu0 0.0
    %1684 = vmatprep.subr.mxu0 0.0
    %1685 = vmatpush1.msra.mxu0 0.0
    %1686 = vmatprep.subr.mxu0 0.0
    %1687 = vmatpush1.msra.mxu0 0.0
    %1688 = vmatprep.subr.mxu0 0.0
    %1689 = vmatpush1.msra.mxu0 0.0
    %1690 = vmatprep.subr.mxu0 0.0
    %1691 = vmatpush1.msra.mxu0 0.0
    %1692 = vmatprep.subr.mxu0 0.0
    %1693 = vmatpush1.msra.mxu0 0.0
    %1694 = vmatprep.subr.mxu0 0.0
    %1695 = vmatpush1.msra.mxu0 0.0
    %1696 = vmatprep.subr.mxu0 0.0
    %1697 = vmatpush1.msra.mxu0 0.0
    %1698 = vmatprep.mubr.f32.mxu0 0.0
    %1699 = vmatmul.mubr.f32.gmra.mrb[0].mxu0 %v1629
    %v1700 = vpop.f32.mrb[0].mxu0
    %v1701 = vadd.f32 0.0, %v1700
    %v1702 = vpop.f32.mrb[0].mxu0
    %1703 = vmatprep.mubr.f32.mxu0 0.0
    %1704 = vmatmul.mubr.f32.gmra.mrb[0].mxu0 %v1632
    %v1705 = vpop.f32.mrb[0].mxu0
    %v1706 = vadd.f32 0.0, %v1705
    %v1707 = vpop.f32.mrb[0].mxu0
    %1708 = vdwg.mxu0
    %v1710 = vsel %vm423, %v1545, 0
    %v1713 = vsel %vm423, %v1550, 0
    %1715 = vmatprep.subr.mxu0 0.0
    %1716 = vmatpush1.msra.mxu0 %v193
    %1717 = vmatprep.subr.mxu0 0.0
    %1718 = vmatpush1.msra.mxu0 %v194
    %1719 = vmatprep.subr.mxu0 0.0
    %1720 = vmatpush1.msra.mxu0 %v195
    %1721 = vmatprep.subr.mxu0 0.0
    %1722 = vmatpush1.msra.mxu0 %v196
    %1723 = vmatprep.subr.mxu0 0.0
    %1724 = vmatpush1.msra.mxu0 0.0
    %1725 = vmatprep.subr.mxu0 0.0
    %1726 = vmatpush1.msra.mxu0 0.0
    %1727 = vmatprep.subr.mxu0 0.0
    %1728 = vmatpush1.msra.mxu0 0.0
    %1729 = vmatprep.subr.mxu0 0.0
    %1730 = vmatpush1.msra.mxu0 0.0
    %1731 = vmatprep.subr.mxu0 0.0
    %1732 = vmatpush1.msra.mxu0 0.0
    %1733 = vmatprep.subr.mxu0 0.0
    %1734 = vmatpush1.msra.mxu0 0.0
    %1735 = vmatprep.subr.mxu0 0.0
    %1736 = vmatpush1.msra.mxu0 0.0
    %1737 = vmatprep.subr.mxu0 0.0
    %1738 = vmatpush1.msra.mxu0 0.0
    %1739 = vmatprep.subr.mxu0 0.0
    %1740 = vmatpush1.msra.mxu0 0.0
    %1741 = vmatprep.subr.mxu0 0.0
    %1742 = vmatpush1.msra.mxu0 0.0
    %1743 = vmatprep.subr.mxu0 0.0
    %1744 = vmatpush1.msra.mxu0 0.0
    %1745 = vmatprep.subr.mxu0 0.0
    %1746 = vmatpush1.msra.mxu0 0.0
    %1747 = vmatprep.subr.mxu0 0.0
    %1748 = vmatpush1.msra.mxu0 0.0
    %1749 = vmatprep.subr.mxu0 0.0
    %1750 = vmatpush1.msra.mxu0 0.0
    %1751 = vmatprep.subr.mxu0 0.0
    %1752 = vmatpush1.msra.mxu0 0.0
    %1753 = vmatprep.subr.mxu0 0.0
    %1754 = vmatpush1.msra.mxu0 0.0
    %1755 = vmatprep.subr.mxu0 0.0
    %1756 = vmatpush1.msra.mxu0 0.0
    %1757 = vmatprep.subr.mxu0 0.0
    %1758 = vmatpush1.msra.mxu0 0.0
    %1759 = vmatprep.subr.mxu0 0.0
    %1760 = vmatpush1.msra.mxu0 0.0
    %1761 = vmatprep.subr.mxu0 0.0
    %1762 = vmatpush1.msra.mxu0 0.0
    %1763 = vmatprep.subr.mxu0 0.0
    %1764 = vmatpush1.msra.mxu0 0.0
    %1765 = vmatprep.subr.mxu0 0.0
    %1766 = vmatpush1.msra.mxu0 0.0
    %1767 = vmatprep.subr.mxu0 0.0
    %1768 = vmatpush1.msra.mxu0 0.0
    %1769 = vmatprep.subr.mxu0 0.0
    %1770 = vmatpush1.msra.mxu0 0.0
    %1771 = vmatprep.subr.mxu0 0.0
    %1772 = vmatpush1.msra.mxu0 0.0
    %1773 = vmatprep.subr.mxu0 0.0
    %1774 = vmatpush1.msra.mxu0 0.0
    %1775 = vmatprep.subr.mxu0 0.0
    %1776 = vmatpush1.msra.mxu0 0.0
    %1777 = vmatprep.subr.mxu0 0.0
    %1778 = vmatpush1.msra.mxu0 0.0
    %1779 = vmatprep.mubr.f32.mxu0 0.0
    %1780 = vmatmul.mubr.f32.gmra.mrb[0].mxu0 %v1710
    %v1781 = vpop.f32.mrb[0].mxu0
    %v1782 = vadd.f32 %v1701, %v1781
    %v1783 = vpop.f32.mrb[0].mxu0
    %1784 = vmatprep.mubr.f32.mxu0 0.0
    %1785 = vmatmul.mubr.f32.gmra.mrb[0].mxu0 %v1713
    %v1786 = vpop.f32.mrb[0].mxu0
    %v1787 = vadd.f32 %v1706, %v1786
    %v1788 = vpop.f32.mrb[0].mxu0
    %1789 = vdwg.mxu0
    %v1790 = vadd.f32 %v1782, %v659
    %v1791 = vadd.f32 %v1787, %v664
    %v1792 = vadd.f32 %v1790, %v673
    %v1793 = vadd.f32 %v1791, %v673
    %v1794 = vmax.f32 %v1792, 0.0
    %v1795 = vmax.f32 %v1793, 0.0
    %v1797 = vsel %vm685, %v1794, 0
    %v1800 = vsel %vm685, %v1795, 0
    %1802 = vmatprep.subr.mxu0 0.0
    %1803 = vmatpush1.msra.mxu0 %v204
    %1804 = vmatprep.subr.mxu0 0.0
    %1805 = vmatpush1.msra.mxu0 %v205
    %1806 = vmatprep.subr.mxu0 0.0
    %1807 = vmatpush1.msra.mxu0 %v206
    %1808 = vmatprep.subr.mxu0 0.0
    %1809 = vmatpush1.msra.mxu0 %v207
    %1810 = vmatprep.subr.mxu0 0.0
    %1811 = vmatpush1.msra.mxu0 %v208
    %1812 = vmatprep.subr.mxu0 0.0
    %1813 = vmatpush1.msra.mxu0 %v209
    %1814 = vmatprep.subr.mxu0 0.0
    %1815 = vmatpush1.msra.mxu0 %v210
    %1816 = vmatprep.subr.mxu0 0.0
    %1817 = vmatpush1.msra.mxu0 %v211
    %1818 = vmatprep.subr.mxu0 0.0
    %1819 = vmatpush1.msra.mxu0 0.0
    %1820 = vmatprep.subr.mxu0 0.0
    %1821 = vmatpush1.msra.mxu0 0.0
    %1822 = vmatprep.subr.mxu0 0.0
    %1823 = vmatpush1.msra.mxu0 0.0
    %1824 = vmatprep.subr.mxu0 0.0
    %1825 = vmatpush1.msra.mxu0 0.0
    %1826 = vmatprep.subr.mxu0 0.0
    %1827 = vmatpush1.msra.mxu0 0.0
    %1828 = vmatprep.subr.mxu0 0.0
    %1829 = vmatpush1.msra.mxu0 0.0
    %1830 = vmatprep.subr.mxu0 0.0
    %1831 = vmatpush1.msra.mxu0 0.0
    %1832 = vmatprep.subr.mxu0 0.0
    %1833 = vmatpush1.msra.mxu0 0.0
    %1834 = vmatprep.subr.mxu0 0.0
    %1835 = vmatpush1.msra.mxu0 0.0
    %1836 = vmatprep.subr.mxu0 0.0
    %1837 = vmatpush1.msra.mxu0 0.0
    %1838 = vmatprep.subr.mxu0 0.0
    %1839 = vmatpush1.msra.mxu0 0.0
    %1840 = vmatprep.subr.mxu0 0.0
    %1841 = vmatpush1.msra.mxu0 0.0
    %1842 = vmatprep.subr.mxu0 0.0
    %1843 = vmatpush1.msra.mxu0 0.0
    %1844 = vmatprep.subr.mxu0 0.0
    %1845 = vmatpush1.msra.mxu0 0.0
    %1846 = vmatprep.subr.mxu0 0.0
    %1847 = vmatpush1.msra.mxu0 0.0
    %1848 = vmatprep.subr.mxu0 0.0
    %1849 = vmatpush1.msra.mxu0 0.0
    %1850 = vmatprep.subr.mxu0 0.0
    %1851 = vmatpush1.msra.mxu0 0.0
    %1852 = vmatprep.subr.mxu0 0.0
    %1853 = vmatpush1.msra.mxu0 0.0
    %1854 = vmatprep.subr.mxu0 0.0
    %1855 = vmatpush1.msra.mxu0 0.0
    %1856 = vmatprep.subr.mxu0 0.0
    %1857 = vmatpush1.msra.mxu0 0.0
    %1858 = vmatprep.subr.mxu0 0.0
    %1859 = vmatpush1.msra.mxu0 0.0
    %1860 = vmatprep.subr.mxu0 0.0
    %1861 = vmatpush1.msra.mxu0 0.0
    %1862 = vmatprep.subr.mxu0 0.0
    %1863 = vmatpush1.msra.mxu0 0.0
    %1864 = vmatprep.subr.mxu0 0.0
    %1865 = vmatpush1.msra.mxu0 0.0
    %1866 = vmatprep.mubr.f32.mxu0 0.0
    %1867 = vmatmul.mubr.f32.gmra.mrb[0].mxu0 %v1797
    %v1868 = vpop.f32.mrb[0].mxu0
    %v1869 = vadd.f32 %v683, %v1868
    %v1870 = vpop.f32.mrb[0].mxu0
    %1871 = vmatprep.mubr.f32.mxu0 0.0
    %1872 = vmatmul.mubr.f32.gmra.mrb[0].mxu0 %v1800
    %v1873 = vpop.f32.mrb[0].mxu0
    %v1874 = vadd.f32 %v683, %v1873
    %v1875 = vpop.f32.mrb[0].mxu0
    %1876 = vdwg.mxu0
    %v1877 = vmax.f32 %v1869, 0.0
    %v1878 = vmax.f32 %v1874, 0.0
    %v1880 = vsel %vm685, %v1877, 0
    %v1883 = vsel %vm685, %v1878, 0
    %1885 = vmatprep.subr.mxu0 0.0
    %1886 = vmatpush1.msra.mxu0 %v213
    %1887 = vmatprep.subr.mxu0 0.0
    %1888 = vmatpush1.msra.mxu0 %v214
    %1889 = vmatprep.subr.mxu0 0.0
    %1890 = vmatpush1.msra.mxu0 %v215
    %1891 = vmatprep.subr.mxu0 0.0
    %1892 = vmatpush1.msra.mxu0 %v216
    %1893 = vmatprep.subr.mxu0 0.0
    %1894 = vmatpush1.msra.mxu0 %v217
    %1895 = vmatprep.subr.mxu0 0.0
    %1896 = vmatpush1.msra.mxu0 %v218
    %1897 = vmatprep.subr.mxu0 0.0
    %1898 = vmatpush1.msra.mxu0 %v219
    %1899 = vmatprep.subr.mxu0 0.0
    %1900 = vmatpush1.msra.mxu0 %v220
    %1901 = vmatprep.subr.mxu0 0.0
    %1902 = vmatpush1.msra.mxu0 0.0
    %1903 = vmatprep.subr.mxu0 0.0
    %1904 = vmatpush1.msra.mxu0 0.0
    %1905 = vmatprep.subr.mxu0 0.0
    %1906 = vmatpush1.msra.mxu0 0.0
    %1907 = vmatprep.subr.mxu0 0.0
    %1908 = vmatpush1.msra.mxu0 0.0
    %1909 = vmatprep.subr.mxu0 0.0
    %1910 = vmatpush1.msra.mxu0 0.0
    %1911 = vmatprep.subr.mxu0 0.0
    %1912 = vmatpush1.msra.mxu0 0.0
    %1913 = vmatprep.subr.mxu0 0.0
    %1914 = vmatpush1.msra.mxu0 0.0
    %1915 = vmatprep.subr.mxu0 0.0
    %1916 = vmatpush1.msra.mxu0 0.0
    %1917 = vmatprep.subr.mxu0 0.0
    %1918 = vmatpush1.msra.mxu0 0.0
    %1919 = vmatprep.subr.mxu0 0.0
    %1920 = vmatpush1.msra.mxu0 0.0
    %1921 = vmatprep.subr.mxu0 0.0
    %1922 = vmatpush1.msra.mxu0 0.0
    %1923 = vmatprep.subr.mxu0 0.0
    %1924 = vmatpush1.msra.mxu0 0.0
    %1925 = vmatprep.subr.mxu0 0.0
    %1926 = vmatpush1.msra.mxu0 0.0
    %1927 = vmatprep.subr.mxu0 0.0
    %1928 = vmatpush1.msra.mxu0 0.0
    %1929 = vmatprep.subr.mxu0 0.0
    %1930 = vmatpush1.msra.mxu0 0.0
    %1931 = vmatprep.subr.mxu0 0.0
    %1932 = vmatpush1.msra.mxu0 0.0
    %1933 = vmatprep.subr.mxu0 0.0
    %1934 = vmatpush1.msra.mxu0 0.0
    %1935 = vmatprep.subr.mxu0 0.0
    %1936 = vmatpush1.msra.mxu0 0.0
    %1937 = vmatprep.subr.mxu0 0.0
    %1938 = vmatpush1.msra.mxu0 0.0
    %1939 = vmatprep.subr.mxu0 0.0
    %1940 = vmatpush1.msra.mxu0 0.0
    %1941 = vmatprep.subr.mxu0 0.0
    %1942 = vmatpush1.msra.mxu0 0.0
    %1943 = vmatprep.subr.mxu0 0.0
    %1944 = vmatpush1.msra.mxu0 0.0
    %1945 = vmatprep.subr.mxu0 0.0
    %1946 = vmatpush1.msra.mxu0 0.0
    %1947 = vmatprep.subr.mxu0 0.0
    %1948 = vmatpush1.msra.mxu0 0.0
    %1949 = vmatprep.mubr.f32.mxu0 0.0
    %1950 = vmatmul.mubr.f32.gmra.mrb[0].mxu0 %v1880
    %v1951 = vpop.f32.mrb[0].mxu0
    %v1952 = vadd.f32 %v773, %v1951
    %v1953 = vpop.f32.mrb[0].mxu0
    %1954 = vmatprep.mubr.f32.mxu0 0.0
    %1955 = vmatmul.mubr.f32.gmra.mrb[0].mxu0 %v1883
    %v1956 = vpop.f32.mrb[0].mxu0
    %v1957 = vadd.f32 %v773, %v1956
    %v1958 = vpop.f32.mrb[0].mxu0
    %1959 = vdwg.mxu0
    %1960 = vmatprep.subr.mxu0 0.0
    %1961 = vmatpush1.msra.mxu0 %v1952
    %1962 = vmatprep.subr.mxu0 0.0
    %1963 = vmatpush1.msra.mxu0 %v1957
    %1964 = vmatprep.subr.mxu0 0.0
    %1965 = vmatpush1.msra.mxu0 0.0
    %1966 = vmatprep.subr.mxu0 0.0
    %1967 = vmatpush1.msra.mxu0 0.0
    %1968 = vmatprep.subr.mxu0 0.0
    %1969 = vmatpush1.msra.mxu0 0.0
    %1970 = vmatprep.subr.mxu0 0.0
    %1971 = vmatpush1.msra.mxu0 0.0
    %1972 = vmatprep.subr.mxu0 0.0
    %1973 = vmatpush1.msra.mxu0 0.0
    %1974 = vmatprep.subr.mxu0 0.0
    %1975 = vmatpush1.msra.mxu0 0.0
    %1976 = vmatprep.subr.mxu0 0.0
    %1977 = vmatpush1.msra.mxu0 0.0
    %1978 = vmatprep.subr.mxu0 0.0
    %1979 = vmatpush1.msra.mxu0 0.0
    %1980 = vmatprep.subr.mxu0 0.0
    %1981 = vmatpush1.msra.mxu0 0.0
    %1982 = vmatprep.subr.mxu0 0.0
    %1983 = vmatpush1.msra.mxu0 0.0
    %1984 = vmatprep.subr.mxu0 0.0
    %1985 = vmatpush1.msra.mxu0 0.0
    %1986 = vmatprep.subr.mxu0 0.0
    %1987 = vmatpush1.msra.mxu0 0.0
    %1988 = vmatprep.subr.mxu0 0.0
    %1989 = vmatpush1.msra.mxu0 0.0
    %1990 = vmatprep.subr.mxu0 0.0
    %1991 = vmatpush1.msra.mxu0 0.0
    %1992 = vmatprep.subr.mxu0 0.0
    %1993 = vmatpush1.msra.mxu0 0.0
    %1994 = vmatprep.subr.mxu0 0.0
    %1995 = vmatpush1.msra.mxu0 0.0
    %1996 = vmatprep.subr.mxu0 0.0
    %1997 = vmatpush1.msra.mxu0 0.0
    %1998 = vmatprep.subr.mxu0 0.0
    %1999 = vmatpush1.msra.mxu0 0.0
    %2000 = vmatprep.subr.mxu0 0.0
    %2001 = vmatpush1.msra.mxu0 0.0
    %2002 = vmatprep.subr.mxu0 0.0
    %2003 = vmatpush1.msra.mxu0 0.0
    %2004 = vmatprep.subr.mxu0 0.0
    %2005 = vmatpush1.msra.mxu0 0.0
    %2006 = vmatprep.subr.mxu0 0.0
    %2007 = vmatpush1.msra.mxu0 0.0
    %2008 = vmatprep.subr.mxu0 0.0
    %2009 = vmatpush1.msra.mxu0 0.0
    %2010 = vmatprep.subr.mxu0 0.0
    %2011 = vmatpush1.msra.mxu0 0.0
    %2012 = vmatprep.subr.mxu0 0.0
    %2013 = vmatpush1.msra.mxu0 0.0
    %2014 = vmatprep.subr.mxu0 0.0
    %2015 = vmatpush1.msra.mxu0 0.0
    %2016 = vmatprep.subr.mxu0 0.0
    %2017 = vmatpush1.msra.mxu0 0.0
    %2018 = vmatprep.subr.mxu0 0.0
    %2019 = vmatpush1.msra.mxu0 0.0
    %2020 = vmatprep.subr.mxu0 0.0
    %2021 = vmatpush1.msra.mxu0 0.0
    %2022 = vmatprep.subr.mxu0 0.0
    %2023 = vmatpush1.msra.mxu0 0.0
    %2024 = vmatprep.mubr.f32.mxu0 0.0
    %2025 = vmatmul.mubr.f32.gmra.mrb[0].mxu0 %v857
    %v2026 = vpop.f32.mrb[0].mxu0
    %v2027 = vadd.f32 0.0, %v2026
    %v2028 = vpop.f32.mrb[0].mxu0
    %2029 = vmatprep.mubr.f32.mxu0 0.0
    %2030 = vmatmul.mubr.f32.gmra.mrb[0].mxu0 %v860
    %v2031 = vpop.f32.mrb[0].mxu0
    %v2032 = vadd.f32 0.0, %v2031
    %v2033 = vpop.f32.mrb[0].mxu0
    %2034 = vdwg.mxu0
    %v2036 = vsel %vm423, %v2027, 0
    %v2039 = vsel %vm423, %v2032, 0
    %2041 = vmatprep.subr.mxu0 0.0
    %2042 = vmatpush1.msra.mxu0 %v222
    %2043 = vmatprep.subr.mxu0 0.0
    %2044 = vmatpush1.msra.mxu0 %v223
    %2045 = vmatprep.subr.mxu0 0.0
    %2046 = vmatpush1.msra.mxu0 %v224
    %2047 = vmatprep.subr.mxu0 0.0
    %2048 = vmatpush1.msra.mxu0 %v225
    %2049 = vmatprep.subr.mxu0 0.0
    %2050 = vmatpush1.msra.mxu0 0.0
    %2051 = vmatprep.subr.mxu0 0.0
    %2052 = vmatpush1.msra.mxu0 0.0
    %2053 = vmatprep.subr.mxu0 0.0
    %2054 = vmatpush1.msra.mxu0 0.0
    %2055 = vmatprep.subr.mxu0 0.0
    %2056 = vmatpush1.msra.mxu0 0.0
    %2057 = vmatprep.subr.mxu0 0.0
    %2058 = vmatpush1.msra.mxu0 0.0
    %2059 = vmatprep.subr.mxu0 0.0
    %2060 = vmatpush1.msra.mxu0 0.0
    %2061 = vmatprep.subr.mxu0 0.0
    %2062 = vmatpush1.msra.mxu0 0.0
    %2063 = vmatprep.subr.mxu0 0.0
    %2064 = vmatpush1.msra.mxu0 0.0
    %2065 = vmatprep.subr.mxu0 0.0
    %2066 = vmatpush1.msra.mxu0 0.0
    %2067 = vmatprep.subr.mxu0 0.0
    %2068 = vmatpush1.msra.mxu0 0.0
    %2069 = vmatprep.subr.mxu0 0.0
    %2070 = vmatpush1.msra.mxu0 0.0
    %2071 = vmatprep.subr.mxu0 0.0
    %2072 = vmatpush1.msra.mxu0 0.0
    %2073 = vmatprep.subr.mxu0 0.0
    %2074 = vmatpush1.msra.mxu0 0.0
    %2075 = vmatprep.subr.mxu0 0.0
    %2076 = vmatpush1.msra.mxu0 0.0
    %2077 = vmatprep.subr.mxu0 0.0
    %2078 = vmatpush1.msra.mxu0 0.0
    %2079 = vmatprep.subr.mxu0 0.0
    %2080 = vmatpush1.msra.mxu0 0.0
    %2081 = vmatprep.subr.mxu0 0.0
    %2082 = vmatpush1.msra.mxu0 0.0
    %2083 = vmatprep.subr.mxu0 0.0
    %2084 = vmatpush1.msra.mxu0 0.0
    %2085 = vmatprep.subr.mxu0 0.0
    %2086 = vmatpush1.msra.mxu0 0.0
    %2087 = vmatprep.subr.mxu0 0.0
    %2088 = vmatpush1.msra.mxu0 0.0
    %2089 = vmatprep.subr.mxu0 0.0
    %2090 = vmatpush1.msra.mxu0 0.0
    %2091 = vmatprep.subr.mxu0 0.0
    %2092 = vmatpush1.msra.mxu0 0.0
    %2093 = vmatprep.subr.mxu0 0.0
    %2094 = vmatpush1.msra.mxu0 0.0
    %2095 = vmatprep.subr.mxu0 0.0
    %2096 = vmatpush1.msra.mxu0 0.0
    %2097 = vmatprep.subr.mxu0 0.0
    %2098 = vmatpush1.msra.mxu0 0.0
    %2099 = vmatprep.subr.mxu0 0.0
    %2100 = vmatpush1.msra.mxu0 0.0
    %2101 = vmatprep.subr.mxu0 0.0
    %2102 = vmatpush1.msra.mxu0 0.0
    %2103 = vmatprep.subr.mxu0 0.0
    %2104 = vmatpush1.msra.mxu0 0.0
    %2105 = vmatprep.mubr.f32.mxu0 0.0
    %2106 = vmatmul.mubr.f32.gmra.mrb[0].mxu0 %v2036
    %v2107 = vpop.f32.mrb[0].mxu0
    %v2108 = vadd.f32 %v941, %v2107
    %v2109 = vpop.f32.mrb[0].mxu0
    %2110 = vmatprep.mubr.f32.mxu0 0.0
    %2111 = vmatmul.mubr.f32.gmra.mrb[0].mxu0 %v2039
    %v2112 = vpop.f32.mrb[0].mxu0
    %v2113 = vadd.f32 %v941, %v2112
    %v2114 = vpop.f32.mrb[0].mxu0
    %2115 = vdwg.mxu0
    %v2117 = vsel %vm423, %v1476, 0
    %v2120 = vsel %vm423, %v1477, 0
    %2122 = vmatprep.subr.mxu0 0.0
    %2123 = vmatpush1.msra.mxu0 %v236
    %2124 = vmatprep.subr.mxu0 0.0
    %2125 = vmatpush1.msra.mxu0 %v237
    %2126 = vmatprep.subr.mxu0 0.0
    %2127 = vmatpush1.msra.mxu0 %v238
    %2128 = vmatprep.subr.mxu0 0.0
    %2129 = vmatpush1.msra.mxu0 %v239
    %2130 = vmatprep.subr.mxu0 0.0
    %2131 = vmatpush1.msra.mxu0 0.0
    %2132 = vmatprep.subr.mxu0 0.0
    %2133 = vmatpush1.msra.mxu0 0.0
    %2134 = vmatprep.subr.mxu0 0.0
    %2135 = vmatpush1.msra.mxu0 0.0
    %2136 = vmatprep.subr.mxu0 0.0
    %2137 = vmatpush1.msra.mxu0 0.0
    %2138 = vmatprep.subr.mxu0 0.0
    %2139 = vmatpush1.msra.mxu0 0.0
    %2140 = vmatprep.subr.mxu0 0.0
    %2141 = vmatpush1.msra.mxu0 0.0
    %2142 = vmatprep.subr.mxu0 0.0
    %2143 = vmatpush1.msra.mxu0 0.0
    %2144 = vmatprep.subr.mxu0 0.0
    %2145 = vmatpush1.msra.mxu0 0.0
    %2146 = vmatprep.subr.mxu0 0.0
    %2147 = vmatpush1.msra.mxu0 0.0
    %2148 = vmatprep.subr.mxu0 0.0
    %2149 = vmatpush1.msra.mxu0 0.0
    %2150 = vmatprep.subr.mxu0 0.0
    %2151 = vmatpush1.msra.mxu0 0.0
    %2152 = vmatprep.subr.mxu0 0.0
    %2153 = vmatpush1.msra.mxu0 0.0
    %2154 = vmatprep.subr.mxu0 0.0
    %2155 = vmatpush1.msra.mxu0 0.0
    %2156 = vmatprep.subr.mxu0 0.0
    %2157 = vmatpush1.msra.mxu0 0.0
    %2158 = vmatprep.subr.mxu0 0.0
    %2159 = vmatpush1.msra.mxu0 0.0
    %2160 = vmatprep.subr.mxu0 0.0
    %2161 = vmatpush1.msra.mxu0 0.0
    %2162 = vmatprep.subr.mxu0 0.0
    %2163 = vmatpush1.msra.mxu0 0.0
    %2164 = vmatprep.subr.mxu0 0.0
    %2165 = vmatpush1.msra.mxu0 0.0
    %2166 = vmatprep.subr.mxu0 0.0
    %2167 = vmatpush1.msra.mxu0 0.0
    %2168 = vmatprep.subr.mxu0 0.0
    %2169 = vmatpush1.msra.mxu0 0.0
    %2170 = vmatprep.subr.mxu0 0.0
    %2171 = vmatpush1.msra.mxu0 0.0
    %2172 = vmatprep.subr.mxu0 0.0
    %2173 = vmatpush1.msra.mxu0 0.0
    %2174 = vmatprep.subr.mxu0 0.0
    %2175 = vmatpush1.msra.mxu0 0.0
    %2176 = vmatprep.subr.mxu0 0.0
    %2177 = vmatpush1.msra.mxu0 0.0
    %2178 = vmatprep.subr.mxu0 0.0
    %2179 = vmatpush1.msra.mxu0 0.0
    %2180 = vmatprep.subr.mxu0 0.0
    %2181 = vmatpush1.msra.mxu0 0.0
    %2182 = vmatprep.subr.mxu0 0.0
    %2183 = vmatpush1.msra.mxu0 0.0
    %2184 = vmatprep.subr.mxu0 0.0
    %2185 = vmatpush1.msra.mxu0 0.0
    %2186 = vmatprep.mubr.f32.mxu0 0.0
    %2187 = vmatmul.mubr.f32.gmra.mrb[0].mxu0 %v2117
    %v2188 = vpop.f32.mrb[0].mxu0
    %v2189 = vadd.f32 0.0, %v2188
    %v2190 = vpop.f32.mrb[0].mxu0
    %2191 = vmatprep.mubr.f32.mxu0 0.0
    %2192 = vmatmul.mubr.f32.gmra.mrb[0].mxu0 %v2120
    %v2193 = vpop.f32.mrb[0].mxu0
    %v2194 = vadd.f32 0.0, %v2193
    %v2195 = vpop.f32.mrb[0].mxu0
    %2196 = vdwg.mxu0
    %v2197 = vadd.f32 %v2108, %v2189
    %v2198 = vadd.f32 %v2113, %v2194
    %v2199 = vadd.f32 %v2197, %v1108
    %v2200 = vadd.f32 %v2198, %v1108
    %v2201 = vxor.u32 %v2199, 2147483648
    %v2202 = vxor.u32 %v2200, 2147483648
    %v2203 = vmul.f32 %v2201, 1.442695
    %v2204 = vpow.pop %v2203
    %v2205 = vmul.f32 %v2202, 1.442695
    %v2206 = vpow.pop %v2205
    %v2207 = vadd.f32 %v2204, 1.0
    %v2208 = vadd.f32 %v2206, 1.0
    %v2209 = vrcp.pop %v2207
    %v2210 = vmul.f32 1.0, %v2209
    %v2211 = vrcp.pop %v2208
    %v2212 = vmul.f32 1.0, %v2211
    %2213 = vmatprep.subr.mxu0 0.0
    %2214 = vmatpush1.msra.mxu0 %v227
    %2215 = vmatprep.subr.mxu0 0.0
    %2216 = vmatpush1.msra.mxu0 %v228
    %2217 = vmatprep.subr.mxu0 0.0
    %2218 = vmatpush1.msra.mxu0 %v229
    %2219 = vmatprep.subr.mxu0 0.0
    %2220 = vmatpush1.msra.mxu0 %v230
    %2221 = vmatprep.subr.mxu0 0.0
    %2222 = vmatpush1.msra.mxu0 0.0
    %2223 = vmatprep.subr.mxu0 0.0
    %2224 = vmatpush1.msra.mxu0 0.0
    %2225 = vmatprep.subr.mxu0 0.0
    %2226 = vmatpush1.msra.mxu0 0.0
    %2227 = vmatprep.subr.mxu0 0.0
    %2228 = vmatpush1.msra.mxu0 0.0
    %2229 = vmatprep.subr.mxu0 0.0
    %2230 = vmatpush1.msra.mxu0 0.0
    %2231 = vmatprep.subr.mxu0 0.0
    %2232 = vmatpush1.msra.mxu0 0.0
    %2233 = vmatprep.subr.mxu0 0.0
    %2234 = vmatpush1.msra.mxu0 0.0
    %2235 = vmatprep.subr.mxu0 0.0
    %2236 = vmatpush1.msra.mxu0 0.0
    %2237 = vmatprep.subr.mxu0 0.0
    %2238 = vmatpush1.msra.mxu0 0.0
    %2239 = vmatprep.subr.mxu0 0.0
    %2240 = vmatpush1.msra.mxu0 0.0
    %2241 = vmatprep.subr.mxu0 0.0
    %2242 = vmatpush1.msra.mxu0 0.0
    %2243 = vmatprep.subr.mxu0 0.0
    %2244 = vmatpush1.msra.mxu0 0.0
    %2245 = vmatprep.subr.mxu0 0.0
    %2246 = vmatpush1.msra.mxu0 0.0
    %2247 = vmatprep.subr.mxu0 0.0
    %2248 = vmatpush1.msra.mxu0 0.0
    %2249 = vmatprep.subr.mxu0 0.0
    %2250 = vmatpush1.msra.mxu0 0.0
    %2251 = vmatprep.subr.mxu0 0.0
    %2252 = vmatpush1.msra.mxu0 0.0
    %2253 = vmatprep.subr.mxu0 0.0
    %2254 = vmatpush1.msra.mxu0 0.0
    %2255 = vmatprep.subr.mxu0 0.0
    %2256 = vmatpush1.msra.mxu0 0.0
    %2257 = vmatprep.subr.mxu0 0.0
    %2258 = vmatpush1.msra.mxu0 0.0
    %2259 = vmatprep.subr.mxu0 0.0
    %2260 = vmatpush1.msra.mxu0 0.0
    %2261 = vmatprep.subr.mxu0 0.0
    %2262 = vmatpush1.msra.mxu0 0.0
    %2263 = vmatprep.subr.mxu0 0.0
    %2264 = vmatpush1.msra.mxu0 0.0
    %2265 = vmatprep.subr.mxu0 0.0
    %2266 = vmatpush1.msra.mxu0 0.0
    %2267 = vmatprep.subr.mxu0 0.0
    %2268 = vmatpush1.msra.mxu0 0.0
    %2269 = vmatprep.subr.mxu0 0.0
    %2270 = vmatpush1.msra.mxu0 0.0
    %2271 = vmatprep.subr.mxu0 0.0
    %2272 = vmatpush1.msra.mxu0 0.0
    %2273 = vmatprep.subr.mxu0 0.0
    %2274 = vmatpush1.msra.mxu0 0.0
    %2275 = vmatprep.subr.mxu0 0.0
    %2276 = vmatpush1.msra.mxu0 0.0
    %2277 = vmatprep.mubr.f32.mxu0 0.0
    %2278 = vmatmul.mubr.f32.gmra.mrb[0].mxu0 %v2036
    %v2279 = vpop.f32.mrb[0].mxu0
    %v2280 = vadd.f32 %v1128, %v2279
    %v2281 = vpop.f32.mrb[0].mxu0
    %2282 = vmatprep.mubr.f32.mxu0 0.0
    %2283 = vmatmul.mubr.f32.gmra.mrb[0].mxu0 %v2039
    %v2284 = vpop.f32.mrb[0].mxu0
    %v2285 = vadd.f32 %v1128, %v2284
    %v2286 = vpop.f32.mrb[0].mxu0
    %2287 = vdwg.mxu0
    %2288 = vmatprep.subr.mxu0 0.0
    %2289 = vmatpush1.msra.mxu0 %v241
    %2290 = vmatprep.subr.mxu0 0.0
    %2291 = vmatpush1.msra.mxu0 %v242
    %2292 = vmatprep.subr.mxu0 0.0
    %2293 = vmatpush1.msra.mxu0 %v243
    %2294 = vmatprep.subr.mxu0 0.0
    %2295 = vmatpush1.msra.mxu0 %v244
    %2296 = vmatprep.subr.mxu0 0.0
    %2297 = vmatpush1.msra.mxu0 0.0
    %2298 = vmatprep.subr.mxu0 0.0
    %2299 = vmatpush1.msra.mxu0 0.0
    %2300 = vmatprep.subr.mxu0 0.0
    %2301 = vmatpush1.msra.mxu0 0.0
    %2302 = vmatprep.subr.mxu0 0.0
    %2303 = vmatpush1.msra.mxu0 0.0
    %2304 = vmatprep.subr.mxu0 0.0
    %2305 = vmatpush1.msra.mxu0 0.0
    %2306 = vmatprep.subr.mxu0 0.0
    %2307 = vmatpush1.msra.mxu0 0.0
    %2308 = vmatprep.subr.mxu0 0.0
    %2309 = vmatpush1.msra.mxu0 0.0
    %2310 = vmatprep.subr.mxu0 0.0
    %2311 = vmatpush1.msra.mxu0 0.0
    %2312 = vmatprep.subr.mxu0 0.0
    %2313 = vmatpush1.msra.mxu0 0.0
    %2314 = vmatprep.subr.mxu0 0.0
    %2315 = vmatpush1.msra.mxu0 0.0
    %2316 = vmatprep.subr.mxu0 0.0
    %2317 = vmatpush1.msra.mxu0 0.0
    %2318 = vmatprep.subr.mxu0 0.0
    %2319 = vmatpush1.msra.mxu0 0.0
    %2320 = vmatprep.subr.mxu0 0.0
    %2321 = vmatpush1.msra.mxu0 0.0
    %2322 = vmatprep.subr.mxu0 0.0
    %2323 = vmatpush1.msra.mxu0 0.0
    %2324 = vmatprep.subr.mxu0 0.0
    %2325 = vmatpush1.msra.mxu0 0.0
    %2326 = vmatprep.subr.mxu0 0.0
    %2327 = vmatpush1.msra.mxu0 0.0
    %2328 = vmatprep.subr.mxu0 0.0
    %2329 = vmatpush1.msra.mxu0 0.0
    %2330 = vmatprep.subr.mxu0 0.0
    %2331 = vmatpush1.msra.mxu0 0.0
    %2332 = vmatprep.subr.mxu0 0.0
    %2333 = vmatpush1.msra.mxu0 0.0
    %2334 = vmatprep.subr.mxu0 0.0
    %2335 = vmatpush1.msra.mxu0 0.0
    %2336 = vmatprep.subr.mxu0 0.0
    %2337 = vmatpush1.msra.mxu0 0.0
    %2338 = vmatprep.subr.mxu0 0.0
    %2339 = vmatpush1.msra.mxu0 0.0
    %2340 = vmatprep.subr.mxu0 0.0
    %2341 = vmatpush1.msra.mxu0 0.0
    %2342 = vmatprep.subr.mxu0 0.0
    %2343 = vmatpush1.msra.mxu0 0.0
    %2344 = vmatprep.subr.mxu0 0.0
    %2345 = vmatpush1.msra.mxu0 0.0
    %2346 = vmatprep.subr.mxu0 0.0
    %2347 = vmatpush1.msra.mxu0 0.0
    %2348 = vmatprep.subr.mxu0 0.0
    %2349 = vmatpush1.msra.mxu0 0.0
    %2350 = vmatprep.subr.mxu0 0.0
    %2351 = vmatpush1.msra.mxu0 0.0
    %2352 = vmatprep.mubr.f32.mxu0 0.0
    %2353 = vmatmul.mubr.f32.gmra.mrb[0].mxu0 %v2117
    %v2354 = vpop.f32.mrb[0].mxu0
    %v2355 = vadd.f32 0.0, %v2354
    %v2356 = vpop.f32.mrb[0].mxu0
    %2357 = vmatprep.mubr.f32.mxu0 0.0
    %2358 = vmatmul.mubr.f32.gmra.mrb[0].mxu0 %v2120
    %v2359 = vpop.f32.mrb[0].mxu0
    %v2360 = vadd.f32 0.0, %v2359
    %v2361 = vpop.f32.mrb[0].mxu0
    %2362 = vdwg.mxu0
    %v2363 = vadd.f32 %v2280, %v2355
    %v2364 = vadd.f32 %v2285, %v2360
    %v2365 = vadd.f32 %v2363, %v1286
    %v2366 = vadd.f32 %v2364, %v1286
    %v2367 = vxor.u32 %v2365, 2147483648
    %v2368 = vxor.u32 %v2366, 2147483648
    %v2369 = vmul.f32 %v2367, 1.442695
    %v2370 = vpow.pop %v2369
    %v2371 = vmul.f32 %v2368, 1.442695
    %v2372 = vpow.pop %v2371
    %v2373 = vadd.f32 %v2370, 1.0
    %v2374 = vadd.f32 %v2372, 1.0
    %v2375 = vrcp.pop %v2373
    %v2376 = vmul.f32 1.0, %v2375
    %v2377 = vrcp.pop %v2374
    %v2378 = vmul.f32 1.0, %v2377
    %2379 = vmatprep.subr.mxu0 0.0
    %2380 = vmatpush1.msra.mxu0 %v232
    %2381 = vmatprep.subr.mxu0 0.0
    %2382 = vmatpush1.msra.mxu0 %v233
    %2383 = vmatprep.subr.mxu0 0.0
    %2384 = vmatpush1.msra.mxu0 %v234
    %2385 = vmatprep.subr.mxu0 0.0
    %2386 = vmatpush1.msra.mxu0 %v235
    %2387 = vmatprep.subr.mxu0 0.0
    %2388 = vmatpush1.msra.mxu0 0.0
    %2389 = vmatprep.subr.mxu0 0.0
    %2390 = vmatpush1.msra.mxu0 0.0
    %2391 = vmatprep.subr.mxu0 0.0
    %2392 = vmatpush1.msra.mxu0 0.0
    %2393 = vmatprep.subr.mxu0 0.0
    %2394 = vmatpush1.msra.mxu0 0.0
    %2395 = vmatprep.subr.mxu0 0.0
    %2396 = vmatpush1.msra.mxu0 0.0
    %2397 = vmatprep.subr.mxu0 0.0
    %2398 = vmatpush1.msra.mxu0 0.0
    %2399 = vmatprep.subr.mxu0 0.0
    %2400 = vmatpush1.msra.mxu0 0.0
    %2401 = vmatprep.subr.mxu0 0.0
    %2402 = vmatpush1.msra.mxu0 0.0
    %2403 = vmatprep.subr.mxu0 0.0
    %2404 = vmatpush1.msra.mxu0 0.0
    %2405 = vmatprep.subr.mxu0 0.0
    %2406 = vmatpush1.msra.mxu0 0.0
    %2407 = vmatprep.subr.mxu0 0.0
    %2408 = vmatpush1.msra.mxu0 0.0
    %2409 = vmatprep.subr.mxu0 0.0
    %2410 = vmatpush1.msra.mxu0 0.0
    %2411 = vmatprep.subr.mxu0 0.0
    %2412 = vmatpush1.msra.mxu0 0.0
    %2413 = vmatprep.subr.mxu0 0.0
    %2414 = vmatpush1.msra.mxu0 0.0
    %2415 = vmatprep.subr.mxu0 0.0
    %2416 = vmatpush1.msra.mxu0 0.0
    %2417 = vmatprep.subr.mxu0 0.0
    %2418 = vmatpush1.msra.mxu0 0.0
    %2419 = vmatprep.subr.mxu0 0.0
    %2420 = vmatpush1.msra.mxu0 0.0
    %2421 = vmatprep.subr.mxu0 0.0
    %2422 = vmatpush1.msra.mxu0 0.0
    %2423 = vmatprep.subr.mxu0 0.0
    %2424 = vmatpush1.msra.mxu0 0.0
    %2425 = vmatprep.subr.mxu0 0.0
    %2426 = vmatpush1.msra.mxu0 0.0
    %2427 = vmatprep.subr.mxu0 0.0
    %2428 = vmatpush1.msra.mxu0 0.0
    %2429 = vmatprep.subr.mxu0 0.0
    %2430 = vmatpush1.msra.mxu0 0.0
    %2431 = vmatprep.subr.mxu0 0.0
    %2432 = vmatpush1.msra.mxu0 0.0
    %2433 = vmatprep.subr.mxu0 0.0
    %2434 = vmatpush1.msra.mxu0 0.0
    %2435 = vmatprep.subr.mxu0 0.0
    %2436 = vmatpush1.msra.mxu0 0.0
    %2437 = vmatprep.subr.mxu0 0.0
    %2438 = vmatpush1.msra.mxu0 0.0
    %2439 = vmatprep.subr.mxu0 0.0
    %2440 = vmatpush1.msra.mxu0 0.0
    %2441 = vmatprep.subr.mxu0 0.0
    %2442 = vmatpush1.msra.mxu0 0.0
    %2443 = vmatprep.mubr.f32.mxu0 0.0
    %2444 = vmatmul.mubr.f32.gmra.mrb[0].mxu0 %v2036
    %v2445 = vpop.f32.mrb[0].mxu0
    %v2446 = vadd.f32 %v1306, %v2445
    %v2447 = vpop.f32.mrb[0].mxu0
    %2448 = vmatprep.mubr.f32.mxu0 0.0
    %2449 = vmatmul.mubr.f32.gmra.mrb[0].mxu0 %v2039
    %v2450 = vpop.f32.mrb[0].mxu0
    %v2451 = vadd.f32 %v1306, %v2450
    %v2452 = vpop.f32.mrb[0].mxu0
    %2453 = vdwg.mxu0
    %2454 = vmatprep.subr.mxu0 0.0
    %2455 = vmatpush1.msra.mxu0 %v246
    %2456 = vmatprep.subr.mxu0 0.0
    %2457 = vmatpush1.msra.mxu0 %v247
    %2458 = vmatprep.subr.mxu0 0.0
    %2459 = vmatpush1.msra.mxu0 %v248
    %2460 = vmatprep.subr.mxu0 0.0
    %2461 = vmatpush1.msra.mxu0 %v249
    %2462 = vmatprep.subr.mxu0 0.0
    %2463 = vmatpush1.msra.mxu0 0.0
    %2464 = vmatprep.subr.mxu0 0.0
    %2465 = vmatpush1.msra.mxu0 0.0
    %2466 = vmatprep.subr.mxu0 0.0
    %2467 = vmatpush1.msra.mxu0 0.0
    %2468 = vmatprep.subr.mxu0 0.0
    %2469 = vmatpush1.msra.mxu0 0.0
    %2470 = vmatprep.subr.mxu0 0.0
    %2471 = vmatpush1.msra.mxu0 0.0
    %2472 = vmatprep.subr.mxu0 0.0
    %2473 = vmatpush1.msra.mxu0 0.0
    %2474 = vmatprep.subr.mxu0 0.0
    %2475 = vmatpush1.msra.mxu0 0.0
    %2476 = vmatprep.subr.mxu0 0.0
    %2477 = vmatpush1.msra.mxu0 0.0
    %2478 = vmatprep.subr.mxu0 0.0
    %2479 = vmatpush1.msra.mxu0 0.0
    %2480 = vmatprep.subr.mxu0 0.0
    %2481 = vmatpush1.msra.mxu0 0.0
    %2482 = vmatprep.subr.mxu0 0.0
    %2483 = vmatpush1.msra.mxu0 0.0
    %2484 = vmatprep.subr.mxu0 0.0
    %2485 = vmatpush1.msra.mxu0 0.0
    %2486 = vmatprep.subr.mxu0 0.0
    %2487 = vmatpush1.msra.mxu0 0.0
    %2488 = vmatprep.subr.mxu0 0.0
    %2489 = vmatpush1.msra.mxu0 0.0
    %2490 = vmatprep.subr.mxu0 0.0
    %2491 = vmatpush1.msra.mxu0 0.0
    %2492 = vmatprep.subr.mxu0 0.0
    %2493 = vmatpush1.msra.mxu0 0.0
    %2494 = vmatprep.subr.mxu0 0.0
    %2495 = vmatpush1.msra.mxu0 0.0
    %2496 = vmatprep.subr.mxu0 0.0
    %2497 = vmatpush1.msra.mxu0 0.0
    %2498 = vmatprep.subr.mxu0 0.0
    %2499 = vmatpush1.msra.mxu0 0.0
    %2500 = vmatprep.subr.mxu0 0.0
    %2501 = vmatpush1.msra.mxu0 0.0
    %2502 = vmatprep.subr.mxu0 0.0
    %2503 = vmatpush1.msra.mxu0 0.0
    %2504 = vmatprep.subr.mxu0 0.0
    %2505 = vmatpush1.msra.mxu0 0.0
    %2506 = vmatprep.subr.mxu0 0.0
    %2507 = vmatpush1.msra.mxu0 0.0
    %2508 = vmatprep.subr.mxu0 0.0
    %2509 = vmatpush1.msra.mxu0 0.0
    %2510 = vmatprep.subr.mxu0 0.0
    %2511 = vmatpush1.msra.mxu0 0.0
    %2512 = vmatprep.subr.mxu0 0.0
    %2513 = vmatpush1.msra.mxu0 0.0
    %2514 = vmatprep.subr.mxu0 0.0
    %2515 = vmatpush1.msra.mxu0 0.0
    %2516 = vmatprep.subr.mxu0 0.0
    %2517 = vmatpush1.msra.mxu0 0.0
    %2518 = vmatprep.mubr.f32.mxu0 0.0
    %2519 = vmatmul.mubr.f32.gmra.mrb[0].mxu0 %v2117
    %v2520 = vpop.f32.mrb[0].mxu0
    %v2521 = vadd.f32 %v1387, %v2520
    %v2522 = vpop.f32.mrb[0].mxu0
    %2523 = vmatprep.mubr.f32.mxu0 0.0
    %2524 = vmatmul.mubr.f32.gmra.mrb[0].mxu0 %v2120
    %v2525 = vpop.f32.mrb[0].mxu0
    %v2526 = vadd.f32 %v1387, %v2525
    %v2527 = vpop.f32.mrb[0].mxu0
    %2528 = vdwg.mxu0
    %v2529 = vmul.f32 %v2210, %v2521
    %v2530 = vmul.f32 %v2212, %v2526
    %v2531 = vadd.f32 %v2446, %v2529
    %v2532 = vadd.f32 %v2451, %v2530
    %v2533 = vtanh.pop %v2531
    %v2534 = vtanh.pop %v2532
    %v2535 = vsub.f32 1.0, %v2376
    %v2536 = vsub.f32 1.0, %v2378
    %v2537 = vmul.f32 %v2535, %v2533
    %v2538 = vmul.f32 %v2536, %v2534
    %v2539 = vmul.f32 %v2376, %v1476
    %v2540 = vmul.f32 %v2378, %v1477
    %v2541 = vadd.f32 %v2537, %v2539
    %v2542 = vadd.f32 %v2538, %v2540
    %2543 = vmatprep.subr.mxu0 0.0
    %2544 = vmatpush1.msra.mxu0 %v2541
    %2545 = vmatprep.subr.mxu0 0.0
    %2546 = vmatpush1.msra.mxu0 %v2542
    %2547 = vmatprep.subr.mxu0 0.0
    %2548 = vmatpush1.msra.mxu0 0.0
    %2549 = vmatprep.subr.mxu0 0.0
    %2550 = vmatpush1.msra.mxu0 0.0
    %2551 = vmatprep.subr.mxu0 0.0
    %2552 = vmatpush1.msra.mxu0 0.0
    %2553 = vmatprep.subr.mxu0 0.0
    %2554 = vmatpush1.msra.mxu0 0.0
    %2555 = vmatprep.subr.mxu0 0.0
    %2556 = vmatpush1.msra.mxu0 0.0
    %2557 = vmatprep.subr.mxu0 0.0
    %2558 = vmatpush1.msra.mxu0 0.0
    %2559 = vmatprep.subr.mxu0 0.0
    %2560 = vmatpush1.msra.mxu0 0.0
    %2561 = vmatprep.subr.mxu0 0.0
    %2562 = vmatpush1.msra.mxu0 0.0
    %2563 = vmatprep.subr.mxu0 0.0
    %2564 = vmatpush1.msra.mxu0 0.0
    %2565 = vmatprep.subr.mxu0 0.0
    %2566 = vmatpush1.msra.mxu0 0.0
    %2567 = vmatprep.subr.mxu0 0.0
    %2568 = vmatpush1.msra.mxu0 0.0
    %2569 = vmatprep.subr.mxu0 0.0
    %2570 = vmatpush1.msra.mxu0 0.0
    %2571 = vmatprep.subr.mxu0 0.0
    %2572 = vmatpush1.msra.mxu0 0.0
    %2573 = vmatprep.subr.mxu0 0.0
    %2574 = vmatpush1.msra.mxu0 0.0
    %2575 = vmatprep.subr.mxu0 0.0
    %2576 = vmatpush1.msra.mxu0 0.0
    %2577 = vmatprep.subr.mxu0 0.0
    %2578 = vmatpush1.msra.mxu0 0.0
    %2579 = vmatprep.subr.mxu0 0.0
    %2580 = vmatpush1.msra.mxu0 0.0
    %2581 = vmatprep.subr.mxu0 0.0
    %2582 = vmatpush1.msra.mxu0 0.0
    %2583 = vmatprep.subr.mxu0 0.0
    %2584 = vmatpush1.msra.mxu0 0.0
    %2585 = vmatprep.subr.mxu0 0.0
    %2586 = vmatpush1.msra.mxu0 0.0
    %2587 = vmatprep.subr.mxu0 0.0
    %2588 = vmatpush1.msra.mxu0 0.0
    %2589 = vmatprep.subr.mxu0 0.0
    %2590 = vmatpush1.msra.mxu0 0.0
    %2591 = vmatprep.subr.mxu0 0.0
    %2592 = vmatpush1.msra.mxu0 0.0
    %2593 = vmatprep.subr.mxu0 0.0
    %2594 = vmatpush1.msra.mxu0 0.0
    %2595 = vmatprep.subr.mxu0 0.0
    %2596 = vmatpush1.msra.mxu0 0.0
    %2597 = vmatprep.subr.mxu0 0.0
    %2598 = vmatpush1.msra.mxu0 0.0
    %2599 = vmatprep.subr.mxu0 0.0
    %2600 = vmatpush1.msra.mxu0 0.0
    %2601 = vmatprep.subr.mxu0 0.0
    %2602 = vmatpush1.msra.mxu0 0.0
    %2603 = vmatprep.subr.mxu0 0.0
    %2604 = vmatpush1.msra.mxu0 0.0
    %2605 = vmatprep.subr.mxu0 0.0
    %2606 = vmatpush1.msra.mxu0 0.0
    %2607 = vmatprep.mubr.f32.mxu0 0.0
    %2608 = vmatmul.mubr.f32.gmra.mrb[0].mxu0 %v262
    %v2609 = vpop.f32.mrb[0].mxu0
    %v2610 = vadd.f32 0.0, %v2609
    %v2611 = vpop.f32.mrb[0].mxu0
    %2612 = vmatprep.mubr.f32.mxu0 0.0
    %2613 = vmatmul.mubr.f32.gmra.mrb[0].mxu0 %v265
    %v2614 = vpop.f32.mrb[0].mxu0
    %v2615 = vadd.f32 0.0, %v2614
    %v2616 = vpop.f32.mrb[0].mxu0
    %2617 = vdwg.mxu0
    %2618 = vmatprep.subr.mxu0 0.0
    %2619 = vmatpush1.msra.mxu0 %v2541
    %2620 = vmatprep.subr.mxu0 0.0
    %2621 = vmatpush1.msra.mxu0 %v2542
    %2622 = vmatprep.subr.mxu0 0.0
    %2623 = vmatpush1.msra.mxu0 0.0
    %2624 = vmatprep.subr.mxu0 0.0
    %2625 = vmatpush1.msra.mxu0 0.0
    %2626 = vmatprep.subr.mxu0 0.0
    %2627 = vmatpush1.msra.mxu0 0.0
    %2628 = vmatprep.subr.mxu0 0.0
    %2629 = vmatpush1.msra.mxu0 0.0
    %2630 = vmatprep.subr.mxu0 0.0
    %2631 = vmatpush1.msra.mxu0 0.0
    %2632 = vmatprep.subr.mxu0 0.0
    %2633 = vmatpush1.msra.mxu0 0.0
    %2634 = vmatprep.subr.mxu0 0.0
    %2635 = vmatpush1.msra.mxu0 0.0
    %2636 = vmatprep.subr.mxu0 0.0
    %2637 = vmatpush1.msra.mxu0 0.0
    %2638 = vmatprep.subr.mxu0 0.0
    %2639 = vmatpush1.msra.mxu0 0.0
    %2640 = vmatprep.subr.mxu0 0.0
    %2641 = vmatpush1.msra.mxu0 0.0
    %2642 = vmatprep.subr.mxu0 0.0
    %2643 = vmatpush1.msra.mxu0 0.0
    %2644 = vmatprep.subr.mxu0 0.0
    %2645 = vmatpush1.msra.mxu0 0.0
    %2646 = vmatprep.subr.mxu0 0.0
    %2647 = vmatpush1.msra.mxu0 0.0
    %2648 = vmatprep.subr.mxu0 0.0
    %2649 = vmatpush1.msra.mxu0 0.0
    %2650 = vmatprep.subr.mxu0 0.0
    %2651 = vmatpush1.msra.mxu0 0.0
    %2652 = vmatprep.subr.mxu0 0.0
    %2653 = vmatpush1.msra.mxu0 0.0
    %2654 = vmatprep.subr.mxu0 0.0
    %2655 = vmatpush1.msra.mxu0 0.0
    %2656 = vmatprep.subr.mxu0 0.0
    %2657 = vmatpush1.msra.mxu0 0.0
    %2658 = vmatprep.subr.mxu0 0.0
    %2659 = vmatpush1.msra.mxu0 0.0
    %2660 = vmatprep.subr.mxu0 0.0
    %2661 = vmatpush1.msra.mxu0 0.0
    %2662 = vmatprep.subr.mxu0 0.0
    %2663 = vmatpush1.msra.mxu0 0.0
    %2664 = vmatprep.subr.mxu0 0.0
    %2665 = vmatpush1.msra.mxu0 0.0
    %2666 = vmatprep.subr.mxu0 0.0
    %2667 = vmatpush1.msra.mxu0 0.0
    %2668 = vmatprep.subr.mxu0 0.0
    %2669 = vmatpush1.msra.mxu0 0.0
    %2670 = vmatprep.subr.mxu0 0.0
    %2671 = vmatpush1.msra.mxu0 0.0
    %2672 = vmatprep.subr.mxu0 0.0
    %2673 = vmatpush1.msra.mxu0 0.0
    %2674 = vmatprep.subr.mxu0 0.0
    %2675 = vmatpush1.msra.mxu0 0.0
    %2676 = vmatprep.subr.mxu0 0.0
    %2677 = vmatpush1.msra.mxu0 0.0
    %2678 = vmatprep.subr.mxu0 0.0
    %2679 = vmatpush1.msra.mxu0 0.0
    %2680 = vmatprep.subr.mxu0 0.0
    %2681 = vmatpush1.msra.mxu0 0.0
    %2682 = vmatprep.mubr.f32.mxu0 0.0
    %2683 = vmatmul.mubr.f32.gmra.mrb[0].mxu0 %v343
    %v2684 = vpop.f32.mrb[0].mxu0
    %v2685 = vadd.f32 0.0, %v2684
    %v2686 = vpop.f32.mrb[0].mxu0
    %2687 = vmatprep.mubr.f32.mxu0 0.0
    %2688 = vmatmul.mubr.f32.gmra.mrb[0].mxu0 %v346
    %v2689 = vpop.f32.mrb[0].mxu0
    %v2690 = vadd.f32 0.0, %v2689
    %v2691 = vpop.f32.mrb[0].mxu0
    %2692 = vdwg.mxu0
    %v2694 = vsel %vm423, %v2685, 0
    %v2697 = vsel %vm423, %v2690, 0
    %2699 = vmatprep.subr.mxu0 0.0
    %2700 = vmatpush1.msra.mxu0 %v197
    %2701 = vmatprep.subr.mxu0 0.0
    %2702 = vmatpush1.msra.mxu0 %v198
    %2703 = vmatprep.subr.mxu0 0.0
    %2704 = vmatpush1.msra.mxu0 %v199
    %2705 = vmatprep.subr.mxu0 0.0
    %2706 = vmatpush1.msra.mxu0 %v200
    %2707 = vmatprep.subr.mxu0 0.0
    %2708 = vmatpush1.msra.mxu0 0.0
    %2709 = vmatprep.subr.mxu0 0.0
    %2710 = vmatpush1.msra.mxu0 0.0
    %2711 = vmatprep.subr.mxu0 0.0
    %2712 = vmatpush1.msra.mxu0 0.0
    %2713 = vmatprep.subr.mxu0 0.0
    %2714 = vmatpush1.msra.mxu0 0.0
    %2715 = vmatprep.subr.mxu0 0.0
    %2716 = vmatpush1.msra.mxu0 0.0
    %2717 = vmatprep.subr.mxu0 0.0
    %2718 = vmatpush1.msra.mxu0 0.0
    %2719 = vmatprep.subr.mxu0 0.0
    %2720 = vmatpush1.msra.mxu0 0.0
    %2721 = vmatprep.subr.mxu0 0.0
    %2722 = vmatpush1.msra.mxu0 0.0
    %2723 = vmatprep.subr.mxu0 0.0
    %2724 = vmatpush1.msra.mxu0 0.0
    %2725 = vmatprep.subr.mxu0 0.0
    %2726 = vmatpush1.msra.mxu0 0.0
    %2727 = vmatprep.subr.mxu0 0.0
    %2728 = vmatpush1.msra.mxu0 0.0
    %2729 = vmatprep.subr.mxu0 0.0
    %2730 = vmatpush1.msra.mxu0 0.0
    %2731 = vmatprep.subr.mxu0 0.0
    %2732 = vmatpush1.msra.mxu0 0.0
    %2733 = vmatprep.subr.mxu0 0.0
    %2734 = vmatpush1.msra.mxu0 0.0
    %2735 = vmatprep.subr.mxu0 0.0
    %2736 = vmatpush1.msra.mxu0 0.0
    %2737 = vmatprep.subr.mxu0 0.0
    %2738 = vmatpush1.msra.mxu0 0.0
    %2739 = vmatprep.subr.mxu0 0.0
    %2740 = vmatpush1.msra.mxu0 0.0
    %2741 = vmatprep.subr.mxu0 0.0
    %2742 = vmatpush1.msra.mxu0 0.0
    %2743 = vmatprep.subr.mxu0 0.0
    %2744 = vmatpush1.msra.mxu0 0.0
    %2745 = vmatprep.subr.mxu0 0.0
    %2746 = vmatpush1.msra.mxu0 0.0
    %2747 = vmatprep.subr.mxu0 0.0
    %2748 = vmatpush1.msra.mxu0 0.0
    %2749 = vmatprep.subr.mxu0 0.0
    %2750 = vmatpush1.msra.mxu0 0.0
    %2751 = vmatprep.subr.mxu0 0.0
    %2752 = vmatpush1.msra.mxu0 0.0
    %2753 = vmatprep.subr.mxu0 0.0
    %2754 = vmatpush1.msra.mxu0 0.0
    %2755 = vmatprep.subr.mxu0 0.0
    %2756 = vmatpush1.msra.mxu0 0.0
    %2757 = vmatprep.subr.mxu0 0.0
    %2758 = vmatpush1.msra.mxu0 0.0
    %2759 = vmatprep.subr.mxu0 0.0
    %2760 = vmatpush1.msra.mxu0 0.0
    %2761 = vmatprep.subr.mxu0 0.0
    %2762 = vmatpush1.msra.mxu0 0.0
    %2763 = vmatprep.mubr.f32.mxu0 0.0
    %2764 = vmatmul.mubr.f32.gmra.mrb[0].mxu0 %v2694
    %v2765 = vpop.f32.mrb[0].mxu0
    %v2766 = vadd.f32 0.0, %v2765
    %v2767 = vpop.f32.mrb[0].mxu0
    %2768 = vmatprep.mubr.f32.mxu0 0.0
    %2769 = vmatmul.mubr.f32.gmra.mrb[0].mxu0 %v2697
    %v2770 = vpop.f32.mrb[0].mxu0
    %v2771 = vadd.f32 0.0, %v2770
    %v2772 = vpop.f32.mrb[0].mxu0
    %2773 = vdwg.mxu0
    %v2775 = vsel %vm423, %v2610, 0
    %v2778 = vsel %vm423, %v2615, 0
    %2780 = vmatprep.subr.mxu0 0.0
    %2781 = vmatpush1.msra.mxu0 %v193
    %2782 = vmatprep.subr.mxu0 0.0
    %2783 = vmatpush1.msra.mxu0 %v194
    %2784 = vmatprep.subr.mxu0 0.0
    %2785 = vmatpush1.msra.mxu0 %v195
    %2786 = vmatprep.subr.mxu0 0.0
    %2787 = vmatpush1.msra.mxu0 %v196
    %2788 = vmatprep.subr.mxu0 0.0
    %2789 = vmatpush1.msra.mxu0 0.0
    %2790 = vmatprep.subr.mxu0 0.0
    %2791 = vmatpush1.msra.mxu0 0.0
    %2792 = vmatprep.subr.mxu0 0.0
    %2793 = vmatpush1.msra.mxu0 0.0
    %2794 = vmatprep.subr.mxu0 0.0
    %2795 = vmatpush1.msra.mxu0 0.0
    %2796 = vmatprep.subr.mxu0 0.0
    %2797 = vmatpush1.msra.mxu0 0.0
    %2798 = vmatprep.subr.mxu0 0.0
    %2799 = vmatpush1.msra.mxu0 0.0
    %2800 = vmatprep.subr.mxu0 0.0
    %2801 = vmatpush1.msra.mxu0 0.0
    %2802 = vmatprep.subr.mxu0 0.0
    %2803 = vmatpush1.msra.mxu0 0.0
    %2804 = vmatprep.subr.mxu0 0.0
    %2805 = vmatpush1.msra.mxu0 0.0
    %2806 = vmatprep.subr.mxu0 0.0
    %2807 = vmatpush1.msra.mxu0 0.0
    %2808 = vmatprep.subr.mxu0 0.0
    %2809 = vmatpush1.msra.mxu0 0.0
    %2810 = vmatprep.subr.mxu0 0.0
    %2811 = vmatpush1.msra.mxu0 0.0
    %2812 = vmatprep.subr.mxu0 0.0
    %2813 = vmatpush1.msra.mxu0 0.0
    %2814 = vmatprep.subr.mxu0 0.0
    %2815 = vmatpush1.msra.mxu0 0.0
    %2816 = vmatprep.subr.mxu0 0.0
    %2817 = vmatpush1.msra.mxu0 0.0
    %2818 = vmatprep.subr.mxu0 0.0
    %2819 = vmatpush1.msra.mxu0 0.0
    %2820 = vmatprep.subr.mxu0 0.0
    %2821 = vmatpush1.msra.mxu0 0.0
    %2822 = vmatprep.subr.mxu0 0.0
    %2823 = vmatpush1.msra.mxu0 0.0
    %2824 = vmatprep.subr.mxu0 0.0
    %2825 = vmatpush1.msra.mxu0 0.0
    %2826 = vmatprep.subr.mxu0 0.0
    %2827 = vmatpush1.msra.mxu0 0.0
    %2828 = vmatprep.subr.mxu0 0.0
    %2829 = vmatpush1.msra.mxu0 0.0
    %2830 = vmatprep.subr.mxu0 0.0
    %2831 = vmatpush1.msra.mxu0 0.0
    %2832 = vmatprep.subr.mxu0 0.0
    %2833 = vmatpush1.msra.mxu0 0.0
    %2834 = vmatprep.subr.mxu0 0.0
    %2835 = vmatpush1.msra.mxu0 0.0
    %2836 = vmatprep.subr.mxu0 0.0
    %2837 = vmatpush1.msra.mxu0 0.0
    %2838 = vmatprep.subr.mxu0 0.0
    %2839 = vmatpush1.msra.mxu0 0.0
    %2840 = vmatprep.subr.mxu0 0.0
    %2841 = vmatpush1.msra.mxu0 0.0
    %2842 = vmatprep.subr.mxu0 0.0
    %2843 = vmatpush1.msra.mxu0 0.0
    %2844 = vmatprep.mubr.f32.mxu0 0.0
    %2845 = vmatmul.mubr.f32.gmra.mrb[0].mxu0 %v2775
    %v2846 = vpop.f32.mrb[0].mxu0
    %v2847 = vadd.f32 %v2766, %v2846
    %v2848 = vpop.f32.mrb[0].mxu0
    %2849 = vmatprep.mubr.f32.mxu0 0.0
    %2850 = vmatmul.mubr.f32.gmra.mrb[0].mxu0 %v2778
    %v2851 = vpop.f32.mrb[0].mxu0
    %v2852 = vadd.f32 %v2771, %v2851
    %v2853 = vpop.f32.mrb[0].mxu0
    %2854 = vdwg.mxu0
    %v2855 = vadd.f32 %v2847, %v659
    %v2856 = vadd.f32 %v2852, %v664
    %v2857 = vadd.f32 %v2855, %v673
    %v2858 = vadd.f32 %v2856, %v673
    %v2859 = vmax.f32 %v2857, 0.0
    %v2860 = vmax.f32 %v2858, 0.0
    %v2862 = vsel %vm685, %v2859, 0
    %v2865 = vsel %vm685, %v2860, 0
    %2867 = vmatprep.subr.mxu0 0.0
    %2868 = vmatpush1.msra.mxu0 %v204
    %2869 = vmatprep.subr.mxu0 0.0
    %2870 = vmatpush1.msra.mxu0 %v205
    %2871 = vmatprep.subr.mxu0 0.0
    %2872 = vmatpush1.msra.mxu0 %v206
    %2873 = vmatprep.subr.mxu0 0.0
    %2874 = vmatpush1.msra.mxu0 %v207
    %2875 = vmatprep.subr.mxu0 0.0
    %2876 = vmatpush1.msra.mxu0 %v208
    %2877 = vmatprep.subr.mxu0 0.0
    %2878 = vmatpush1.msra.mxu0 %v209
    %2879 = vmatprep.subr.mxu0 0.0
    %2880 = vmatpush1.msra.mxu0 %v210
    %2881 = vmatprep.subr.mxu0 0.0
    %2882 = vmatpush1.msra.mxu0 %v211
    %2883 = vmatprep.subr.mxu0 0.0
    %2884 = vmatpush1.msra.mxu0 0.0
    %2885 = vmatprep.subr.mxu0 0.0
    %2886 = vmatpush1.msra.mxu0 0.0
    %2887 = vmatprep.subr.mxu0 0.0
    %2888 = vmatpush1.msra.mxu0 0.0
    %2889 = vmatprep.subr.mxu0 0.0
    %2890 = vmatpush1.msra.mxu0 0.0
    %2891 = vmatprep.subr.mxu0 0.0
    %2892 = vmatpush1.msra.mxu0 0.0
    %2893 = vmatprep.subr.mxu0 0.0
    %2894 = vmatpush1.msra.mxu0 0.0
    %2895 = vmatprep.subr.mxu0 0.0
    %2896 = vmatpush1.msra.mxu0 0.0
    %2897 = vmatprep.subr.mxu0 0.0
    %2898 = vmatpush1.msra.mxu0 0.0
    %2899 = vmatprep.subr.mxu0 0.0
    %2900 = vmatpush1.msra.mxu0 0.0
    %2901 = vmatprep.subr.mxu0 0.0
    %2902 = vmatpush1.msra.mxu0 0.0
    %2903 = vmatprep.subr.mxu0 0.0
    %2904 = vmatpush1.msra.mxu0 0.0
    %2905 = vmatprep.subr.mxu0 0.0
    %2906 = vmatpush1.msra.mxu0 0.0
    %2907 = vmatprep.subr.mxu0 0.0
    %2908 = vmatpush1.msra.mxu0 0.0
    %2909 = vmatprep.subr.mxu0 0.0
    %2910 = vmatpush1.msra.mxu0 0.0
    %2911 = vmatprep.subr.mxu0 0.0
    %2912 = vmatpush1.msra.mxu0 0.0
    %2913 = vmatprep.subr.mxu0 0.0
    %2914 = vmatpush1.msra.mxu0 0.0
    %2915 = vmatprep.subr.mxu0 0.0
    %2916 = vmatpush1.msra.mxu0 0.0
    %2917 = vmatprep.subr.mxu0 0.0
    %2918 = vmatpush1.msra.mxu0 0.0
    %2919 = vmatprep.subr.mxu0 0.0
    %2920 = vmatpush1.msra.mxu0 0.0
    %2921 = vmatprep.subr.mxu0 0.0
    %2922 = vmatpush1.msra.mxu0 0.0
    %2923 = vmatprep.subr.mxu0 0.0
    %2924 = vmatpush1.msra.mxu0 0.0
    %2925 = vmatprep.subr.mxu0 0.0
    %2926 = vmatpush1.msra.mxu0 0.0
    %2927 = vmatprep.subr.mxu0 0.0
    %2928 = vmatpush1.msra.mxu0 0.0
    %2929 = vmatprep.subr.mxu0 0.0
    %2930 = vmatpush1.msra.mxu0 0.0
    %2931 = vmatprep.mubr.f32.mxu0 0.0
    %2932 = vmatmul.mubr.f32.gmra.mrb[0].mxu0 %v2862
    %v2933 = vpop.f32.mrb[0].mxu0
    %v2934 = vadd.f32 %v683, %v2933
    %v2935 = vpop.f32.mrb[0].mxu0
    %2936 = vmatprep.mubr.f32.mxu0 0.0
    %2937 = vmatmul.mubr.f32.gmra.mrb[0].mxu0 %v2865
    %v2938 = vpop.f32.mrb[0].mxu0
    %v2939 = vadd.f32 %v683, %v2938
    %v2940 = vpop.f32.mrb[0].mxu0
    %2941 = vdwg.mxu0
    %v2942 = vmax.f32 %v2934, 0.0
    %v2943 = vmax.f32 %v2939, 0.0
    %v2945 = vsel %vm685, %v2942, 0
    %v2948 = vsel %vm685, %v2943, 0
    %2950 = vmatprep.subr.mxu0 0.0
    %2951 = vmatpush1.msra.mxu0 %v213
    %2952 = vmatprep.subr.mxu0 0.0
    %2953 = vmatpush1.msra.mxu0 %v214
    %2954 = vmatprep.subr.mxu0 0.0
    %2955 = vmatpush1.msra.mxu0 %v215
    %2956 = vmatprep.subr.mxu0 0.0
    %2957 = vmatpush1.msra.mxu0 %v216
    %2958 = vmatprep.subr.mxu0 0.0
    %2959 = vmatpush1.msra.mxu0 %v217
    %2960 = vmatprep.subr.mxu0 0.0
    %2961 = vmatpush1.msra.mxu0 %v218
    %2962 = vmatprep.subr.mxu0 0.0
    %2963 = vmatpush1.msra.mxu0 %v219
    %2964 = vmatprep.subr.mxu0 0.0
    %2965 = vmatpush1.msra.mxu0 %v220
    %2966 = vmatprep.subr.mxu0 0.0
    %2967 = vmatpush1.msra.mxu0 0.0
    %2968 = vmatprep.subr.mxu0 0.0
    %2969 = vmatpush1.msra.mxu0 0.0
    %2970 = vmatprep.subr.mxu0 0.0
    %2971 = vmatpush1.msra.mxu0 0.0
    %2972 = vmatprep.subr.mxu0 0.0
    %2973 = vmatpush1.msra.mxu0 0.0
    %2974 = vmatprep.subr.mxu0 0.0
    %2975 = vmatpush1.msra.mxu0 0.0
    %2976 = vmatprep.subr.mxu0 0.0
    %2977 = vmatpush1.msra.mxu0 0.0
    %2978 = vmatprep.subr.mxu0 0.0
    %2979 = vmatpush1.msra.mxu0 0.0
    %2980 = vmatprep.subr.mxu0 0.0
    %2981 = vmatpush1.msra.mxu0 0.0
    %2982 = vmatprep.subr.mxu0 0.0
    %2983 = vmatpush1.msra.mxu0 0.0
    %2984 = vmatprep.subr.mxu0 0.0
    %2985 = vmatpush1.msra.mxu0 0.0
    %2986 = vmatprep.subr.mxu0 0.0
    %2987 = vmatpush1.msra.mxu0 0.0
    %2988 = vmatprep.subr.mxu0 0.0
    %2989 = vmatpush1.msra.mxu0 0.0
    %2990 = vmatprep.subr.mxu0 0.0
    %2991 = vmatpush1.msra.mxu0 0.0
    %2992 = vmatprep.subr.mxu0 0.0
    %2993 = vmatpush1.msra.mxu0 0.0
    %2994 = vmatprep.subr.mxu0 0.0
    %2995 = vmatpush1.msra.mxu0 0.0
    %2996 = vmatprep.subr.mxu0 0.0
    %2997 = vmatpush1.msra.mxu0 0.0
    %2998 = vmatprep.subr.mxu0 0.0
    %2999 = vmatpush1.msra.mxu0 0.0
    %3000 = vmatprep.subr.mxu0 0.0
    %3001 = vmatpush1.msra.mxu0 0.0
    %3002 = vmatprep.subr.mxu0 0.0
    %3003 = vmatpush1.msra.mxu0 0.0
    %3004 = vmatprep.subr.mxu0 0.0
    %3005 = vmatpush1.msra.mxu0 0.0
    %3006 = vmatprep.subr.mxu0 0.0
    %3007 = vmatpush1.msra.mxu0 0.0
    %3008 = vmatprep.subr.mxu0 0.0
    %3009 = vmatpush1.msra.mxu0 0.0
    %3010 = vmatprep.subr.mxu0 0.0
    %3011 = vmatpush1.msra.mxu0 0.0
    %3012 = vmatprep.subr.mxu0 0.0
    %3013 = vmatpush1.msra.mxu0 0.0
    %3014 = vmatprep.mubr.f32.mxu0 0.0
    %3015 = vmatmul.mubr.f32.gmra.mrb[0].mxu0 %v2945
    %v3016 = vpop.f32.mrb[0].mxu0
    %v3017 = vadd.f32 %v773, %v3016
    %v3018 = vpop.f32.mrb[0].mxu0
    %3019 = vmatprep.mubr.f32.mxu0 0.0
    %3020 = vmatmul.mubr.f32.gmra.mrb[0].mxu0 %v2948
    %v3021 = vpop.f32.mrb[0].mxu0
    %v3022 = vadd.f32 %v773, %v3021
    %v3023 = vpop.f32.mrb[0].mxu0
    %3024 = vdwg.mxu0
    %3025 = vmatprep.subr.mxu0 0.0
    %3026 = vmatpush1.msra.mxu0 %v3017
    %3027 = vmatprep.subr.mxu0 0.0
    %3028 = vmatpush1.msra.mxu0 %v3022
    %3029 = vmatprep.subr.mxu0 0.0
    %3030 = vmatpush1.msra.mxu0 0.0
    %3031 = vmatprep.subr.mxu0 0.0
    %3032 = vmatpush1.msra.mxu0 0.0
    %3033 = vmatprep.subr.mxu0 0.0
    %3034 = vmatpush1.msra.mxu0 0.0
    %3035 = vmatprep.subr.mxu0 0.0
    %3036 = vmatpush1.msra.mxu0 0.0
    %3037 = vmatprep.subr.mxu0 0.0
    %3038 = vmatpush1.msra.mxu0 0.0
    %3039 = vmatprep.subr.mxu0 0.0
    %3040 = vmatpush1.msra.mxu0 0.0
    %3041 = vmatprep.subr.mxu0 0.0
    %3042 = vmatpush1.msra.mxu0 0.0
    %3043 = vmatprep.subr.mxu0 0.0
    %3044 = vmatpush1.msra.mxu0 0.0
    %3045 = vmatprep.subr.mxu0 0.0
    %3046 = vmatpush1.msra.mxu0 0.0
    %3047 = vmatprep.subr.mxu0 0.0
    %3048 = vmatpush1.msra.mxu0 0.0
    %3049 = vmatprep.subr.mxu0 0.0
    %3050 = vmatpush1.msra.mxu0 0.0
    %3051 = vmatprep.subr.mxu0 0.0
    %3052 = vmatpush1.msra.mxu0 0.0
    %3053 = vmatprep.subr.mxu0 0.0
    %3054 = vmatpush1.msra.mxu0 0.0
    %3055 = vmatprep.subr.mxu0 0.0
    %3056 = vmatpush1.msra.mxu0 0.0
    %3057 = vmatprep.subr.mxu0 0.0
    %3058 = vmatpush1.msra.mxu0 0.0
    %3059 = vmatprep.subr.mxu0 0.0
    %3060 = vmatpush1.msra.mxu0 0.0
    %3061 = vmatprep.subr.mxu0 0.0
    %3062 = vmatpush1.msra.mxu0 0.0
    %3063 = vmatprep.subr.mxu0 0.0
    %3064 = vmatpush1.msra.mxu0 0.0
    %3065 = vmatprep.subr.mxu0 0.0
    %3066 = vmatpush1.msra.mxu0 0.0
    %3067 = vmatprep.subr.mxu0 0.0
    %3068 = vmatpush1.msra.mxu0 0.0
    %3069 = vmatprep.subr.mxu0 0.0
    %3070 = vmatpush1.msra.mxu0 0.0
    %3071 = vmatprep.subr.mxu0 0.0
    %3072 = vmatpush1.msra.mxu0 0.0
    %3073 = vmatprep.subr.mxu0 0.0
    %3074 = vmatpush1.msra.mxu0 0.0
    %3075 = vmatprep.subr.mxu0 0.0
    %3076 = vmatpush1.msra.mxu0 0.0
    %3077 = vmatprep.subr.mxu0 0.0
    %3078 = vmatpush1.msra.mxu0 0.0
    %3079 = vmatprep.subr.mxu0 0.0
    %3080 = vmatpush1.msra.mxu0 0.0
    %3081 = vmatprep.subr.mxu0 0.0
    %3082 = vmatpush1.msra.mxu0 0.0
    %3083 = vmatprep.subr.mxu0 0.0
    %3084 = vmatpush1.msra.mxu0 0.0
    %3085 = vmatprep.subr.mxu0 0.0
    %3086 = vmatpush1.msra.mxu0 0.0
    %3087 = vmatprep.subr.mxu0 0.0
    %3088 = vmatpush1.msra.mxu0 0.0
    %3089 = vmatprep.mubr.f32.mxu0 0.0
    %3090 = vmatmul.mubr.f32.gmra.mrb[0].mxu0 %v857
    %v3091 = vpop.f32.mrb[0].mxu0
    %v3092 = vadd.f32 0.0, %v3091
    %v3093 = vpop.f32.mrb[0].mxu0
    %3094 = vmatprep.mubr.f32.mxu0 0.0
    %3095 = vmatmul.mubr.f32.gmra.mrb[0].mxu0 %v860
    %v3096 = vpop.f32.mrb[0].mxu0
    %v3097 = vadd.f32 0.0, %v3096
    %v3098 = vpop.f32.mrb[0].mxu0
    %3099 = vdwg.mxu0
    %v3101 = vsel %vm423, %v3092, 0
    %v3104 = vsel %vm423, %v3097, 0
    %3106 = vmatprep.subr.mxu0 0.0
    %3107 = vmatpush1.msra.mxu0 %v222
    %3108 = vmatprep.subr.mxu0 0.0
    %3109 = vmatpush1.msra.mxu0 %v223
    %3110 = vmatprep.subr.mxu0 0.0
    %3111 = vmatpush1.msra.mxu0 %v224
    %3112 = vmatprep.subr.mxu0 0.0
    %3113 = vmatpush1.msra.mxu0 %v225
    %3114 = vmatprep.subr.mxu0 0.0
    %3115 = vmatpush1.msra.mxu0 0.0
    %3116 = vmatprep.subr.mxu0 0.0
    %3117 = vmatpush1.msra.mxu0 0.0
    %3118 = vmatprep.subr.mxu0 0.0
    %3119 = vmatpush1.msra.mxu0 0.0
    %3120 = vmatprep.subr.mxu0 0.0
    %3121 = vmatpush1.msra.mxu0 0.0
    %3122 = vmatprep.subr.mxu0 0.0
    %3123 = vmatpush1.msra.mxu0 0.0
    %3124 = vmatprep.subr.mxu0 0.0
    %3125 = vmatpush1.msra.mxu0 0.0
    %3126 = vmatprep.subr.mxu0 0.0
    %3127 = vmatpush1.msra.mxu0 0.0
    %3128 = vmatprep.subr.mxu0 0.0
    %3129 = vmatpush1.msra.mxu0 0.0
    %3130 = vmatprep.subr.mxu0 0.0
    %3131 = vmatpush1.msra.mxu0 0.0
    %3132 = vmatprep.subr.mxu0 0.0
    %3133 = vmatpush1.msra.mxu0 0.0
    %3134 = vmatprep.subr.mxu0 0.0
    %3135 = vmatpush1.msra.mxu0 0.0
    %3136 = vmatprep.subr.mxu0 0.0
    %3137 = vmatpush1.msra.mxu0 0.0
    %3138 = vmatprep.subr.mxu0 0.0
    %3139 = vmatpush1.msra.mxu0 0.0
    %3140 = vmatprep.subr.mxu0 0.0
    %3141 = vmatpush1.msra.mxu0 0.0
    %3142 = vmatprep.subr.mxu0 0.0
    %3143 = vmatpush1.msra.mxu0 0.0
    %3144 = vmatprep.subr.mxu0 0.0
    %3145 = vmatpush1.msra.mxu0 0.0
    %3146 = vmatprep.subr.mxu0 0.0
    %3147 = vmatpush1.msra.mxu0 0.0
    %3148 = vmatprep.subr.mxu0 0.0
    %3149 = vmatpush1.msra.mxu0 0.0
    %3150 = vmatprep.subr.mxu0 0.0
    %3151 = vmatpush1.msra.mxu0 0.0
    %3152 = vmatprep.subr.mxu0 0.0
    %3153 = vmatpush1.msra.mxu0 0.0
    %3154 = vmatprep.subr.mxu0 0.0
    %3155 = vmatpush1.msra.mxu0 0.0
    %3156 = vmatprep.subr.mxu0 0.0
    %3157 = vmatpush1.msra.mxu0 0.0
    %3158 = vmatprep.subr.mxu0 0.0
    %3159 = vmatpush1.msra.mxu0 0.0
    %3160 = vmatprep.subr.mxu0 0.0
    %3161 = vmatpush1.msra.mxu0 0.0
    %3162 = vmatprep.subr.mxu0 0.0
    %3163 = vmatpush1.msra.mxu0 0.0
    %3164 = vmatprep.subr.mxu0 0.0
    %3165 = vmatpush1.msra.mxu0 0.0
    %3166 = vmatprep.subr.mxu0 0.0
    %3167 = vmatpush1.msra.mxu0 0.0
    %3168 = vmatprep.subr.mxu0 0.0
    %3169 = vmatpush1.msra.mxu0 0.0
    %3170 = vmatprep.mubr.f32.mxu0 0.0
    %3171 = vmatmul.mubr.f32.gmra.mrb[0].mxu0 %v3101
    %v3172 = vpop.f32.mrb[0].mxu0
    %v3173 = vadd.f32 %v941, %v3172
    %v3174 = vpop.f32.mrb[0].mxu0
    %3175 = vmatprep.mubr.f32.mxu0 0.0
    %3176 = vmatmul.mubr.f32.gmra.mrb[0].mxu0 %v3104
    %v3177 = vpop.f32.mrb[0].mxu0
    %v3178 = vadd.f32 %v941, %v3177
    %v3179 = vpop.f32.mrb[0].mxu0
    %3180 = vdwg.mxu0
    %v3182 = vsel %vm423, %v2541, 0
    %v3185 = vsel %vm423, %v2542, 0
    %3187 = vmatprep.subr.mxu0 0.0
    %3188 = vmatpush1.msra.mxu0 %v236
    %3189 = vmatprep.subr.mxu0 0.0
    %3190 = vmatpush1.msra.mxu0 %v237
    %3191 = vmatprep.subr.mxu0 0.0
    %3192 = vmatpush1.msra.mxu0 %v238
    %3193 = vmatprep.subr.mxu0 0.0
    %3194 = vmatpush1.msra.mxu0 %v239
    %3195 = vmatprep.subr.mxu0 0.0
    %3196 = vmatpush1.msra.mxu0 0.0
    %3197 = vmatprep.subr.mxu0 0.0
    %3198 = vmatpush1.msra.mxu0 0.0
    %3199 = vmatprep.subr.mxu0 0.0
    %3200 = vmatpush1.msra.mxu0 0.0
    %3201 = vmatprep.subr.mxu0 0.0
    %3202 = vmatpush1.msra.mxu0 0.0
    %3203 = vmatprep.subr.mxu0 0.0
    %3204 = vmatpush1.msra.mxu0 0.0
    %3205 = vmatprep.subr.mxu0 0.0
    %3206 = vmatpush1.msra.mxu0 0.0
    %3207 = vmatprep.subr.mxu0 0.0
    %3208 = vmatpush1.msra.mxu0 0.0
    %3209 = vmatprep.subr.mxu0 0.0
    %3210 = vmatpush1.msra.mxu0 0.0
    %3211 = vmatprep.subr.mxu0 0.0
    %3212 = vmatpush1.msra.mxu0 0.0
    %3213 = vmatprep.subr.mxu0 0.0
    %3214 = vmatpush1.msra.mxu0 0.0
    %3215 = vmatprep.subr.mxu0 0.0
    %3216 = vmatpush1.msra.mxu0 0.0
    %3217 = vmatprep.subr.mxu0 0.0
    %3218 = vmatpush1.msra.mxu0 0.0
    %3219 = vmatprep.subr.mxu0 0.0
    %3220 = vmatpush1.msra.mxu0 0.0
    %3221 = vmatprep.subr.mxu0 0.0
    %3222 = vmatpush1.msra.mxu0 0.0
    %3223 = vmatprep.subr.mxu0 0.0
    %3224 = vmatpush1.msra.mxu0 0.0
    %3225 = vmatprep.subr.mxu0 0.0
    %3226 = vmatpush1.msra.mxu0 0.0
    %3227 = vmatprep.subr.mxu0 0.0
    %3228 = vmatpush1.msra.mxu0 0.0
    %3229 = vmatprep.subr.mxu0 0.0
    %3230 = vmatpush1.msra.mxu0 0.0
    %3231 = vmatprep.subr.mxu0 0.0
    %3232 = vmatpush1.msra.mxu0 0.0
    %3233 = vmatprep.subr.mxu0 0.0
    %3234 = vmatpush1.msra.mxu0 0.0
    %3235 = vmatprep.subr.mxu0 0.0
    %3236 = vmatpush1.msra.mxu0 0.0
    %3237 = vmatprep.subr.mxu0 0.0
    %3238 = vmatpush1.msra.mxu0 0.0
    %3239 = vmatprep.subr.mxu0 0.0
    %3240 = vmatpush1.msra.mxu0 0.0
    %3241 = vmatprep.subr.mxu0 0.0
    %3242 = vmatpush1.msra.mxu0 0.0
    %3243 = vmatprep.subr.mxu0 0.0
    %3244 = vmatpush1.msra.mxu0 0.0
    %3245 = vmatprep.subr.mxu0 0.0
    %3246 = vmatpush1.msra.mxu0 0.0
    %3247 = vmatprep.subr.mxu0 0.0
    %3248 = vmatpush1.msra.mxu0 0.0
    %3249 = vmatprep.subr.mxu0 0.0
    %3250 = vmatpush1.msra.mxu0 0.0
    %3251 = vmatprep.mubr.f32.mxu0 0.0
    %3252 = vmatmul.mubr.f32.gmra.mrb[0].mxu0 %v3182
    %v3253 = vpop.f32.mrb[0].mxu0
    %v3254 = vadd.f32 0.0, %v3253
    %v3255 = vpop.f32.mrb[0].mxu0
    %3256 = vmatprep.mubr.f32.mxu0 0.0
    %3257 = vmatmul.mubr.f32.gmra.mrb[0].mxu0 %v3185
    %v3258 = vpop.f32.mrb[0].mxu0
    %v3259 = vadd.f32 0.0, %v3258
    %v3260 = vpop.f32.mrb[0].mxu0
    %3261 = vdwg.mxu0
    %v3262 = vadd.f32 %v3173, %v3254
    %v3263 = vadd.f32 %v3178, %v3259
    %v3264 = vadd.f32 %v3262, %v1108
    %v3265 = vadd.f32 %v3263, %v1108
    %v3266 = vxor.u32 %v3264, 2147483648
    %v3267 = vxor.u32 %v3265, 2147483648
    %v3268 = vmul.f32 %v3266, 1.442695
    %v3269 = vpow.pop %v3268
    %v3270 = vmul.f32 %v3267, 1.442695
    %v3271 = vpow.pop %v3270
    %v3272 = vadd.f32 %v3269, 1.0
    %v3273 = vadd.f32 %v3271, 1.0
    %v3274 = vrcp.pop %v3272
    %v3275 = vmul.f32 1.0, %v3274
    %v3276 = vrcp.pop %v3273
    %v3277 = vmul.f32 1.0, %v3276
    %3278 = vmatprep.subr.mxu0 0.0
    %3279 = vmatpush1.msra.mxu0 %v227
    %3280 = vmatprep.subr.mxu0 0.0
    %3281 = vmatpush1.msra.mxu0 %v228
    %3282 = vmatprep.subr.mxu0 0.0
    %3283 = vmatpush1.msra.mxu0 %v229
    %3284 = vmatprep.subr.mxu0 0.0
    %3285 = vmatpush1.msra.mxu0 %v230
    %3286 = vmatprep.subr.mxu0 0.0
    %3287 = vmatpush1.msra.mxu0 0.0
    %3288 = vmatprep.subr.mxu0 0.0
    %3289 = vmatpush1.msra.mxu0 0.0
    %3290 = vmatprep.subr.mxu0 0.0
    %3291 = vmatpush1.msra.mxu0 0.0
    %3292 = vmatprep.subr.mxu0 0.0
    %3293 = vmatpush1.msra.mxu0 0.0
    %3294 = vmatprep.subr.mxu0 0.0
    %3295 = vmatpush1.msra.mxu0 0.0
    %3296 = vmatprep.subr.mxu0 0.0
    %3297 = vmatpush1.msra.mxu0 0.0
    %3298 = vmatprep.subr.mxu0 0.0
    %3299 = vmatpush1.msra.mxu0 0.0
    %3300 = vmatprep.subr.mxu0 0.0
    %3301 = vmatpush1.msra.mxu0 0.0
    %3302 = vmatprep.subr.mxu0 0.0
    %3303 = vmatpush1.msra.mxu0 0.0
    %3304 = vmatprep.subr.mxu0 0.0
    %3305 = vmatpush1.msra.mxu0 0.0
    %3306 = vmatprep.subr.mxu0 0.0
    %3307 = vmatpush1.msra.mxu0 0.0
    %3308 = vmatprep.subr.mxu0 0.0
    %3309 = vmatpush1.msra.mxu0 0.0
    %3310 = vmatprep.subr.mxu0 0.0
    %3311 = vmatpush1.msra.mxu0 0.0
    %3312 = vmatprep.subr.mxu0 0.0
    %3313 = vmatpush1.msra.mxu0 0.0
    %3314 = vmatprep.subr.mxu0 0.0
    %3315 = vmatpush1.msra.mxu0 0.0
    %3316 = vmatprep.subr.mxu0 0.0
    %3317 = vmatpush1.msra.mxu0 0.0
    %3318 = vmatprep.subr.mxu0 0.0
    %3319 = vmatpush1.msra.mxu0 0.0
    %3320 = vmatprep.subr.mxu0 0.0
    %3321 = vmatpush1.msra.mxu0 0.0
    %3322 = vmatprep.subr.mxu0 0.0
    %3323 = vmatpush1.msra.mxu0 0.0
    %3324 = vmatprep.subr.mxu0 0.0
    %3325 = vmatpush1.msra.mxu0 0.0
    %3326 = vmatprep.subr.mxu0 0.0
    %3327 = vmatpush1.msra.mxu0 0.0
    %3328 = vmatprep.subr.mxu0 0.0
    %3329 = vmatpush1.msra.mxu0 0.0
    %3330 = vmatprep.subr.mxu0 0.0
    %3331 = vmatpush1.msra.mxu0 0.0
    %3332 = vmatprep.subr.mxu0 0.0
    %3333 = vmatpush1.msra.mxu0 0.0
    %3334 = vmatprep.subr.mxu0 0.0
    %3335 = vmatpush1.msra.mxu0 0.0
    %3336 = vmatprep.subr.mxu0 0.0
    %3337 = vmatpush1.msra.mxu0 0.0
    %3338 = vmatprep.subr.mxu0 0.0
    %3339 = vmatpush1.msra.mxu0 0.0
    %3340 = vmatprep.subr.mxu0 0.0
    %3341 = vmatpush1.msra.mxu0 0.0
    %3342 = vmatprep.mubr.f32.mxu0 0.0
    %3343 = vmatmul.mubr.f32.gmra.mrb[0].mxu0 %v3101
    %v3344 = vpop.f32.mrb[0].mxu0
    %v3345 = vadd.f32 %v1128, %v3344
    %v3346 = vpop.f32.mrb[0].mxu0
    %3347 = vmatprep.mubr.f32.mxu0 0.0
    %3348 = vmatmul.mubr.f32.gmra.mrb[0].mxu0 %v3104
    %v3349 = vpop.f32.mrb[0].mxu0
    %v3350 = vadd.f32 %v1128, %v3349
    %v3351 = vpop.f32.mrb[0].mxu0
    %3352 = vdwg.mxu0
    %3353 = vmatprep.subr.mxu0 0.0
    %3354 = vmatpush1.msra.mxu0 %v241
    %3355 = vmatprep.subr.mxu0 0.0
    %3356 = vmatpush1.msra.mxu0 %v242
    %3357 = vmatprep.subr.mxu0 0.0
    %3358 = vmatpush1.msra.mxu0 %v243
    %3359 = vmatprep.subr.mxu0 0.0
    %3360 = vmatpush1.msra.mxu0 %v244
    %3361 = vmatprep.subr.mxu0 0.0
    %3362 = vmatpush1.msra.mxu0 0.0
    %3363 = vmatprep.subr.mxu0 0.0
    %3364 = vmatpush1.msra.mxu0 0.0
    %3365 = vmatprep.subr.mxu0 0.0
    %3366 = vmatpush1.msra.mxu0 0.0
    %3367 = vmatprep.subr.mxu0 0.0
    %3368 = vmatpush1.msra.mxu0 0.0
    %3369 = vmatprep.subr.mxu0 0.0
    %3370 = vmatpush1.msra.mxu0 0.0
    %3371 = vmatprep.subr.mxu0 0.0
    %3372 = vmatpush1.msra.mxu0 0.0
    %3373 = vmatprep.subr.mxu0 0.0
    %3374 = vmatpush1.msra.mxu0 0.0
    %3375 = vmatprep.subr.mxu0 0.0
    %3376 = vmatpush1.msra.mxu0 0.0
    %3377 = vmatprep.subr.mxu0 0.0
    %3378 = vmatpush1.msra.mxu0 0.0
    %3379 = vmatprep.subr.mxu0 0.0
    %3380 = vmatpush1.msra.mxu0 0.0
    %3381 = vmatprep.subr.mxu0 0.0
    %3382 = vmatpush1.msra.mxu0 0.0
    %3383 = vmatprep.subr.mxu0 0.0
    %3384 = vmatpush1.msra.mxu0 0.0
    %3385 = vmatprep.subr.mxu0 0.0
    %3386 = vmatpush1.msra.mxu0 0.0
    %3387 = vmatprep.subr.mxu0 0.0
    %3388 = vmatpush1.msra.mxu0 0.0
    %3389 = vmatprep.subr.mxu0 0.0
    %3390 = vmatpush1.msra.mxu0 0.0
    %3391 = vmatprep.subr.mxu0 0.0
    %3392 = vmatpush1.msra.mxu0 0.0
    %3393 = vmatprep.subr.mxu0 0.0
    %3394 = vmatpush1.msra.mxu0 0.0
    %3395 = vmatprep.subr.mxu0 0.0
    %3396 = vmatpush1.msra.mxu0 0.0
    %3397 = vmatprep.subr.mxu0 0.0
    %3398 = vmatpush1.msra.mxu0 0.0
    %3399 = vmatprep.subr.mxu0 0.0
    %3400 = vmatpush1.msra.mxu0 0.0
    %3401 = vmatprep.subr.mxu0 0.0
    %3402 = vmatpush1.msra.mxu0 0.0
    %3403 = vmatprep.subr.mxu0 0.0
    %3404 = vmatpush1.msra.mxu0 0.0
    %3405 = vmatprep.subr.mxu0 0.0
    %3406 = vmatpush1.msra.mxu0 0.0
    %3407 = vmatprep.subr.mxu0 0.0
    %3408 = vmatpush1.msra.mxu0 0.0
    %3409 = vmatprep.subr.mxu0 0.0
    %3410 = vmatpush1.msra.mxu0 0.0
    %3411 = vmatprep.subr.mxu0 0.0
    %3412 = vmatpush1.msra.mxu0 0.0
    %3413 = vmatprep.subr.mxu0 0.0
    %3414 = vmatpush1.msra.mxu0 0.0
    %3415 = vmatprep.subr.mxu0 0.0
    %3416 = vmatpush1.msra.mxu0 0.0
    %3417 = vmatprep.mubr.f32.mxu0 0.0
    %3418 = vmatmul.mubr.f32.gmra.mrb[0].mxu0 %v3182
    %v3419 = vpop.f32.mrb[0].mxu0
    %v3420 = vadd.f32 0.0, %v3419
    %v3421 = vpop.f32.mrb[0].mxu0
    %3422 = vmatprep.mubr.f32.mxu0 0.0
    %3423 = vmatmul.mubr.f32.gmra.mrb[0].mxu0 %v3185
    %v3424 = vpop.f32.mrb[0].mxu0
    %v3425 = vadd.f32 0.0, %v3424
    %v3426 = vpop.f32.mrb[0].mxu0
    %3427 = vdwg.mxu0
    %v3428 = vadd.f32 %v3345, %v3420
    %v3429 = vadd.f32 %v3350, %v3425
    %v3430 = vadd.f32 %v3428, %v1286
    %v3431 = vadd.f32 %v3429, %v1286
    %v3432 = vxor.u32 %v3430, 2147483648
    %v3433 = vxor.u32 %v3431, 2147483648
    %v3434 = vmul.f32 %v3432, 1.442695
    %v3435 = vpow.pop %v3434
    %v3436 = vmul.f32 %v3433, 1.442695
    %v3437 = vpow.pop %v3436
    %v3438 = vadd.f32 %v3435, 1.0
    %v3439 = vadd.f32 %v3437, 1.0
    %v3440 = vrcp.pop %v3438
    %v3441 = vmul.f32 1.0, %v3440
    %v3442 = vrcp.pop %v3439
    %v3443 = vmul.f32 1.0, %v3442
    %3444 = vmatprep.subr.mxu0 0.0
    %3445 = vmatpush1.msra.mxu0 %v232
    %3446 = vmatprep.subr.mxu0 0.0
    %3447 = vmatpush1.msra.mxu0 %v233
    %3448 = vmatprep.subr.mxu0 0.0
    %3449 = vmatpush1.msra.mxu0 %v234
    %3450 = vmatprep.subr.mxu0 0.0
    %3451 = vmatpush1.msra.mxu0 %v235
    %3452 = vmatprep.subr.mxu0 0.0
    %3453 = vmatpush1.msra.mxu0 0.0
    %3454 = vmatprep.subr.mxu0 0.0
    %3455 = vmatpush1.msra.mxu0 0.0
    %3456 = vmatprep.subr.mxu0 0.0
    %3457 = vmatpush1.msra.mxu0 0.0
    %3458 = vmatprep.subr.mxu0 0.0
    %3459 = vmatpush1.msra.mxu0 0.0
    %3460 = vmatprep.subr.mxu0 0.0
    %3461 = vmatpush1.msra.mxu0 0.0
    %3462 = vmatprep.subr.mxu0 0.0
    %3463 = vmatpush1.msra.mxu0 0.0
    %3464 = vmatprep.subr.mxu0 0.0
    %3465 = vmatpush1.msra.mxu0 0.0
    %3466 = vmatprep.subr.mxu0 0.0
    %3467 = vmatpush1.msra.mxu0 0.0
    %3468 = vmatprep.subr.mxu0 0.0
    %3469 = vmatpush1.msra.mxu0 0.0
    %3470 = vmatprep.subr.mxu0 0.0
    %3471 = vmatpush1.msra.mxu0 0.0
    %3472 = vmatprep.subr.mxu0 0.0
    %3473 = vmatpush1.msra.mxu0 0.0
    %3474 = vmatprep.subr.mxu0 0.0
    %3475 = vmatpush1.msra.mxu0 0.0
    %3476 = vmatprep.subr.mxu0 0.0
    %3477 = vmatpush1.msra.mxu0 0.0
    %3478 = vmatprep.subr.mxu0 0.0
    %3479 = vmatpush1.msra.mxu0 0.0
    %3480 = vmatprep.subr.mxu0 0.0
    %3481 = vmatpush1.msra.mxu0 0.0
    %3482 = vmatprep.subr.mxu0 0.0
    %3483 = vmatpush1.msra.mxu0 0.0
    %3484 = vmatprep.subr.mxu0 0.0
    %3485 = vmatpush1.msra.mxu0 0.0
    %3486 = vmatprep.subr.mxu0 0.0
    %3487 = vmatpush1.msra.mxu0 0.0
    %3488 = vmatprep.subr.mxu0 0.0
    %3489 = vmatpush1.msra.mxu0 0.0
    %3490 = vmatprep.subr.mxu0 0.0
    %3491 = vmatpush1.msra.mxu0 0.0
    %3492 = vmatprep.subr.mxu0 0.0
    %3493 = vmatpush1.msra.mxu0 0.0
    %3494 = vmatprep.subr.mxu0 0.0
    %3495 = vmatpush1.msra.mxu0 0.0
    %3496 = vmatprep.subr.mxu0 0.0
    %3497 = vmatpush1.msra.mxu0 0.0
    %3498 = vmatprep.subr.mxu0 0.0
    %3499 = vmatpush1.msra.mxu0 0.0
    %3500 = vmatprep.subr.mxu0 0.0
    %3501 = vmatpush1.msra.mxu0 0.0
    %3502 = vmatprep.subr.mxu0 0.0
    %3503 = vmatpush1.msra.mxu0 0.0
    %3504 = vmatprep.subr.mxu0 0.0
    %3505 = vmatpush1.msra.mxu0 0.0
    %3506 = vmatprep.subr.mxu0 0.0
    %3507 = vmatpush1.msra.mxu0 0.0
    %3508 = vmatprep.mubr.f32.mxu0 0.0
    %3509 = vmatmul.mubr.f32.gmra.mrb[0].mxu0 %v3101
    %v3510 = vpop.f32.mrb[0].mxu0
    %v3511 = vadd.f32 %v1306, %v3510
    %v3512 = vpop.f32.mrb[0].mxu0
    %3513 = vmatprep.mubr.f32.mxu0 0.0
    %3514 = vmatmul.mubr.f32.gmra.mrb[0].mxu0 %v3104
    %v3515 = vpop.f32.mrb[0].mxu0
    %v3516 = vadd.f32 %v1306, %v3515
    %v3517 = vpop.f32.mrb[0].mxu0
    %3518 = vdwg.mxu0
    %3519 = vmatprep.subr.mxu0 0.0
    %3520 = vmatpush1.msra.mxu0 %v246
    %3521 = vmatprep.subr.mxu0 0.0
    %3522 = vmatpush1.msra.mxu0 %v247
    %3523 = vmatprep.subr.mxu0 0.0
    %3524 = vmatpush1.msra.mxu0 %v248
    %3525 = vmatprep.subr.mxu0 0.0
    %3526 = vmatpush1.msra.mxu0 %v249
    %3527 = vmatprep.subr.mxu0 0.0
    %3528 = vmatpush1.msra.mxu0 0.0
    %3529 = vmatprep.subr.mxu0 0.0
    %3530 = vmatpush1.msra.mxu0 0.0
    %3531 = vmatprep.subr.mxu0 0.0
    %3532 = vmatpush1.msra.mxu0 0.0
    %3533 = vmatprep.subr.mxu0 0.0
    %3534 = vmatpush1.msra.mxu0 0.0
    %3535 = vmatprep.subr.mxu0 0.0
    %3536 = vmatpush1.msra.mxu0 0.0
    %3537 = vmatprep.subr.mxu0 0.0
    %3538 = vmatpush1.msra.mxu0 0.0
    %3539 = vmatprep.subr.mxu0 0.0
    %3540 = vmatpush1.msra.mxu0 0.0
    %3541 = vmatprep.subr.mxu0 0.0
    %3542 = vmatpush1.msra.mxu0 0.0
    %3543 = vmatprep.subr.mxu0 0.0
    %3544 = vmatpush1.msra.mxu0 0.0
    %3545 = vmatprep.subr.mxu0 0.0
    %3546 = vmatpush1.msra.mxu0 0.0
    %3547 = vmatprep.subr.mxu0 0.0
    %3548 = vmatpush1.msra.mxu0 0.0
    %3549 = vmatprep.subr.mxu0 0.0
    %3550 = vmatpush1.msra.mxu0 0.0
    %3551 = vmatprep.subr.mxu0 0.0
    %3552 = vmatpush1.msra.mxu0 0.0
    %3553 = vmatprep.subr.mxu0 0.0
    %3554 = vmatpush1.msra.mxu0 0.0
    %3555 = vmatprep.subr.mxu0 0.0
    %3556 = vmatpush1.msra.mxu0 0.0
    %3557 = vmatprep.subr.mxu0 0.0
    %3558 = vmatpush1.msra.mxu0 0.0
    %3559 = vmatprep.subr.mxu0 0.0
    %3560 = vmatpush1.msra.mxu0 0.0
    %3561 = vmatprep.subr.mxu0 0.0
    %3562 = vmatpush1.msra.mxu0 0.0
    %3563 = vmatprep.subr.mxu0 0.0
    %3564 = vmatpush1.msra.mxu0 0.0
    %3565 = vmatprep.subr.mxu0 0.0
    %3566 = vmatpush1.msra.mxu0 0.0
    %3567 = vmatprep.subr.mxu0 0.0
    %3568 = vmatpush1.msra.mxu0 0.0
    %3569 = vmatprep.subr.mxu0 0.0
    %3570 = vmatpush1.msra.mxu0 0.0
    %3571 = vmatprep.subr.mxu0 0.0
    %3572 = vmatpush1.msra.mxu0 0.0
    %3573 = vmatprep.subr.mxu0 0.0
    %3574 = vmatpush1.msra.mxu0 0.0
    %3575 = vmatprep.subr.mxu0 0.0
    %3576 = vmatpush1.msra.mxu0 0.0
    %3577 = vmatprep.subr.mxu0 0.0
    %3578 = vmatpush1.msra.mxu0 0.0
    %3579 = vmatprep.subr.mxu0 0.0
    %3580 = vmatpush1.msra.mxu0 0.0
    %3581 = vmatprep.subr.mxu0 0.0
    %3582 = vmatpush1.msra.mxu0 0.0
    %3583 = vmatprep.mubr.f32.mxu0 0.0
    %3584 = vmatmul.mubr.f32.gmra.mrb[0].mxu0 %v3182
    %v3585 = vpop.f32.mrb[0].mxu0
    %v3586 = vadd.f32 %v1387, %v3585
    %v3587 = vpop.f32.mrb[0].mxu0
    %3588 = vmatprep.mubr.f32.mxu0 0.0
    %3589 = vmatmul.mubr.f32.gmra.mrb[0].mxu0 %v3185
    %v3590 = vpop.f32.mrb[0].mxu0
    %v3591 = vadd.f32 %v1387, %v3590
    %v3592 = vpop.f32.mrb[0].mxu0
    %3593 = vdwg.mxu0
    %v3594 = vmul.f32 %v3275, %v3586
    %v3595 = vmul.f32 %v3277, %v3591
    %v3596 = vadd.f32 %v3511, %v3594
    %v3597 = vadd.f32 %v3516, %v3595
    %v3598 = vtanh.pop %v3596
    %v3599 = vtanh.pop %v3597
    %v3600 = vsub.f32 1.0, %v3441
    %v3601 = vsub.f32 1.0, %v3443
    %v3602 = vmul.f32 %v3600, %v3598
    %v3603 = vmul.f32 %v3601, %v3599
    %v3604 = vmul.f32 %v3441, %v2541
    %v3605 = vmul.f32 %v3443, %v2542
    %v3606 = vadd.f32 %v3602, %v3604
    %v3607 = vadd.f32 %v3603, %v3605
    %v3609 = vsel %vm260, %v190, 0
    %3611 = vmatprep.subr.mxu0 0.0
    %3612 = vmatpush1.msra.mxu0 %v3606
    %3613 = vmatprep.subr.mxu0 0.0
    %3614 = vmatpush1.msra.mxu0 %v3607
    %3615 = vmatprep.subr.mxu0 0.0
    %3616 = vmatpush1.msra.mxu0 0.0
    %3617 = vmatprep.subr.mxu0 0.0
    %3618 = vmatpush1.msra.mxu0 0.0
    %3619 = vmatprep.subr.mxu0 0.0
    %3620 = vmatpush1.msra.mxu0 0.0
    %3621 = vmatprep.subr.mxu0 0.0
    %3622 = vmatpush1.msra.mxu0 0.0
    %3623 = vmatprep.subr.mxu0 0.0
    %3624 = vmatpush1.msra.mxu0 0.0
    %3625 = vmatprep.subr.mxu0 0.0
    %3626 = vmatpush1.msra.mxu0 0.0
    %3627 = vmatprep.subr.mxu0 0.0
    %3628 = vmatpush1.msra.mxu0 0.0
    %3629 = vmatprep.subr.mxu0 0.0
    %3630 = vmatpush1.msra.mxu0 0.0
    %3631 = vmatprep.subr.mxu0 0.0
    %3632 = vmatpush1.msra.mxu0 0.0
    %3633 = vmatprep.subr.mxu0 0.0
    %3634 = vmatpush1.msra.mxu0 0.0
    %3635 = vmatprep.subr.mxu0 0.0
    %3636 = vmatpush1.msra.mxu0 0.0
    %3637 = vmatprep.subr.mxu0 0.0
    %3638 = vmatpush1.msra.mxu0 0.0
    %3639 = vmatprep.subr.mxu0 0.0
    %3640 = vmatpush1.msra.mxu0 0.0
    %3641 = vmatprep.subr.mxu0 0.0
    %3642 = vmatpush1.msra.mxu0 0.0
    %3643 = vmatprep.subr.mxu0 0.0
    %3644 = vmatpush1.msra.mxu0 0.0
    %3645 = vmatprep.subr.mxu0 0.0
    %3646 = vmatpush1.msra.mxu0 0.0
    %3647 = vmatprep.subr.mxu0 0.0
    %3648 = vmatpush1.msra.mxu0 0.0
    %3649 = vmatprep.subr.mxu0 0.0
    %3650 = vmatpush1.msra.mxu0 0.0
    %3651 = vmatprep.subr.mxu0 0.0
    %3652 = vmatpush1.msra.mxu0 0.0
    %3653 = vmatprep.subr.mxu0 0.0
    %3654 = vmatpush1.msra.mxu0 0.0
    %3655 = vmatprep.subr.mxu0 0.0
    %3656 = vmatpush1.msra.mxu0 0.0
    %3657 = vmatprep.subr.mxu0 0.0
    %3658 = vmatpush1.msra.mxu0 0.0
    %3659 = vmatprep.subr.mxu0 0.0
    %3660 = vmatpush1.msra.mxu0 0.0
    %3661 = vmatprep.subr.mxu0 0.0
    %3662 = vmatpush1.msra.mxu0 0.0
    %3663 = vmatprep.subr.mxu0 0.0
    %3664 = vmatpush1.msra.mxu0 0.0
    %3665 = vmatprep.subr.mxu0 0.0
    %3666 = vmatpush1.msra.mxu0 0.0
    %3667 = vmatprep.subr.mxu0 0.0
    %3668 = vmatpush1.msra.mxu0 0.0
    %3669 = vmatprep.subr.mxu0 0.0
    %3670 = vmatpush1.msra.mxu0 0.0
    %3671 = vmatprep.subr.mxu0 0.0
    %3672 = vmatpush1.msra.mxu0 0.0
    %3673 = vmatprep.subr.mxu0 0.0
    %3674 = vmatpush1.msra.mxu0 0.0
    %3675 = vmatprep.mubr.f32.mxu0 0.0
    %3676 = vmatmul.mubr.f32.gmra.mrb[0].mxu0 %v3609
    %v3677 = vpop.f32.mrb[0].mxu0
    %v3678 = vadd.f32 0.0, %v3677
    %v3679 = vpop.f32.mrb[0].mxu0
    %3680 = vdwg.mxu0
    %v3681 = vld [vmem:[#allocation13] sm:$0xff]
    %v3682 = vld [vmem:[#allocation13 + $0x8] sm:$0xff]
    %v3683 = vld [vmem:[#allocation13 + $0x10] sm:$0xff]
    %v3684 = vld [vmem:[#allocation13 + $0x18] sm:$0xff]
    %v3685 = vld [vmem:[%s5] sm:$0xff]
    %v3686 = vld [vmem:[%s17] sm:$0x3]
    %vm3687 = vcmask 15360
    %v3689 = vsel %vm3687, %v3685, 0
    %vm3691 = vcmask 1041408
    %v3693 = vsel %vm3691, %v3686, 0
    %3695 = vmatprep.subr.mxu0 0.0
    %3696 = vmatpush1.msra.mxu0 %v3693
    %3697 = vmatprep.subr.mxu0 0.0
    %3698 = vmatpush1.msra.mxu0 0.0
    %3699 = vmatprep.subr.mxu0 0.0
    %3700 = vmatpush1.msra.mxu0 0.0
    %3701 = vmatprep.subr.mxu0 0.0
    %3702 = vmatpush1.msra.mxu0 0.0
    %3703 = vmatprep.subr.mxu0 0.0
    %3704 = vmatpush1.msra.mxu0 0.0
    %3705 = vmatprep.subr.mxu0 0.0
    %3706 = vmatpush1.msra.mxu0 0.0
    %3707 = vmatprep.subr.mxu0 0.0
    %3708 = vmatpush1.msra.mxu0 0.0
    %3709 = vmatprep.subr.mxu0 0.0
    %3710 = vmatpush1.msra.mxu0 0.0
    %3711 = vmatprep.subr.mxu0 0.0
    %3712 = vmatpush1.msra.mxu0 0.0
    %3713 = vmatprep.subr.mxu0 0.0
    %3714 = vmatpush1.msra.mxu0 0.0
    %3715 = vmatprep.subr.mxu0 0.0
    %3716 = vmatpush1.msra.mxu0 0.0
    %3717 = vmatprep.subr.mxu0 0.0
    %3718 = vmatpush1.msra.mxu0 0.0
    %3719 = vmatprep.subr.mxu0 0.0
    %3720 = vmatpush1.msra.mxu0 0.0
    %3721 = vmatprep.subr.mxu0 0.0
    %3722 = vmatpush1.msra.mxu0 0.0
    %3723 = vmatprep.subr.mxu0 0.0
    %3724 = vmatpush1.msra.mxu0 0.0
    %3725 = vmatprep.subr.mxu0 0.0
    %3726 = vmatpush1.msra.mxu0 0.0
    %3727 = vmatprep.subr.mxu0 0.0
    %3728 = vmatpush1.msra.mxu0 0.0
    %3729 = vmatprep.subr.mxu0 0.0
    %3730 = vmatpush1.msra.mxu0 0.0
    %3731 = vmatprep.subr.mxu0 0.0
    %3732 = vmatpush1.msra.mxu0 0.0
    %3733 = vmatprep.subr.mxu0 0.0
    %3734 = vmatpush1.msra.mxu0 0.0
    %3735 = vmatprep.subr.mxu0 0.0
    %3736 = vmatpush1.msra.mxu0 0.0
    %3737 = vmatprep.subr.mxu0 0.0
    %3738 = vmatpush1.msra.mxu0 0.0
    %3739 = vmatprep.subr.mxu0 0.0
    %3740 = vmatpush1.msra.mxu0 0.0
    %3741 = vmatprep.subr.mxu0 0.0
    %3742 = vmatpush1.msra.mxu0 0.0
    %3743 = vmatprep.subr.mxu0 0.0
    %3744 = vmatpush1.msra.mxu0 0.0
    %3745 = vmatprep.subr.mxu0 0.0
    %3746 = vmatpush1.msra.mxu0 0.0
    %3747 = vmatprep.subr.mxu0 0.0
    %3748 = vmatpush1.msra.mxu0 0.0
    %3749 = vmatprep.subr.mxu0 0.0
    %3750 = vmatpush1.msra.mxu0 0.0
    %3751 = vmatprep.subr.mxu0 0.0
    %3752 = vmatpush1.msra.mxu0 0.0
    %3753 = vmatprep.subr.mxu0 0.0
    %3754 = vmatpush1.msra.mxu0 0.0
    %3755 = vmatprep.subr.mxu0 0.0
    %3756 = vmatpush1.msra.mxu0 0.0
    %3757 = vmatprep.subr.mxu0 0.0
    %3758 = vmatpush1.msra.mxu0 0.0
    %3759 = vmatprep.mubr.f32.mxu0 0.0
    %3760 = vmatmul.mubr.f32.gmra.mrb[0].mxu0 %v3689
    %v3761 = vpop.f32.mrb[0].mxu0
    %v3762 = vadd.f32 0.0, %v3761
    %v3763 = vpop.f32.mrb[0].mxu0
    %3764 = vdwg.mxu0
    %v3766 = vsel %vm423, %v3678, 0
    %3768 = vmatprep.subr.mxu0 0.0
    %3769 = vmatpush1.msra.mxu0 %v3681
    %3770 = vmatprep.subr.mxu0 0.0
    %3771 = vmatpush1.msra.mxu0 %v3682
    %3772 = vmatprep.subr.mxu0 0.0
    %3773 = vmatpush1.msra.mxu0 %v3683
    %3774 = vmatprep.subr.mxu0 0.0
    %3775 = vmatpush1.msra.mxu0 %v3684
    %3776 = vmatprep.subr.mxu0 0.0
    %3777 = vmatpush1.msra.mxu0 0.0
    %3778 = vmatprep.subr.mxu0 0.0
    %3779 = vmatpush1.msra.mxu0 0.0
    %3780 = vmatprep.subr.mxu0 0.0
    %3781 = vmatpush1.msra.mxu0 0.0
    %3782 = vmatprep.subr.mxu0 0.0
    %3783 = vmatpush1.msra.mxu0 0.0
    %3784 = vmatprep.subr.mxu0 0.0
    %3785 = vmatpush1.msra.mxu0 0.0
    %3786 = vmatprep.subr.mxu0 0.0
    %3787 = vmatpush1.msra.mxu0 0.0
    %3788 = vmatprep.subr.mxu0 0.0
    %3789 = vmatpush1.msra.mxu0 0.0
    %3790 = vmatprep.subr.mxu0 0.0
    %3791 = vmatpush1.msra.mxu0 0.0
    %3792 = vmatprep.subr.mxu0 0.0
    %3793 = vmatpush1.msra.mxu0 0.0
    %3794 = vmatprep.subr.mxu0 0.0
    %3795 = vmatpush1.msra.mxu0 0.0
    %3796 = vmatprep.subr.mxu0 0.0
    %3797 = vmatpush1.msra.mxu0 0.0
    %3798 = vmatprep.subr.mxu0 0.0
    %3799 = vmatpush1.msra.mxu0 0.0
    %3800 = vmatprep.subr.mxu0 0.0
    %3801 = vmatpush1.msra.mxu0 0.0
    %3802 = vmatprep.subr.mxu0 0.0
    %3803 = vmatpush1.msra.mxu0 0.0
    %3804 = vmatprep.subr.mxu0 0.0
    %3805 = vmatpush1.msra.mxu0 0.0
    %3806 = vmatprep.subr.mxu0 0.0
    %3807 = vmatpush1.msra.mxu0 0.0
    %3808 = vmatprep.subr.mxu0 0.0
    %3809 = vmatpush1.msra.mxu0 0.0
    %3810 = vmatprep.subr.mxu0 0.0
    %3811 = vmatpush1.msra.mxu0 0.0
    %3812 = vmatprep.subr.mxu0 0.0
    %3813 = vmatpush1.msra.mxu0 0.0
    %3814 = vmatprep.subr.mxu0 0.0
    %3815 = vmatpush1.msra.mxu0 0.0
    %3816 = vmatprep.subr.mxu0 0.0
    %3817 = vmatpush1.msra.mxu0 0.0
    %3818 = vmatprep.subr.mxu0 0.0
    %3819 = vmatpush1.msra.mxu0 0.0
    %3820 = vmatprep.subr.mxu0 0.0
    %3821 = vmatpush1.msra.mxu0 0.0
    %3822 = vmatprep.subr.mxu0 0.0
    %3823 = vmatpush1.msra.mxu0 0.0
    %3824 = vmatprep.subr.mxu0 0.0
    %3825 = vmatpush1.msra.mxu0 0.0
    %3826 = vmatprep.subr.mxu0 0.0
    %3827 = vmatpush1.msra.mxu0 0.0
    %3828 = vmatprep.subr.mxu0 0.0
    %3829 = vmatpush1.msra.mxu0 0.0
    %3830 = vmatprep.subr.mxu0 0.0
    %3831 = vmatpush1.msra.mxu0 0.0
    %3832 = vmatprep.mubr.f32.mxu0 0.0
    %3833 = vmatmul.mubr.f32.gmra.mrb[0].mxu0 %v3766
    %v3834 = vpop.f32.mrb[0].mxu0
    %v3835 = vadd.f32 %v3762, %v3834
    %v3836 = vpop.f32.mrb[0].mxu0
    %3837 = vdwg.mxu0
    %v3838 = vld [vmem:[%s18] sm:$0x1]
    %v3840 = vlaneseq
    %v3841 = vshrl.u32 %v3840, 7
    %v3842 = vsub.s32 0, %v3841
    %v3843 = vrot.slane %v3838, %v3842
    %v3845 = vadd.f32 %v3835, %v3843
    %v3846 = vmax.f32 %v3845, 0.0
    %v3847 = vld [vmem:[%s19] sm:$0xff]
    %v3848 = vld [vmem:[%s19 + $0x8] sm:$0xff]
    %v3849 = vld [vmem:[%s19 + $0x10] sm:$0xff]
    %v3850 = vld [vmem:[%s19 + $0x18] sm:$0xff]
    %v3851 = vld [vmem:[%s19 + $0x20] sm:$0xff]
    %v3852 = vld [vmem:[%s19 + $0x28] sm:$0xff]
    %v3853 = vld [vmem:[%s19 + $0x30] sm:$0xff]
    %v3854 = vld [vmem:[%s19 + $0x38] sm:$0xff]
    %v3855 = vld [vmem:[%s20] sm:$0x1]
    %v3857 = vlaneseq
    %v3858 = vshrl.u32 %v3857, 7
    %v3859 = vsub.s32 0, %v3858
    %v3860 = vrot.slane %v3855, %v3859
    %v3863 = vsel %vm685, %v3846, 0
    %3865 = vmatprep.subr.mxu0 0.0
    %3866 = vmatpush1.msra.mxu0 %v3847
    %3867 = vmatprep.subr.mxu0 0.0
    %3868 = vmatpush1.msra.mxu0 %v3848
    %3869 = vmatprep.subr.mxu0 0.0
    %3870 = vmatpush1.msra.mxu0 %v3849
    %3871 = vmatprep.subr.mxu0 0.0
    %3872 = vmatpush1.msra.mxu0 %v3850
    %3873 = vmatprep.subr.mxu0 0.0
    %3874 = vmatpush1.msra.mxu0 %v3851
    %3875 = vmatprep.subr.mxu0 0.0
    %3876 = vmatpush1.msra.mxu0 %v3852
    %3877 = vmatprep.subr.mxu0 0.0
    %3878 = vmatpush1.msra.mxu0 %v3853
    %3879 = vmatprep.subr.mxu0 0.0
    %3880 = vmatpush1.msra.mxu0 %v3854
    %3881 = vmatprep.subr.mxu0 0.0
    %3882 = vmatpush1.msra.mxu0 0.0
    %3883 = vmatprep.subr.mxu0 0.0
    %3884 = vmatpush1.msra.mxu0 0.0
    %3885 = vmatprep.subr.mxu0 0.0
    %3886 = vmatpush1.msra.mxu0 0.0
    %3887 = vmatprep.subr.mxu0 0.0
    %3888 = vmatpush1.msra.mxu0 0.0
    %3889 = vmatprep.subr.mxu0 0.0
    %3890 = vmatpush1.msra.mxu0 0.0
    %3891 = vmatprep.subr.mxu0 0.0
    %3892 = vmatpush1.msra.mxu0 0.0
    %3893 = vmatprep.subr.mxu0 0.0
    %3894 = vmatpush1.msra.mxu0 0.0
    %3895 = vmatprep.subr.mxu0 0.0
    %3896 = vmatpush1.msra.mxu0 0.0
    %3897 = vmatprep.subr.mxu0 0.0
    %3898 = vmatpush1.msra.mxu0 0.0
    %3899 = vmatprep.subr.mxu0 0.0
    %3900 = vmatpush1.msra.mxu0 0.0
    %3901 = vmatprep.subr.mxu0 0.0
    %3902 = vmatpush1.msra.mxu0 0.0
    %3903 = vmatprep.subr.mxu0 0.0
    %3904 = vmatpush1.msra.mxu0 0.0
    %3905 = vmatprep.subr.mxu0 0.0
    %3906 = vmatpush1.msra.mxu0 0.0
    %3907 = vmatprep.subr.mxu0 0.0
    %3908 = vmatpush1.msra.mxu0 0.0
    %3909 = vmatprep.subr.mxu0 0.0
    %3910 = vmatpush1.msra.mxu0 0.0
    %3911 = vmatprep.subr.mxu0 0.0
    %3912 = vmatpush1.msra.mxu0 0.0
    %3913 = vmatprep.subr.mxu0 0.0
    %3914 = vmatpush1.msra.mxu0 0.0
    %3915 = vmatprep.subr.mxu0 0.0
    %3916 = vmatpush1.msra.mxu0 0.0
    %3917 = vmatprep.subr.mxu0 0.0
    %3918 = vmatpush1.msra.mxu0 0.0
    %3919 = vmatprep.subr.mxu0 0.0
    %3920 = vmatpush1.msra.mxu0 0.0
    %3921 = vmatprep.subr.mxu0 0.0
    %3922 = vmatpush1.msra.mxu0 0.0
    %3923 = vmatprep.subr.mxu0 0.0
    %3924 = vmatpush1.msra.mxu0 0.0
    %3925 = vmatprep.subr.mxu0 0.0
    %3926 = vmatpush1.msra.mxu0 0.0
    %3927 = vmatprep.subr.mxu0 0.0
    %3928 = vmatpush1.msra.mxu0 0.0
    %3929 = vmatprep.mubr.f32.mxu0 0.0
    %3930 = vmatmul.mubr.f32.gmra.mrb[0].mxu0 %v3863
    %v3931 = vpop.f32.mrb[0].mxu0
    %v3932 = vadd.f32 %v3860, %v3931
    %v3933 = vpop.f32.mrb[0].mxu0
    %3934 = vdwg.mxu0
    %v3935 = vmax.f32 %v3932, 0.0
    %v3936 = vld [vmem:[%s21] sm:$0xff]
    %v3937 = vld [vmem:[%s21 + $0x8] sm:$0xff]
    %v3938 = vld [vmem:[%s21 + $0x10] sm:$0xff]
    %v3939 = vld [vmem:[%s21 + $0x18] sm:$0xff]
    %v3940 = vld [vmem:[%s21 + $0x20] sm:$0xff]
    %v3941 = vld [vmem:[%s21 + $0x28] sm:$0xff]
    %v3942 = vld [vmem:[%s21 + $0x30] sm:$0xff]
    %v3943 = vld [vmem:[%s21 + $0x38] sm:$0xff]
    %v3944 = vld [vmem:[%s22] sm:$0x1]
    %v3946 = vlaneseq
    %v3947 = vshrl.u32 %v3946, 7
    %v3948 = vsub.s32 0, %v3947
    %v3949 = vrot.slane %v3944, %v3948
    %v3952 = vsel %vm685, %v3935, 0
    %3954 = vmatprep.subr.mxu0 0.0
    %3955 = vmatpush1.msra.mxu0 %v3936
    %3956 = vmatprep.subr.mxu0 0.0
    %3957 = vmatpush1.msra.mxu0 %v3937
    %3958 = vmatprep.subr.mxu0 0.0
    %3959 = vmatpush1.msra.mxu0 %v3938
    %3960 = vmatprep.subr.mxu0 0.0
    %3961 = vmatpush1.msra.mxu0 %v3939
    %3962 = vmatprep.subr.mxu0 0.0
    %3963 = vmatpush1.msra.mxu0 %v3940
    %3964 = vmatprep.subr.mxu0 0.0
    %3965 = vmatpush1.msra.mxu0 %v3941
    %3966 = vmatprep.subr.mxu0 0.0
    %3967 = vmatpush1.msra.mxu0 %v3942
    %3968 = vmatprep.subr.mxu0 0.0
    %3969 = vmatpush1.msra.mxu0 %v3943
    %3970 = vmatprep.subr.mxu0 0.0
    %3971 = vmatpush1.msra.mxu0 0.0
    %3972 = vmatprep.subr.mxu0 0.0
    %3973 = vmatpush1.msra.mxu0 0.0
    %3974 = vmatprep.subr.mxu0 0.0
    %3975 = vmatpush1.msra.mxu0 0.0
    %3976 = vmatprep.subr.mxu0 0.0
    %3977 = vmatpush1.msra.mxu0 0.0
    %3978 = vmatprep.subr.mxu0 0.0
    %3979 = vmatpush1.msra.mxu0 0.0
    %3980 = vmatprep.subr.mxu0 0.0
    %3981 = vmatpush1.msra.mxu0 0.0
    %3982 = vmatprep.subr.mxu0 0.0
    %3983 = vmatpush1.msra.mxu0 0.0
    %3984 = vmatprep.subr.mxu0 0.0
    %3985 = vmatpush1.msra.mxu0 0.0
    %3986 = vmatprep.subr.mxu0 0.0
    %3987 = vmatpush1.msra.mxu0 0.0
    %3988 = vmatprep.subr.mxu0 0.0
    %3989 = vmatpush1.msra.mxu0 0.0
    %3990 = vmatprep.subr.mxu0 0.0
    %3991 = vmatpush1.msra.mxu0 0.0
    %3992 = vmatprep.subr.mxu0 0.0
    %3993 = vmatpush1.msra.mxu0 0.0
    %3994 = vmatprep.subr.mxu0 0.0
    %3995 = vmatpush1.msra.mxu0 0.0
    %3996 = vmatprep.subr.mxu0 0.0
    %3997 = vmatpush1.msra.mxu0 0.0
    %3998 = vmatprep.subr.mxu0 0.0
    %3999 = vmatpush1.msra.mxu0 0.0
    %4000 = vmatprep.subr.mxu0 0.0
    %4001 = vmatpush1.msra.mxu0 0.0
    %4002 = vmatprep.subr.mxu0 0.0
    %4003 = vmatpush1.msra.mxu0 0.0
    %4004 = vmatprep.subr.mxu0 0.0
    %4005 = vmatpush1.msra.mxu0 0.0
    %4006 = vmatprep.subr.mxu0 0.0
    %4007 = vmatpush1.msra.mxu0 0.0
    %4008 = vmatprep.subr.mxu0 0.0
    %4009 = vmatpush1.msra.mxu0 0.0
    %4010 = vmatprep.subr.mxu0 0.0
    %4011 = vmatpush1.msra.mxu0 0.0
    %4012 = vmatprep.subr.mxu0 0.0
    %4013 = vmatpush1.msra.mxu0 0.0
    %4014 = vmatprep.subr.mxu0 0.0
    %4015 = vmatpush1.msra.mxu0 0.0
    %4016 = vmatprep.subr.mxu0 0.0
    %4017 = vmatpush1.msra.mxu0 0.0
    %4018 = vmatprep.mubr.f32.mxu0 0.0
    %4019 = vmatmul.mubr.f32.gmra.mrb[0].mxu0 %v3952
    %v4020 = vpop.f32.mrb[0].mxu0
    %v4021 = vadd.f32 %v3949, %v4020
    %v4022 = vpop.f32.mrb[0].mxu0
    %4023 = vdwg.mxu0
    %v4024 = vsel %vm3687, %v4021, -inf
    %4025 = vmax.xlane.f32.xlu0 %v4024
    %v4026 = vpop.xlane.xlu0 %4025
    %v4027 = vsub.f32 %v4021, %v4026
    %v4028 = vmul.f32 %v4027, 1.442695
    %v4029 = vpow.pop %v4028
    %v4030 = vsel %vm3687, %v4029, 0.0
    %4031 = vadd.xlane.f32.xlu0 %v4030
    %v4032 = vpop.xlane.xlu0 %4031
    %v4033 = vlog2.pop %v4032
    %v4034 = vmul.f32 %v4033, 0.6931472
    %v4035 = vadd.f32 %v4026, %v4034
    %v4036 = vsub.f32 %v4021, %v4035
    %4037 = vst.msk [vmem:[%s23] sm:$0xff] %vm3687, %v4036
    // Predicated region
    $region126: #{tpu_custom_call.1} parent=1 // pred_check
      _
    $region127: #{tpu_custom_call.1} parent=1 // pred_check_branch
      %4039 = sbr.rel (0) target = $region129
    $region128: #{tpu_custom_call.1} parent=1 // pred_region
      _
    $region129: #{tpu_custom_call.1} parent=1 // pred_fallthru
      _
    // Predicated region
    $region130: #{tpu_custom_call.1} parent=1 // pred_check
      _
    $region131: #{tpu_custom_call.1} parent=1 // pred_check_branch
      %4041 = sbr.rel (0) target = $region133
    $region132: #{tpu_custom_call.1} parent=1 // pred_region
      _
    $region133: #{tpu_custom_call.1} parent=1 // pred_fallthru
      _
    %4042 = vsyncpa [#allocation3], 1
    %4043 = vsyncpa [#allocation5], 1
    %4044 = vsyncpa [#allocation8], 1
    %4045 = vsyncpa [#allocation11], 1
    %4046 = vsyncpa [#allocation14], 1

</llo_original>
